<compile_context>
chip_gen: v5e
topology: v5e:2x2
jax: 0.10.0
libtpu: 0.0.40
codegen_flags: <defaults>
</compile_context>

<pallas_src>
import functools

import jax
import jax.numpy as jnp
from jax.experimental import pallas as pl
from jax.experimental.pallas import tpu as pltpu

LN_EPS = 1e-5
COMPUTE_DTYPE = jnp.bfloat16        # MXU operand dtype; accumulation stays f32.


# ---------------------------------------------------------------------------
# Capability probes (keep the script runnable on any jax / libtpu combo)
# ---------------------------------------------------------------------------
_BUFFERED_SINGLE = None


def _single_buffer_ok():
    """True iff this JAX build accepts pipeline_mode=pl.Buffered(1) on BlockSpec."""
    global _BUFFERED_SINGLE
    if _BUFFERED_SINGLE is None:
        try:
            def _k(x_ref, o_ref):
                o_ref[...] = x_ref[...]

            out = pl.pallas_call(
                _k,
                out_shape=jax.ShapeDtypeStruct((8, 128), jnp.float32),
                grid=(1,),
                in_specs=[pl.BlockSpec((8, 128), lambda i: (0, 0),
                                       pipeline_mode=pl.Buffered(1))],
                out_specs=pl.BlockSpec((8, 128), lambda i: (0, 0)),
            )(jnp.zeros((8, 128), jnp.float32))
            jax.block_until_ready(out)
            _BUFFERED_SINGLE = True
        except Exception:
            _BUFFERED_SINGLE = False
    return _BUFFERED_SINGLE


@functools.lru_cache(maxsize=None)
def _vmem_limit_bytes():
    """~half of physical VMEM: 64 MiB on v5e/v6e (128 MiB phys), 32 MiB on v7x."""
    try:
        cap = pltpu.get_tpu_info().vmem_capacity_bytes
    except Exception:
        return 32 * 1024 * 1024
    return int(max(min(cap // 2, 96 * 1024 * 1024), 16 * 1024 * 1024))


# ---------------------------------------------------------------------------
# In-kernel helpers
# ---------------------------------------------------------------------------
def _layernorm(x, gamma, beta):
    mean = jnp.mean(x, axis=-1, keepdims=True)
    var = jnp.mean(jnp.square(x - mean), axis=-1, keepdims=True)
    return (x - mean) * jax.lax.rsqrt(var + LN_EPS) * gamma + beta


def _dot(a, b):
    return jnp.dot(a, b, preferred_element_type=jnp.float32)


def _dot_nt(a, b):
    """a: (m, k), b: (n, k) -> (m, n).  Contract last dims, no explicit .T."""
    return jax.lax.dot_general(a, b, (((1,), (1,)), ((), ())),
                               preferred_element_type=jnp.float32)


def _geglu_ff(xn, w1v, b1v, w1g, b1g, w2, b2):
    """Linear -> GEGLU -> Linear. xn is f32; matmul operands cast to bf16."""
    xb = xn.astype(w1v.dtype)
    hv = _dot(xb, w1v) + b1v                        # f32 accumulation
    hg = _dot(xb, w1g) + b1g
    # tanh-gelu lowers to the EUP slot (torch reference uses exact erf gelu;
    # numerical difference is negligible at these scales).
    z = hv * jax.nn.gelu(hg, approximate=True)      # f32 VPU/EUP
    return _dot(z.astype(w2.dtype), w2) + b2


# ---------------------------------------------------------------------------
# Kernels
# ---------------------------------------------------------------------------
def _ff_kernel(x_ref, g_ref, b_ref, w1v_ref, b1v_ref, w1g_ref, b1g_ref,
               w2_ref, b2_ref, o_ref):
    """LayerNorm -> Linear -> GEGLU -> Linear (no residual).  Row-tiled."""
    x = x_ref[...].astype(jnp.float32)                      # (TM, Din)
    xn = _layernorm(x, g_ref[...], b_ref[...])
    out = _geglu_ff(xn, w1v_ref[...], b1v_ref[...], w1g_ref[...], b1g_ref[...],
                    w2_ref[...], b2_ref[...])
    o_ref[...] = out.astype(o_ref.dtype)


def _ln_kv_kernel(x_ref, g_ref, b_ref, wk_ref, wv_ref, xn_ref, k_ref, v_ref):
    """LayerNorm once per token + heads-fused K/V projections (wide matmuls)."""
    x = x_ref[...].astype(jnp.float32)                      # (TM, D)
    xn = _layernorm(x, g_ref[...], b_ref[...])
    xn_ref[...] = xn.astype(xn_ref.dtype)                   # residual / Q input
    xb = xn.astype(wk_ref.dtype)
    k_ref[...] = _dot(xb, wk_ref[...]).astype(k_ref.dtype)  # (TM, H*dh)
    v_ref[...] = _dot(xb, wv_ref[...]).astype(v_ref.dtype)  # (TM, H*dh)


def make_attn_ff_kernel(heads, dim_head):
    """[MHA(LN(x)) -> outproj -> +LN(x)] -> [GEGLU FF(LN(y)) -> +LN(y)] fused.

    Inputs: query tile of the pre-normalized tensor and the per-batch resident
    K/V (already projected).  Softmax scale is folded into wq.
    """

    def kernel(xnq_ref, k_ref, v_ref,
               wq_ref, wout_ref, bout_ref,
               fg_ref, fb_ref, w1v_ref, b1v_ref, w1g_ref, b1g_ref,
               w2_ref, b2_ref, o_ref):
        xnq = xnq_ref[...].astype(jnp.float32)              # (TQ, D) = LN(x) rows
        k = k_ref[...]                                      # (N, H*dh) bf16
        v = v_ref[...]                                      # (N, H*dh) bf16

        # One wide Q projection for all heads (scale already folded into wq).
        q = _dot(xnq.astype(wq_ref.dtype), wq_ref[...])     # (TQ, H*dh) f32

        # TODO(synk): flash-style online-softmax KV tiling for very long table
        #             sequences; here one (TQ, N) sim per head is live at a time.
        head_outs = []
        for h in range(heads):                              # static unroll
            sl = slice(h * dim_head, (h + 1) * dim_head)    # lane-axis head view
            qh = q[:, sl].astype(k.dtype)
            sim = _dot_nt(qh, k[:, sl])                     # (TQ, N) f32
            sim = sim - jnp.max(sim, axis=-1, keepdims=True)
            p = jnp.exp(sim)
            attn = p * pl.reciprocal(jnp.sum(p, axis=-1, keepdims=True),
                                     approx=True)
            head_outs.append(_dot(attn.astype(v.dtype), v[:, sl]))  # (TQ, dh)
        o = jnp.concatenate(head_outs, axis=-1)             # (TQ, H*dh) f32

        # Single wide output projection, bias hoisted out of the head loop.
        y = _dot(o.astype(wout_ref.dtype), wout_ref[...]) + bout_ref[...] + xnq
        # ^ residual on LN(x): PreNorm(Residual(Attention))

        xn2 = _layernorm(y, fg_ref[...], fb_ref[...])
        ff = _geglu_ff(xn2, w1v_ref[...], b1v_ref[...], w1g_ref[...], b1g_ref[...],
                       w2_ref[...], b2_ref[...])
        o_ref[...] = (ff + xn2).astype(o_ref.dtype)         # residual on LN(y)

    return kernel


# ---------------------------------------------------------------------------
# BlockSpec helpers
# ---------------------------------------------------------------------------
def _spec(block_shape, index_map, *, single_buffer=False):
    if single_buffer and _single_buffer_ok():
        return pl.BlockSpec(block_shape, index_map, pipeline_mode=pl.Buffered(1))
    return pl.BlockSpec(block_shape, index_map)


def _const_spec(shape):
    """Full-array spec with a constant block index: stays resident in VMEM.
    Single-buffered (when supported) to halve its VMEM footprint."""
    ndim = len(shape)
    return _spec(shape, lambda *_: (0,) * ndim, single_buffer=True)


def _pick_tile(n, target):
    """Largest multiple-of-8 tile <= target that divides n (else n itself)."""
    if n <= target:
        return n
    t = (target // 8) * 8
    while t >= 8:
        if n % t == 0:
            return t
        t -= 8
    return n


# ---------------------------------------------------------------------------
# Pallas wrappers
# ---------------------------------------------------------------------------
def prenorm_ff(x2d, p, *, tile_m=512):
    """x2d: (M, Din) -> (M, Dout).  Row-tiled, weights resident in VMEM.
    tile_m can be raised to ~1024 on 128 MiB-VMEM parts (v5e/v6e)."""
    M, d_in = x2d.shape
    d_out = p["w2"].shape[1]
    tm = _pick_tile(M, tile_m)

    args = (x2d, p["gamma"], p["beta"], p["w1v"], p["b1v"], p["w1g"], p["b1g"],
            p["w2"], p["b2"])
    in_specs = [pl.BlockSpec((tm, d_in), lambda i: (i, 0))]
    in_specs += [_const_spec(a.shape) for a in args[1:]]

    return pl.pallas_call(
        _ff_kernel,
        out_shape=jax.ShapeDtypeStruct((M, d_out), x2d.dtype),
        grid=(pl.cdiv(M, tm),),
        in_specs=in_specs,
        out_specs=pl.BlockSpec((tm, d_out), lambda i: (i, 0)),
        compiler_params=pltpu.CompilerParams(
            dimension_semantics=("parallel",),
            vmem_limit_bytes=_vmem_limit_bytes()),
    )(*args)


def ln_kv_project(x2d, attn_p, heads, dim_head, *, tile_m=512):
    """LN(x) plus fused K/V projections, each token touched exactly once."""
    M, D = x2d.shape
    HK = heads * dim_head
    tm = _pick_tile(M, tile_m)

    args = (x2d, attn_p["gamma"], attn_p["beta"], attn_p["wk"], attn_p["wv"])
    in_specs = [pl.BlockSpec((tm, D), lambda i: (i, 0))]
    in_specs += [_const_spec(a.shape) for a in args[1:]]

    return pl.pallas_call(
        _ln_kv_kernel,
        out_shape=(jax.ShapeDtypeStruct((M, D), x2d.dtype),
                   jax.ShapeDtypeStruct((M, HK), COMPUTE_DTYPE),
                   jax.ShapeDtypeStruct((M, HK), COMPUTE_DTYPE)),
        grid=(pl.cdiv(M, tm),),
        in_specs=in_specs,
        out_specs=(pl.BlockSpec((tm, D), lambda i: (i, 0)),
                   pl.BlockSpec((tm, HK), lambda i: (i, 0)),
                   pl.BlockSpec((tm, HK), lambda i: (i, 0))),
        compiler_params=pltpu.CompilerParams(
            dimension_semantics=("parallel",),
            vmem_limit_bytes=_vmem_limit_bytes()),
    )(*args)


def attn_ff_block(x3d, attn_p, ff_p, heads, dim_head, *, tile_q=256):
    """Fused PreNorm(Residual(Attention)) + PreNorm(Residual(FeedForward)).

    Stage 1 computes LN(x), K, V once per token.  Stage 2 runs grid
    (batch, query-tile); K/V for the current batch element are resident across
    all its query tiles (block index independent of qi), so nothing KV-sided is
    recomputed per tile and both grid axes stay "parallel".
    """
    B, N, D = x3d.shape
    HK = heads * dim_head

    xn2d, k2d, v2d = ln_kv_project(x3d.reshape(B * N, D), attn_p, heads, dim_head)
    xn = xn2d.reshape(B, N, D)
    k3 = k2d.reshape(B, N, HK)
    v3 = v2d.reshape(B, N, HK)

    tq = _pick_tile(N, tile_q)          # capped (review: v7x 64 MiB VMEM)
    grid = (B, pl.cdiv(N, tq))

    q_spec = pl.BlockSpec((pl.Squeezed(), tq, D), lambda b, qi: (b, qi, 0))
    # K/V block index only changes with b; keep default double-buffering so the
    # next table's (small, bf16) K/V prefetch overlaps the current compute.
    kv_spec = pl.BlockSpec((pl.Squeezed(), N, HK), lambda b, qi: (b, 0, 0))

    args = (xn, k3, v3,
            attn_p["wq"], attn_p["wout"], attn_p["bout"],
            ff_p["gamma"], ff_p["beta"], ff_p["w1v"], ff_p["b1v"],
            ff_p["w1g"], ff_p["b1g"], ff_p["w2"], ff_p["b2"])
    in_specs = [q_spec, kv_spec, kv_spec] + [_const_spec(a.shape) for a in args[3:]]

    return pl.pallas_call(
        make_attn_ff_kernel(heads, dim_head),
        out_shape=jax.ShapeDtypeStruct((B, N, D), x3d.dtype),
        grid=grid,
        in_specs=in_specs,
        out_specs=q_spec,
        compiler_params=pltpu.CompilerParams(
            dimension_semantics=("parallel", "parallel"),
            vmem_limit_bytes=_vmem_limit_bytes()),
    )(*args)


# ---------------------------------------------------------------------------
# Parameter construction (deterministic, synthetic)
# ---------------------------------------------------------------------------
def _w(key, shape, scale=0.05):
    return (scale * jax.random.normal(key, shape, jnp.float32)).astype(COMPUTE_DTYPE)


def _ff_params(key, d_in, d_out, mult=4):
    k1, k2, k3 = jax.random.split(key, 3)
    h = d_in * mult
    return {
        "gamma": jnp.ones((1, d_in), jnp.float32),
        "beta": jnp.zeros((1, d_in), jnp.float32),
        "w1v": _w(k1, (d_in, h)),                    # GEGLU value half
        "b1v": jnp.zeros((1, h), jnp.float32),
        "w1g": _w(k2, (d_in, h)),                    # GEGLU gate half
        "b1g": jnp.zeros((1, h), jnp.float32),
        "w2": _w(k3, (h, d_out)),
        "b2": jnp.zeros((1, d_out), jnp.float32),
    }


def _attn_params(key, dim, heads, dim_head):
    k1, k2, k3, k4 = jax.random.split(key, 4)
    hk = heads * dim_head
    return {
        "gamma": jnp.ones((1, dim), jnp.float32),
        "beta": jnp.zeros((1, dim), jnp.float32),
        # Heads fused into the lane axis ('(h d)' layout, h major); the softmax
        # scale dim_head**-0.5 is folded into wq at parameter-preparation time.
        "wq": _w(k1, (dim, hk), 0.05 * dim_head ** (-0.5)),
        "wk": _w(k2, (dim, hk)),
        "wv": _w(k3, (dim, hk)),
        "wout": _w(k4, (hk, dim)),
        "bout": jnp.zeros((1, dim), jnp.float32),
    }


def init_contabulizer_params(key, input_dim, hidden_dim, num_transformer_blocks,
                             heads, row_dim_head, table_dim_head):
    keys = jax.random.split(key, 1 + 4 * num_transformer_blocks)
    params = {"first": _ff_params(keys[0], input_dim, hidden_dim), "blocks": []}
    for i in range(num_transformer_blocks):
        kb = keys[1 + 4 * i: 1 + 4 * (i + 1)]
        params["blocks"].append({
            "row_attn": _attn_params(kb[0], hidden_dim, heads, row_dim_head),
            "ff1": _ff_params(kb[1], hidden_dim, hidden_dim),
            "table_attn": _attn_params(kb[2], hidden_dim, heads, table_dim_head),
            "ff2": _ff_params(kb[3], hidden_dim, hidden_dim),
        })
    return params


# ---------------------------------------------------------------------------
# ConTabulizer forward
# ---------------------------------------------------------------------------
def contabulizer_forward(x, params, heads, row_dim_head, table_dim_head,
                         hidden_dim):
    B, N, d_in = x.shape
    # layers[0]: PreNorm(FeedForward(input_dim, hidden_dim)) -- no residual.
    y = prenorm_ff(x.reshape(B * N, d_in), params["first"])
    x = y.reshape(B, N, hidden_dim)
    x_shape = x.shape
    for blk in params["blocks"]:
        # PreNorm(Residual(row Attention)) fused with PreNorm(Residual(FF1)).
        x = attn_ff_block(x, blk["row_attn"], blk["ff1"], heads, row_dim_head)
        # view(-1, D).unsqueeze(0): all tokens of all tables as one sequence.
        xt = x.reshape(1, B * N, hidden_dim)
        # PreNorm(Residual(table Attention)) fused with PreNorm(Residual(FF2));
        # FF2 is per-token so fusing it before the reshape-back is equivalent.
        xt = attn_ff_block(xt, blk["table_attn"], blk["ff2"], heads,
                           table_dim_head)
        x = xt.reshape(x_shape)
    return x


# ---------------------------------------------------------------------------
if __name__ == "__main__":
    key = jax.random.PRNGKey(0)
    k_params, k_x = jax.random.split(key)

    B, N = 2, 8                 # batch of tables, rows per table
    input_dim = 16
    hidden_dim = 32
    num_transformer_blocks = 2
    heads = 2
    row_dim_head = 8
    table_dim_head = 8

    params = init_contabulizer_params(
        k_params, input_dim, hidden_dim, num_transformer_blocks,
        heads, row_dim_head, table_dim_head)

    x = jax.random.normal(k_x, (B, N, input_dim), jnp.float32)

    _single_buffer_ok()         # resolve the Buffered(1) capability probe eagerly

    fwd = jax.jit(functools.partial(
        contabulizer_forward, heads=heads, row_dim_head=row_dim_head,
        table_dim_head=table_dim_head, hidden_dim=hidden_dim))
    out = jax.block_until_ready(fwd(x, params))

    assert out.shape == (B, N, hidden_dim), out.shape
    assert bool(jnp.all(jnp.isfinite(out)))
    print("KERNEL_OK")
</pallas_src>

<mosaic_0001>
module attributes {stable_mosaic.version = 11 : i64} {
  func.func @_k(%arg0: i32, %arg1: memref<8x128xf32, #tpu.memory_space<vmem>>, %arg2: memref<8x128xf32, #tpu.memory_space<vmem>>) attributes {dimension_semantics = [#tpu.dimension_semantics<arbitrary>], iteration_bounds = array<i64: 1>, scalar_prefetch = 0 : i64, scratch_operands = 0 : i64, tpu.core_type = #tpu.core_type<tc>, window_params = [{pipeline_mode = #tpu.pipeline_mode<synchronous>, transform_indices = @transform_0, window_bounds = array<i64: 8, 128>}, {pipeline_mode = #tpu.pipeline_mode<synchronous>, transform_indices = @transform_1, window_bounds = array<i64: 8, 128>}]} {
    %c0 = arith.constant 0 : index
    %c0_0 = arith.constant 0 : index
    %0 = vector.load %arg1[%c0, %c0_0] : memref<8x128xf32, #tpu.memory_space<vmem>>, vector<8x128xf32>
    %c0_1 = arith.constant 0 : index
    %c0_2 = arith.constant 0 : index
    %1 = vector.load %arg2[%c0_1, %c0_2] : memref<8x128xf32, #tpu.memory_space<vmem>>, vector<8x128xf32>
    tpu.vector_store %arg2[%c0_1, %c0_2], %0 {strides = array<i32>} : memref<8x128xf32, #tpu.memory_space<vmem>>, vector<8x128xf32>,
    return
  }
  func.func @transform_0(%arg0: i32) -> (i32, i32) {
    %c0_i32 = arith.constant 0 : i32
    %c0_i32_0 = arith.constant 0 : i32
    %c0_i32_1 = arith.constant 0 : i32
    return %c0_i32, %c0_i32_0 : i32, i32
  }
  func.func @transform_1(%arg0: i32) -> (i32, i32) {
    %c0_i32 = arith.constant 0 : i32
    %c0_i32_0 = arith.constant 0 : i32
    %c0_i32_1 = arith.constant 0 : i32
    return %c0_i32, %c0_i32_0 : i32, i32
  }
}

module attributes {stable_mosaic.version = 11 : i64} {
  func.func @_ln_kv_kernel(%arg0: i32, %arg1: memref<16x32xf32, #tpu.memory_space<vmem>>, %arg2: memref<1x32xf32, #tpu.memory_space<vmem>>, %arg3: memref<1x32xf32, #tpu.memory_space<vmem>>, %arg4: memref<32x16xbf16, #tpu.memory_space<vmem>>, %arg5: memref<32x16xbf16, #tpu.memory_space<vmem>>, %arg6: memref<16x32xf32, #tpu.memory_space<vmem>>, %arg7: memref<16x16xbf16, #tpu.memory_space<vmem>>, %arg8: memref<16x16xbf16, #tpu.memory_space<vmem>>) attributes {dimension_semantics = [#tpu.dimension_semantics<parallel>], iteration_bounds = array<i64: 1>, scalar_prefetch = 0 : i64, scratch_operands = 0 : i64, tpu.core_type = #tpu.core_type<tc>, window_params = [{transform_indices = @transform_0, window_bounds = array<i64: 16, 32>}, {pipeline_mode = #tpu.pipeline_mode<synchronous>, transform_indices = @transform_1, window_bounds = array<i64: 1, 32>}, {pipeline_mode = #tpu.pipeline_mode<synchronous>, transform_indices = @transform_2, window_bounds = array<i64: 1, 32>}, {pipeline_mode = #tpu.pipeline_mode<synchronous>, transform_indices = @transform_3, window_bounds = array<i64: 32, 16>}, {pipeline_mode = #tpu.pipeline_mode<synchronous>, transform_indices = @transform_4, window_bounds = array<i64: 32, 16>}, {transform_indices = @transform_5, window_bounds = array<i64: 16, 32>}, {transform_indices = @transform_6, window_bounds = array<i64: 16, 16>}, {transform_indices = @transform_7, window_bounds = array<i64: 16, 16>}]} {
    %c0 = arith.constant 0 : index
    %c0_0 = arith.constant 0 : index
    %0 = vector.load %arg1[%c0, %c0_0] : memref<16x32xf32, #tpu.memory_space<vmem>>, vector<16x32xf32>
    %c0_1 = arith.constant 0 : index
    %c0_2 = arith.constant 0 : index
    %1 = vector.load %arg2[%c0_1, %c0_2] : memref<1x32xf32, #tpu.memory_space<vmem>>, vector<1x32xf32>
    %c0_3 = arith.constant 0 : index
    %c0_4 = arith.constant 0 : index
    %2 = vector.load %arg3[%c0_3, %c0_4] : memref<1x32xf32, #tpu.memory_space<vmem>>, vector<1x32xf32>
    %cst = arith.constant dense<0.000000e+00> : vector<16xf32>
    %3 = vector.multi_reduction <add>, %0, %cst [1] : vector<16x32xf32> to vector<16xf32>
    %4 = vector.shape_cast %3 : vector<16xf32> to vector<16x1xf32>
    %cst_5 = arith.constant 3.200000e+01 : f32
    %5 = vector.broadcast %cst_5 : f32 to vector<16x1xf32>
    %6 = arith.divf %4, %5 : vector<16x1xf32>
    %7 = vector.broadcast %6 : vector<16x1xf32> to vector<16x32xf32>
    %8 = arith.subf %0, %7 : vector<16x32xf32>
    %9 = arith.mulf %8, %8 : vector<16x32xf32>
    %cst_6 = arith.constant dense<0.000000e+00> : vector<16xf32>
    %10 = vector.multi_reduction <add>, %9, %cst_6 [1] : vector<16x32xf32> to vector<16xf32>
    %11 = vector.shape_cast %10 : vector<16xf32> to vector<16x1xf32>
    %cst_7 = arith.constant 3.200000e+01 : f32
    %12 = vector.broadcast %cst_7 : f32 to vector<16x1xf32>
    %13 = arith.divf %11, %12 : vector<16x1xf32>
    %14 = vector.broadcast %6 : vector<16x1xf32> to vector<16x32xf32>
    %15 = arith.subf %0, %14 : vector<16x32xf32>
    %cst_8 = arith.constant 9.99999974E-6 : f32
    %16 = vector.broadcast %cst_8 : f32 to vector<16x1xf32>
    %17 = arith.addf %13, %16 : vector<16x1xf32>
    %18 = math.rsqrt %17 : vector<16x1xf32>
    %19 = vector.broadcast %18 : vector<16x1xf32> to vector<16x32xf32>
    %20 = arith.mulf %15, %19 : vector<16x32xf32>
    %21 = vector.broadcast %1 : vector<1x32xf32> to vector<16x32xf32>
    %22 = arith.mulf %20, %21 : vector<16x32xf32>
    %23 = vector.broadcast %2 : vector<1x32xf32> to vector<16x32xf32>
    %24 = arith.addf %22, %23 : vector<16x32xf32>
    %c0_9 = arith.constant 0 : index
    %c0_10 = arith.constant 0 : index
    %25 = vector.load %arg6[%c0_9, %c0_10] : memref<16x32xf32, #tpu.memory_space<vmem>>, vector<16x32xf32>
    tpu.vector_store %arg6[%c0_9, %c0_10], %24 {strides = array<i32>} : memref<16x32xf32, #tpu.memory_space<vmem>>, vector<16x32xf32>,
    %26 = arith.truncf %24 : vector<16x32xf32> to vector<16x32xbf16>
    %c0_11 = arith.constant 0 : index
    %c0_12 = arith.constant 0 : index
    %27 = vector.load %arg4[%c0_11, %c0_12] : memref<32x16xbf16, #tpu.memory_space<vmem>>, vector<32x16xbf16>
    %cst_13 = arith.constant dense<0.000000e+00> : vector<16x16xf32>
    %28 = tpu.matmul %26, %27, %cst_13 {dimension_numbers = #tpu.dot_dimension_numbers<[1], [0], [0], [1], [0, 0, 1, 1], [], []>} : vector<16x32xbf16>, vector<32x16xbf16>, vector<16x16xf32> -> vector<16x16xf32>
    %29 = arith.truncf %28 : vector<16x16xf32> to vector<16x16xbf16>
    %c0_14 = arith.constant 0 : index
    %c0_15 = arith.constant 0 : index
    %30 = vector.load %arg7[%c0_14, %c0_15] : memref<16x16xbf16, #tpu.memory_space<vmem>>, vector<16x16xbf16>
    tpu.vector_store %arg7[%c0_14, %c0_15], %29 {strides = array<i32>} : memref<16x16xbf16, #tpu.memory_space<vmem>>, vector<16x16xbf16>,
    %c0_16 = arith.constant 0 : index
    %c0_17 = arith.constant 0 : index
    %31 = vector.load %arg5[%c0_16, %c0_17] : memref<32x16xbf16, #tpu.memory_space<vmem>>, vector<32x16xbf16>
    %cst_18 = arith.constant dense<0.000000e+00> : vector<16x16xf32>
    %32 = tpu.matmul %26, %31, %cst_18 {dimension_numbers = #tpu.dot_dimension_numbers<[1], [0], [0], [1], [0, 0, 1, 1], [], []>} : vector<16x32xbf16>, vector<32x16xbf16>, vector<16x16xf32> -> vector<16x16xf32>
    %33 = arith.truncf %32 : vector<16x16xf32> to vector<16x16xbf16>
    %c0_19 = arith.constant 0 : index
    %c0_20 = arith.constant 0 : index
    %34 = vector.load %arg8[%c0_19, %c0_20] : memref<16x16xbf16, #tpu.memory_space<vmem>>, vector<16x16xbf16>
    tpu.vector_store %arg8[%c0_19, %c0_20], %33 {strides = array<i32>} : memref<16x16xbf16, #tpu.memory_space<vmem>>, vector<16x16xbf16>,
    return
  }
  func.func @transform_0(%arg0: i32) -> (i32, i32) {
    %c0_i32 = arith.constant 0 : i32
    %c0_i32_0 = arith.constant 0 : i32
    return %arg0, %c0_i32 : i32, i32
  }
  func.func @transform_1(%arg0: i32) -> (i32, i32) {
    %c0_i32 = arith.constant 0 : i32
    %c0_i32_0 = arith.constant 0 : i32
    %c0_i32_1 = arith.constant 0 : i32
    return %c0_i32, %c0_i32_0 : i32, i32
  }
  func.func @transform_2(%arg0: i32) -> (i32, i32) {
    %c0_i32 = arith.constant 0 : i32
    %c0_i32_0 = arith.constant 0 : i32
    %c0_i32_1 = arith.constant 0 : i32
    return %c0_i32, %c0_i32_0 : i32, i32
  }
  func.func @transform_3(%arg0: i32) -> (i32, i32) {
    %c0_i32 = arith.constant 0 : i32
    %c0_i32_0 = arith.constant 0 : i32
    %c0_i32_1 = arith.constant 0 : i32
    return %c0_i32, %c0_i32_0 : i32, i32
  }
  func.func @transform_4(%arg0: i32) -> (i32, i32) {
    %c0_i32 = arith.constant 0 : i32
    %c0_i32_0 = arith.constant 0 : i32
    %c0_i32_1 = arith.constant 0 : i32
    return %c0_i32, %c0_i32_0 : i32, i32
  }
  func.func @transform_5(%arg0: i32) -> (i32, i32) {
    %c0_i32 = arith.constant 0 : i32
    %c0_i32_0 = arith.constant 0 : i32
    return %arg0, %c0_i32 : i32, i32
  }
  func.func @transform_6(%arg0: i32) -> (i32, i32) {
    %c0_i32 = arith.constant 0 : i32
    %c0_i32_0 = arith.constant 0 : i32
    return %arg0, %c0_i32 : i32, i32
  }
  func.func @transform_7(%arg0: i32) -> (i32, i32) {
    %c0_i32 = arith.constant 0 : i32
    %c0_i32_0 = arith.constant 0 : i32
    return %arg0, %c0_i32 : i32, i32
  }
}

module attributes {stable_mosaic.version = 11 : i64} {
  func.func @_ff_kernel(%arg0: i32, %arg1: memref<16x16xf32, #tpu.memory_space<vmem>>, %arg2: memref<1x16xf32, #tpu.memory_space<vmem>>, %arg3: memref<1x16xf32, #tpu.memory_space<vmem>>, %arg4: memref<16x64xbf16, #tpu.memory_space<vmem>>, %arg5: memref<1x64xf32, #tpu.memory_space<vmem>>, %arg6: memref<16x64xbf16, #tpu.memory_space<vmem>>, %arg7: memref<1x64xf32, #tpu.memory_space<vmem>>, %arg8: memref<64x32xbf16, #tpu.memory_space<vmem>>, %arg9: memref<1x32xf32, #tpu.memory_space<vmem>>, %arg10: memref<16x32xf32, #tpu.memory_space<vmem>>) attributes {dimension_semantics = [#tpu.dimension_semantics<parallel>], iteration_bounds = array<i64: 1>, scalar_prefetch = 0 : i64, scratch_operands = 0 : i64, tpu.core_type = #tpu.core_type<tc>, window_params = [{transform_indices = @transform_0, window_bounds = array<i64: 16, 16>}, {pipeline_mode = #tpu.pipeline_mode<synchronous>, transform_indices = @transform_1, window_bounds = array<i64: 1, 16>}, {pipeline_mode = #tpu.pipeline_mode<synchronous>, transform_indices = @transform_2, window_bounds = array<i64: 1, 16>}, {pipeline_mode = #tpu.pipeline_mode<synchronous>, transform_indices = @transform_3, window_bounds = array<i64: 16, 64>}, {pipeline_mode = #tpu.pipeline_mode<synchronous>, transform_indices = @transform_4, window_bounds = array<i64: 1, 64>}, {pipeline_mode = #tpu.pipeline_mode<synchronous>, transform_indices = @transform_5, window_bounds = array<i64: 16, 64>}, {pipeline_mode = #tpu.pipeline_mode<synchronous>, transform_indices = @transform_6, window_bounds = array<i64: 1, 64>}, {pipeline_mode = #tpu.pipeline_mode<synchronous>, transform_indices = @transform_7, window_bounds = array<i64: 64, 32>}, {pipeline_mode = #tpu.pipeline_mode<synchronous>, transform_indices = @transform_8, window_bounds = array<i64: 1, 32>}, {transform_indices = @transform_9, window_bounds = array<i64: 16, 32>}]} {
    %c0 = arith.constant 0 : index
    %c0_0 = arith.constant 0 : index
    %0 = vector.load %arg1[%c0, %c0_0] : memref<16x16xf32, #tpu.memory_space<vmem>>, vector<16x16xf32>
    %c0_1 = arith.constant 0 : index
    %c0_2 = arith.constant 0 : index
    %1 = vector.load %arg2[%c0_1, %c0_2] : memref<1x16xf32, #tpu.memory_space<vmem>>, vector<1x16xf32>
    %c0_3 = arith.constant 0 : index
    %c0_4 = arith.constant 0 : index
    %2 = vector.load %arg3[%c0_3, %c0_4] : memref<1x16xf32, #tpu.memory_space<vmem>>, vector<1x16xf32>
    %cst = arith.constant dense<0.000000e+00> : vector<16xf32>
    %3 = vector.multi_reduction <add>, %0, %cst [1] : vector<16x16xf32> to vector<16xf32>
    %4 = vector.shape_cast %3 : vector<16xf32> to vector<16x1xf32>
    %cst_5 = arith.constant 1.600000e+01 : f32
    %5 = vector.broadcast %cst_5 : f32 to vector<16x1xf32>
    %6 = arith.divf %4, %5 : vector<16x1xf32>
    %7 = vector.broadcast %6 : vector<16x1xf32> to vector<16x16xf32>
    %8 = arith.subf %0, %7 : vector<16x16xf32>
    %9 = arith.mulf %8, %8 : vector<16x16xf32>
    %cst_6 = arith.constant dense<0.000000e+00> : vector<16xf32>
    %10 = vector.multi_reduction <add>, %9, %cst_6 [1] : vector<16x16xf32> to vector<16xf32>
    %11 = vector.shape_cast %10 : vector<16xf32> to vector<16x1xf32>
    %cst_7 = arith.constant 1.600000e+01 : f32
    %12 = vector.broadcast %cst_7 : f32 to vector<16x1xf32>
    %13 = arith.divf %11, %12 : vector<16x1xf32>
    %14 = vector.broadcast %6 : vector<16x1xf32> to vector<16x16xf32>
    %15 = arith.subf %0, %14 : vector<16x16xf32>
    %cst_8 = arith.constant 9.99999974E-6 : f32
    %16 = vector.broadcast %cst_8 : f32 to vector<16x1xf32>
    %17 = arith.addf %13, %16 : vector<16x1xf32>
    %18 = math.rsqrt %17 : vector<16x1xf32>
    %19 = vector.broadcast %18 : vector<16x1xf32> to vector<16x16xf32>
    %20 = arith.mulf %15, %19 : vector<16x16xf32>
    %21 = vector.broadcast %1 : vector<1x16xf32> to vector<16x16xf32>
    %22 = arith.mulf %20, %21 : vector<16x16xf32>
    %23 = vector.broadcast %2 : vector<1x16xf32> to vector<16x16xf32>
    %24 = arith.addf %22, %23 : vector<16x16xf32>
    %c0_9 = arith.constant 0 : index
    %c0_10 = arith.constant 0 : index
    %25 = vector.load %arg4[%c0_9, %c0_10] : memref<16x64xbf16, #tpu.memory_space<vmem>>, vector<16x64xbf16>
    %c0_11 = arith.constant 0 : index
    %c0_12 = arith.constant 0 : index
    %26 = vector.load %arg5[%c0_11, %c0_12] : memref<1x64xf32, #tpu.memory_space<vmem>>, vector<1x64xf32>
    %c0_13 = arith.constant 0 : index
    %c0_14 = arith.constant 0 : index
    %27 = vector.load %arg6[%c0_13, %c0_14] : memref<16x64xbf16, #tpu.memory_space<vmem>>, vector<16x64xbf16>
    %c0_15 = arith.constant 0 : index
    %c0_16 = arith.constant 0 : index
    %28 = vector.load %arg7[%c0_15, %c0_16] : memref<1x64xf32, #tpu.memory_space<vmem>>, vector<1x64xf32>
    %c0_17 = arith.constant 0 : index
    %c0_18 = arith.constant 0 : index
    %29 = vector.load %arg8[%c0_17, %c0_18] : memref<64x32xbf16, #tpu.memory_space<vmem>>, vector<64x32xbf16>
    %c0_19 = arith.constant 0 : index
    %c0_20 = arith.constant 0 : index
    %30 = vector.load %arg9[%c0_19, %c0_20] : memref<1x32xf32, #tpu.memory_space<vmem>>, vector<1x32xf32>
    %31 = arith.truncf %24 : vector<16x16xf32> to vector<16x16xbf16>
    %cst_21 = arith.constant dense<0.000000e+00> : vector<16x64xf32>
    %32 = tpu.matmul %31, %25, %cst_21 {dimension_numbers = #tpu.dot_dimension_numbers<[1], [0], [0], [1], [0, 0, 1, 1], [], []>} : vector<16x16xbf16>, vector<16x64xbf16>, vector<16x64xf32> -> vector<16x64xf32>
    %33 = vector.broadcast %26 : vector<1x64xf32> to vector<16x64xf32>
    %34 = arith.addf %32, %33 : vector<16x64xf32>
    %cst_22 = arith.constant dense<0.000000e+00> : vector<16x64xf32>
    %35 = tpu.matmul %31, %27, %cst_22 {dimension_numbers = #tpu.dot_dimension_numbers<[1], [0], [0], [1], [0, 0, 1, 1], [], []>} : vector<16x16xbf16>, vector<16x64xbf16>, vector<16x64xf32> -> vector<16x64xf32>
    %36 = vector.broadcast %28 : vector<1x64xf32> to vector<16x64xf32>
    %37 = arith.addf %35, %36 : vector<16x64xf32>
    %38 = arith.mulf %37, %37 : vector<16x64xf32>
    %39 = arith.mulf %37, %38 : vector<16x64xf32>
    %cst_23 = arith.constant 4.471500e-02 : f32
    %40 = vector.broadcast %cst_23 : f32 to vector<16x64xf32>
    %41 = arith.mulf %40, %39 : vector<16x64xf32>
    %42 = arith.addf %37, %41 : vector<16x64xf32>
    %cst_24 = arith.constant 0.797884583 : f32
    %43 = vector.broadcast %cst_24 : f32 to vector<16x64xf32>
    %44 = arith.mulf %43, %42 : vector<16x64xf32>
    %45 = math.tanh %44 : vector<16x64xf32>
    %cst_25 = arith.constant 1.000000e+00 : f32
    %46 = vector.broadcast %cst_25 : f32 to vector<16x64xf32>
    %47 = arith.addf %46, %45 : vector<16x64xf32>
    %cst_26 = arith.constant 5.000000e-01 : f32
    %48 = vector.broadcast %cst_26 : f32 to vector<16x64xf32>
    %49 = arith.mulf %48, %47 : vector<16x64xf32>
    %50 = arith.mulf %37, %49 : vector<16x64xf32>
    %51 = arith.mulf %34, %50 : vector<16x64xf32>
    %52 = arith.truncf %51 : vector<16x64xf32> to vector<16x64xbf16>
    %cst_27 = arith.constant dense<0.000000e+00> : vector<16x32xf32>
    %53 = tpu.matmul %52, %29, %cst_27 {dimension_numbers = #tpu.dot_dimension_numbers<[1], [0], [0], [1], [0, 0, 1, 1], [], []>} : vector<16x64xbf16>, vector<64x32xbf16>, vector<16x32xf32> -> vector<16x32xf32>
    %54 = vector.broadcast %30 : vector<1x32xf32> to vector<16x32xf32>
    %55 = arith.addf %53, %54 : vector<16x32xf32>
    %c0_28 = arith.constant 0 : index
    %c0_29 = arith.constant 0 : index
    %56 = vector.load %arg10[%c0_28, %c0_29] : memref<16x32xf32, #tpu.memory_space<vmem>>, vector<16x32xf32>
    tpu.vector_store %arg10[%c0_28, %c0_29], %55 {strides = array<i32>} : memref<16x32xf32, #tpu.memory_space<vmem>>, vector<16x32xf32>,
    return
  }
  func.func @transform_0(%arg0: i32) -> (i32, i32) {
    %c0_i32 = arith.constant 0 : i32
    %c0_i32_0 = arith.constant 0 : i32
    return %arg0, %c0_i32 : i32, i32
  }
  func.func @transform_1(%arg0: i32) -> (i32, i32) {
    %c0_i32 = arith.constant 0 : i32
    %c0_i32_0 = arith.constant 0 : i32
    %c0_i32_1 = arith.constant 0 : i32
    return %c0_i32, %c0_i32_0 : i32, i32
  }
  func.func @transform_2(%arg0: i32) -> (i32, i32) {
    %c0_i32 = arith.constant 0 : i32
    %c0_i32_0 = arith.constant 0 : i32
    %c0_i32_1 = arith.constant 0 : i32
    return %c0_i32, %c0_i32_0 : i32, i32
  }
  func.func @transform_3(%arg0: i32) -> (i32, i32) {
    %c0_i32 = arith.constant 0 : i32
    %c0_i32_0 = arith.constant 0 : i32
    %c0_i32_1 = arith.constant 0 : i32
    return %c0_i32, %c0_i32_0 : i32, i32
  }
  func.func @transform_4(%arg0: i32) -> (i32, i32) {
    %c0_i32 = arith.constant 0 : i32
    %c0_i32_0 = arith.constant 0 : i32
    %c0_i32_1 = arith.constant 0 : i32
    return %c0_i32, %c0_i32_0 : i32, i32
  }
  func.func @transform_5(%arg0: i32) -> (i32, i32) {
    %c0_i32 = arith.constant 0 : i32
    %c0_i32_0 = arith.constant 0 : i32
    %c0_i32_1 = arith.constant 0 : i32
    return %c0_i32, %c0_i32_0 : i32, i32
  }
  func.func @transform_6(%arg0: i32) -> (i32, i32) {
    %c0_i32 = arith.constant 0 : i32
    %c0_i32_0 = arith.constant 0 : i32
    %c0_i32_1 = arith.constant 0 : i32
    return %c0_i32, %c0_i32_0 : i32, i32
  }
  func.func @transform_7(%arg0: i32) -> (i32, i32) {
    %c0_i32 = arith.constant 0 : i32
    %c0_i32_0 = arith.constant 0 : i32
    %c0_i32_1 = arith.constant 0 : i32
    return %c0_i32, %c0_i32_0 : i32, i32
  }
  func.func @transform_8(%arg0: i32) -> (i32, i32) {
    %c0_i32 = arith.constant 0 : i32
    %c0_i32_0 = arith.constant 0 : i32
    %c0_i32_1 = arith.constant 0 : i32
    return %c0_i32, %c0_i32_0 : i32, i32
  }
  func.func @transform_9(%arg0: i32) -> (i32, i32) {
    %c0_i32 = arith.constant 0 : i32
    %c0_i32_0 = arith.constant 0 : i32
    return %arg0, %c0_i32 : i32, i32
  }
}

module attributes {stable_mosaic.version = 11 : i64} {
  func.func @kernel(%arg0: i32, %arg1: i32, %arg2: memref<1x16x32xf32, #tpu.memory_space<vmem>>, %arg3: memref<1x16x16xbf16, #tpu.memory_space<vmem>>, %arg4: memref<1x16x16xbf16, #tpu.memory_space<vmem>>, %arg5: memref<32x16xbf16, #tpu.memory_space<vmem>>, %arg6: memref<16x32xbf16, #tpu.memory_space<vmem>>, %arg7: memref<1x32xf32, #tpu.memory_space<vmem>>, %arg8: memref<1x32xf32, #tpu.memory_space<vmem>>, %arg9: memref<1x32xf32, #tpu.memory_space<vmem>>, %arg10: memref<32x128xbf16, #tpu.memory_space<vmem>>, %arg11: memref<1x128xf32, #tpu.memory_space<vmem>>, %arg12: memref<32x128xbf16, #tpu.memory_space<vmem>>, %arg13: memref<1x128xf32, #tpu.memory_space<vmem>>, %arg14: memref<128x32xbf16, #tpu.memory_space<vmem>>, %arg15: memref<1x32xf32, #tpu.memory_space<vmem>>, %arg16: memref<1x16x32xf32, #tpu.memory_space<vmem>>) attributes {dimension_semantics = [#tpu.dimension_semantics<parallel>, #tpu.dimension_semantics<parallel>], iteration_bounds = array<i64: 1, 1>, scalar_prefetch = 0 : i64, scratch_operands = 0 : i64, tpu.core_type = #tpu.core_type<tc>, window_params = [{transform_indices = @transform_0, window_bounds = array<i64: 1, 16, 32>}, {transform_indices = @transform_1, window_bounds = array<i64: 1, 16, 16>}, {transform_indices = @transform_2, window_bounds = array<i64: 1, 16, 16>}, {pipeline_mode = #tpu.pipeline_mode<synchronous>, transform_indices = @transform_3, window_bounds = array<i64: 32, 16>}, {pipeline_mode = #tpu.pipeline_mode<synchronous>, transform_indices = @transform_4, window_bounds = array<i64: 16, 32>}, {pipeline_mode = #tpu.pipeline_mode<synchronous>, transform_indices = @transform_5, window_bounds = array<i64: 1, 32>}, {pipeline_mode = #tpu.pipeline_mode<synchronous>, transform_indices = @transform_6, window_bounds = array<i64: 1, 32>}, {pipeline_mode = #tpu.pipeline_mode<synchronous>, transform_indices = @transform_7, window_bounds = array<i64: 1, 32>}, {pipeline_mode = #tpu.pipeline_mode<synchronous>, transform_indices = @transform_8, window_bounds = array<i64: 32, 128>}, {pipeline_mode = #tpu.pipeline_mode<synchronous>, transform_indices = @transform_9, window_bounds = array<i64: 1, 128>}, {pipeline_mode = #tpu.pipeline_mode<synchronous>, transform_indices = @transform_10, window_bounds = array<i64: 32, 128>}, {pipeline_mode = #tpu.pipeline_mode<synchronous>, transform_indices = @transform_11, window_bounds = array<i64: 1, 128>}, {pipeline_mode = #tpu.pipeline_mode<synchronous>, transform_indices = @transform_12, window_bounds = array<i64: 128, 32>}, {pipeline_mode = #tpu.pipeline_mode<synchronous>, transform_indices = @transform_13, window_bounds = array<i64: 1, 32>}, {transform_indices = @transform_14, window_bounds = array<i64: 1, 16, 32>}]} {
    %c0 = arith.constant 0 : index
    %c0_0 = arith.constant 0 : index
    %c0_1 = arith.constant 0 : index
    %0 = vector.load %arg2[%c0, %c0_0, %c0_1] : memref<1x16x32xf32, #tpu.memory_space<vmem>>, vector<1x16x32xf32>
    %1 = vector.shape_cast %0 : vector<1x16x32xf32> to vector<16x32xf32>
    %c0_2 = arith.constant 0 : index
    %c0_3 = arith.constant 0 : index
    %c0_4 = arith.constant 0 : index
    %2 = vector.load %arg3[%c0_2, %c0_3, %c0_4] : memref<1x16x16xbf16, #tpu.memory_space<vmem>>, vector<1x16x16xbf16>
    %3 = vector.shape_cast %2 : vector<1x16x16xbf16> to vector<16x16xbf16>
    %c0_5 = arith.constant 0 : index
    %c0_6 = arith.constant 0 : index
    %c0_7 = arith.constant 0 : index
    %4 = vector.load %arg4[%c0_5, %c0_6, %c0_7] : memref<1x16x16xbf16, #tpu.memory_space<vmem>>, vector<1x16x16xbf16>
    %5 = vector.shape_cast %4 : vector<1x16x16xbf16> to vector<16x16xbf16>
    %6 = arith.truncf %1 : vector<16x32xf32> to vector<16x32xbf16>
    %c0_8 = arith.constant 0 : index
    %c0_9 = arith.constant 0 : index
    %7 = vector.load %arg5[%c0_8, %c0_9] : memref<32x16xbf16, #tpu.memory_space<vmem>>, vector<32x16xbf16>
    %cst = arith.constant dense<0.000000e+00> : vector<16x16xf32>
    %8 = tpu.matmul %6, %7, %cst {dimension_numbers = #tpu.dot_dimension_numbers<[1], [0], [0], [1], [0, 0, 1, 1], [], []>} : vector<16x32xbf16>, vector<32x16xbf16>, vector<16x16xf32> -> vector<16x16xf32>
    %9 = vector.extract_strided_slice %8 {offsets = [0, 0], sizes = [16, 8], strides = [1, 1]} : vector<16x16xf32> to vector<16x8xf32>
    %10 = arith.truncf %9 : vector<16x8xf32> to vector<16x8xbf16>
    %11 = vector.extract_strided_slice %3 {offsets = [0, 0], sizes = [16, 8], strides = [1, 1]} : vector<16x16xbf16> to vector<16x8xbf16>
    %cst_10 = arith.constant dense<0.000000e+00> : vector<16x16xf32>
    %12 = tpu.matmul %10, %11, %cst_10 {dimension_numbers = #tpu.dot_dimension_numbers<[1], [1], [0], [0], [0, 0, 1, 0], [], []>} : vector<16x8xbf16>, vector<16x8xbf16>, vector<16x16xf32> -> vector<16x16xf32>
    %cst_11 = arith.constant dense<0xFF800000> : vector<16xf32>
    %13 = vector.multi_reduction <maximumf>, %12, %cst_11 [1] : vector<16x16xf32> to vector<16xf32>
    %14 = vector.shape_cast %13 : vector<16xf32> to vector<16x1xf32>
    %15 = vector.broadcast %14 : vector<16x1xf32> to vector<16x16xf32>
    %16 = arith.subf %12, %15 : vector<16x16xf32>
    %17 = math.exp %16 : vector<16x16xf32>
    %cst_12 = arith.constant dense<0.000000e+00> : vector<16xf32>
    %18 = vector.multi_reduction <add>, %17, %cst_12 [1] : vector<16x16xf32> to vector<16xf32>
    %19 = vector.shape_cast %18 : vector<16xf32> to vector<16x1xf32>
    %20 = tpu.reciprocal %19 {approx = true} : vector<16x1xf32> -> vector<16x1xf32>
    %21 = vector.broadcast %20 : vector<16x1xf32> to vector<16x16xf32>
    %22 = arith.mulf %17, %21 : vector<16x16xf32>
    %23 = arith.truncf %22 : vector<16x16xf32> to vector<16x16xbf16>
    %24 = vector.extract_strided_slice %5 {offsets = [0, 0], sizes = [16, 8], strides = [1, 1]} : vector<16x16xbf16> to vector<16x8xbf16>
    %cst_13 = arith.constant dense<0.000000e+00> : vector<16x8xf32>
    %25 = tpu.matmul %23, %24, %cst_13 {dimension_numbers = #tpu.dot_dimension_numbers<[1], [0], [0], [1], [0, 0, 1, 1], [], []>} : vector<16x16xbf16>, vector<16x8xbf16>, vector<16x8xf32> -> vector<16x8xf32>
    %26 = vector.extract_strided_slice %8 {offsets = [0, 8], sizes = [16, 8], strides = [1, 1]} : vector<16x16xf32> to vector<16x8xf32>
    %27 = arith.truncf %26 : vector<16x8xf32> to vector<16x8xbf16>
    %28 = vector.extract_strided_slice %3 {offsets = [0, 8], sizes = [16, 8], strides = [1, 1]} : vector<16x16xbf16> to vector<16x8xbf16>
    %cst_14 = arith.constant dense<0.000000e+00> : vector<16x16xf32>
    %29 = tpu.matmul %27, %28, %cst_14 {dimension_numbers = #tpu.dot_dimension_numbers<[1], [1], [0], [0], [0, 0, 1, 0], [], []>} : vector<16x8xbf16>, vector<16x8xbf16>, vector<16x16xf32> -> vector<16x16xf32>
    %cst_15 = arith.constant dense<0xFF800000> : vector<16xf32>
    %30 = vector.multi_reduction <maximumf>, %29, %cst_15 [1] : vector<16x16xf32> to vector<16xf32>
    %31 = vector.shape_cast %30 : vector<16xf32> to vector<16x1xf32>
    %32 = vector.broadcast %31 : vector<16x1xf32> to vector<16x16xf32>
    %33 = arith.subf %29, %32 : vector<16x16xf32>
    %34 = math.exp %33 : vector<16x16xf32>
    %cst_16 = arith.constant dense<0.000000e+00> : vector<16xf32>
    %35 = vector.multi_reduction <add>, %34, %cst_16 [1] : vector<16x16xf32> to vector<16xf32>
    %36 = vector.shape_cast %35 : vector<16xf32> to vector<16x1xf32>
    %37 = tpu.reciprocal %36 {approx = true} : vector<16x1xf32> -> vector<16x1xf32>
    %38 = vector.broadcast %37 : vector<16x1xf32> to vector<16x16xf32>
    %39 = arith.mulf %34, %38 : vector<16x16xf32>
    %40 = arith.truncf %39 : vector<16x16xf32> to vector<16x16xbf16>
    %41 = vector.extract_strided_slice %5 {offsets = [0, 8], sizes = [16, 8], strides = [1, 1]} : vector<16x16xbf16> to vector<16x8xbf16>
    %cst_17 = arith.constant dense<0.000000e+00> : vector<16x8xf32>
    %42 = tpu.matmul %40, %41, %cst_17 {dimension_numbers = #tpu.dot_dimension_numbers<[1], [0], [0], [1], [0, 0, 1, 1], [], []>} : vector<16x16xbf16>, vector<16x8xbf16>, vector<16x8xf32> -> vector<16x8xf32>
    %43 = tpu.concatenate %25, %42 in 1 : vector<16x8xf32>, vector<16x8xf32> -> vector<16x16xf32>
    %44 = arith.truncf %43 : vector<16x16xf32> to vector<16x16xbf16>
    %c0_18 = arith.constant 0 : index
    %c0_19 = arith.constant 0 : index
    %45 = vector.load %arg6[%c0_18, %c0_19] : memref<16x32xbf16, #tpu.memory_space<vmem>>, vector<16x32xbf16>
    %cst_20 = arith.constant dense<0.000000e+00> : vector<16x32xf32>
    %46 = tpu.matmul %44, %45, %cst_20 {dimension_numbers = #tpu.dot_dimension_numbers<[1], [0], [0], [1], [0, 0, 1, 1], [], []>} : vector<16x16xbf16>, vector<16x32xbf16>, vector<16x32xf32> -> vector<16x32xf32>
    %c0_21 = arith.constant 0 : index
    %c0_22 = arith.constant 0 : index
    %47 = vector.load %arg7[%c0_21, %c0_22] : memref<1x32xf32, #tpu.memory_space<vmem>>, vector<1x32xf32>
    %48 = vector.broadcast %47 : vector<1x32xf32> to vector<16x32xf32>
    %49 = arith.addf %46, %48 : vector<16x32xf32>
    %50 = arith.addf %49, %1 : vector<16x32xf32>
    %c0_23 = arith.constant 0 : index
    %c0_24 = arith.constant 0 : index
    %51 = vector.load %arg8[%c0_23, %c0_24] : memref<1x32xf32, #tpu.memory_space<vmem>>, vector<1x32xf32>
    %c0_25 = arith.constant 0 : index
    %c0_26 = arith.constant 0 : index
    %52 = vector.load %arg9[%c0_25, %c0_26] : memref<1x32xf32, #tpu.memory_space<vmem>>, vector<1x32xf32>
    %cst_27 = arith.constant dense<0.000000e+00> : vector<16xf32>
    %53 = vector.multi_reduction <add>, %50, %cst_27 [1] : vector<16x32xf32> to vector<16xf32>
    %54 = vector.shape_cast %53 : vector<16xf32> to vector<16x1xf32>
    %cst_28 = arith.constant 3.200000e+01 : f32
    %55 = vector.broadcast %cst_28 : f32 to vector<16x1xf32>
    %56 = arith.divf %54, %55 : vector<16x1xf32>
    %57 = vector.broadcast %56 : vector<16x1xf32> to vector<16x32xf32>
    %58 = arith.subf %50, %57 : vector<16x32xf32>
    %59 = arith.mulf %58, %58 : vector<16x32xf32>
    %cst_29 = arith.constant dense<0.000000e+00> : vector<16xf32>
    %60 = vector.multi_reduction <add>, %59, %cst_29 [1] : vector<16x32xf32> to vector<16xf32>
    %61 = vector.shape_cast %60 : vector<16xf32> to vector<16x1xf32>
    %cst_30 = arith.constant 3.200000e+01 : f32
    %62 = vector.broadcast %cst_30 : f32 to vector<16x1xf32>
    %63 = arith.divf %61, %62 : vector<16x1xf32>
    %64 = vector.broadcast %56 : vector<16x1xf32> to vector<16x32xf32>
    %65 = arith.subf %50, %64 : vector<16x32xf32>
    %cst_31 = arith.constant 9.99999974E-6 : f32
    %66 = vector.broadcast %cst_31 : f32 to vector<16x1xf32>
    %67 = arith.addf %63, %66 : vector<16x1xf32>
    %68 = math.rsqrt %67 : vector<16x1xf32>
    %69 = vector.broadcast %68 : vector<16x1xf32> to vector<16x32xf32>
    %70 = arith.mulf %65, %69 : vector<16x32xf32>
    %71 = vector.broadcast %51 : vector<1x32xf32> to vector<16x32xf32>
    %72 = arith.mulf %70, %71 : vector<16x32xf32>
    %73 = vector.broadcast %52 : vector<1x32xf32> to vector<16x32xf32>
    %74 = arith.addf %72, %73 : vector<16x32xf32>
    %c0_32 = arith.constant 0 : index
    %c0_33 = arith.constant 0 : index
    %75 = vector.load %arg10[%c0_32, %c0_33] : memref<32x128xbf16, #tpu.memory_space<vmem>>, vector<32x128xbf16>
    %c0_34 = arith.constant 0 : index
    %c0_35 = arith.constant 0 : index
    %76 = vector.load %arg11[%c0_34, %c0_35] : memref<1x128xf32, #tpu.memory_space<vmem>>, vector<1x128xf32>
    %c0_36 = arith.constant 0 : index
    %c0_37 = arith.constant 0 : index
    %77 = vector.load %arg12[%c0_36, %c0_37] : memref<32x128xbf16, #tpu.memory_space<vmem>>, vector<32x128xbf16>
    %c0_38 = arith.constant 0 : index
    %c0_39 = arith.constant 0 : index
    %78 = vector.load %arg13[%c0_38, %c0_39] : memref<1x128xf32, #tpu.memory_space<vmem>>, vector<1x128xf32>
    %c0_40 = arith.constant 0 : index
    %c0_41 = arith.constant 0 : index
    %79 = vector.load %arg14[%c0_40, %c0_41] : memref<128x32xbf16, #tpu.memory_space<vmem>>, vector<128x32xbf16>
    %c0_42 = arith.constant 0 : index
    %c0_43 = arith.constant 0 : index
    %80 = vector.load %arg15[%c0_42, %c0_43] : memref<1x32xf32, #tpu.memory_space<vmem>>, vector<1x32xf32>
    %81 = arith.truncf %74 : vector<16x32xf32> to vector<16x32xbf16>
    %cst_44 = arith.constant dense<0.000000e+00> : vector<16x128xf32>
    %82 = tpu.matmul %81, %75, %cst_44 {dimension_numbers = #tpu.dot_dimension_numbers<[1], [0], [0], [1], [0, 0, 1, 1], [], []>} : vector<16x32xbf16>, vector<32x128xbf16>, vector<16x128xf32> -> vector<16x128xf32>
    %83 = vector.broadcast %76 : vector<1x128xf32> to vector<16x128xf32>
    %84 = arith.addf %82, %83 : vector<16x128xf32>
    %cst_45 = arith.constant dense<0.000000e+00> : vector<16x128xf32>
    %85 = tpu.matmul %81, %77, %cst_45 {dimension_numbers = #tpu.dot_dimension_numbers<[1], [0], [0], [1], [0, 0, 1, 1], [], []>} : vector<16x32xbf16>, vector<32x128xbf16>, vector<16x128xf32> -> vector<16x128xf32>
    %86 = vector.broadcast %78 : vector<1x128xf32> to vector<16x128xf32>
    %87 = arith.addf %85, %86 : vector<16x128xf32>
    %88 = arith.mulf %87, %87 : vector<16x128xf32>
    %89 = arith.mulf %87, %88 : vector<16x128xf32>
    %cst_46 = arith.constant 4.471500e-02 : f32
    %90 = vector.broadcast %cst_46 : f32 to vector<16x128xf32>
    %91 = arith.mulf %90, %89 : vector<16x128xf32>
    %92 = arith.addf %87, %91 : vector<16x128xf32>
    %cst_47 = arith.constant 0.797884583 : f32
    %93 = vector.broadcast %cst_47 : f32 to vector<16x128xf32>
    %94 = arith.mulf %93, %92 : vector<16x128xf32>
    %95 = math.tanh %94 : vector<16x128xf32>
    %cst_48 = arith.constant 1.000000e+00 : f32
    %96 = vector.broadcast %cst_48 : f32 to vector<16x128xf32>
    %97 = arith.addf %96, %95 : vector<16x128xf32>
    %cst_49 = arith.constant 5.000000e-01 : f32
    %98 = vector.broadcast %cst_49 : f32 to vector<16x128xf32>
    %99 = arith.mulf %98, %97 : vector<16x128xf32>
    %100 = arith.mulf %87, %99 : vector<16x128xf32>
    %101 = arith.mulf %84, %100 : vector<16x128xf32>
    %102 = arith.truncf %101 : vector<16x128xf32> to vector<16x128xbf16>
    %cst_50 = arith.constant dense<0.000000e+00> : vector<16x32xf32>
    %103 = tpu.matmul %102, %79, %cst_50 {dimension_numbers = #tpu.dot_dimension_numbers<[1], [0], [0], [1], [0, 0, 1, 1], [], []>} : vector<16x128xbf16>, vector<128x32xbf16>, vector<16x32xf32> -> vector<16x32xf32>
    %104 = vector.broadcast %80 : vector<1x32xf32> to vector<16x32xf32>
    %105 = arith.addf %103, %104 : vector<16x32xf32>
    %106 = arith.addf %105, %74 : vector<16x32xf32>
    %c0_51 = arith.constant 0 : index
    %c0_52 = arith.constant 0 : index
    %c0_53 = arith.constant 0 : index
    %107 = vector.load %arg16[%c0_51, %c0_52, %c0_53] : memref<1x16x32xf32, #tpu.memory_space<vmem>>, vector<1x16x32xf32>
    %108 = vector.shape_cast %107 : vector<1x16x32xf32> to vector<16x32xf32>
    %109 = vector.shape_cast %106 : vector<16x32xf32> to vector<1x16x32xf32>
    tpu.vector_store %arg16[%c0_51, %c0_52, %c0_53], %109 {strides = array<i32>} : memref<1x16x32xf32, #tpu.memory_space<vmem>>, vector<1x16x32xf32>,
    return
  }
  func.func @transform_0(%arg0: i32, %arg1: i32) -> (i32, i32, i32) {
    %c0_i32 = arith.constant 0 : i32
    %c0_i32_0 = arith.constant 0 : i32
    return %arg0, %arg1, %c0_i32 : i32, i32, i32
  }
  func.func @transform_1(%arg0: i32, %arg1: i32) -> (i32, i32, i32) {
    %c0_i32 = arith.constant 0 : i32
    %c0_i32_0 = arith.constant 0 : i32
    %c0_i32_1 = arith.constant 0 : i32
    return %arg0, %c0_i32, %c0_i32_0 : i32, i32, i32
  }
  func.func @transform_2(%arg0: i32, %arg1: i32) -> (i32, i32, i32) {
    %c0_i32 = arith.constant 0 : i32
    %c0_i32_0 = arith.constant 0 : i32
    %c0_i32_1 = arith.constant 0 : i32
    return %arg0, %c0_i32, %c0_i32_0 : i32, i32, i32
  }
  func.func @transform_3(%arg0: i32, %arg1: i32) -> (i32, i32) {
    %c0_i32 = arith.constant 0 : i32
    %c0_i32_0 = arith.constant 0 : i32
    %c0_i32_1 = arith.constant 0 : i32
    return %c0_i32, %c0_i32_0 : i32, i32
  }
  func.func @transform_4(%arg0: i32, %arg1: i32) -> (i32, i32) {
    %c0_i32 = arith.constant 0 : i32
    %c0_i32_0 = arith.constant 0 : i32
    %c0_i32_1 = arith.constant 0 : i32
    return %c0_i32, %c0_i32_0 : i32, i32
  }
  func.func @transform_5(%arg0: i32, %arg1: i32) -> (i32, i32) {
    %c0_i32 = arith.constant 0 : i32
    %c0_i32_0 = arith.constant 0 : i32
    %c0_i32_1 = arith.constant 0 : i32
    return %c0_i32, %c0_i32_0 : i32, i32
  }
  func.func @transform_6(%arg0: i32, %arg1: i32) -> (i32, i32) {
    %c0_i32 = arith.constant 0 : i32
    %c0_i32_0 = arith.constant 0 : i32
    %c0_i32_1 = arith.constant 0 : i32
    return %c0_i32, %c0_i32_0 : i32, i32
  }
  func.func @transform_7(%arg0: i32, %arg1: i32) -> (i32, i32) {
    %c0_i32 = arith.constant 0 : i32
    %c0_i32_0 = arith.constant 0 : i32
    %c0_i32_1 = arith.constant 0 : i32
    return %c0_i32, %c0_i32_0 : i32, i32
  }
  func.func @transform_8(%arg0: i32, %arg1: i32) -> (i32, i32) {
    %c0_i32 = arith.constant 0 : i32
    %c0_i32_0 = arith.constant 0 : i32
    %c0_i32_1 = arith.constant 0 : i32
    return %c0_i32, %c0_i32_0 : i32, i32
  }
  func.func @transform_9(%arg0: i32, %arg1: i32) -> (i32, i32) {
    %c0_i32 = arith.constant 0 : i32
    %c0_i32_0 = arith.constant 0 : i32
    %c0_i32_1 = arith.constant 0 : i32
    return %c0_i32, %c0_i32_0 : i32, i32
  }
  func.func @transform_10(%arg0: i32, %arg1: i32) -> (i32, i32) {
    %c0_i32 = arith.constant 0 : i32
    %c0_i32_0 = arith.constant 0 : i32
    %c0_i32_1 = arith.constant 0 : i32
    return %c0_i32, %c0_i32_0 : i32, i32
  }
  func.func @transform_11(%arg0: i32, %arg1: i32) -> (i32, i32) {
    %c0_i32 = arith.constant 0 : i32
    %c0_i32_0 = arith.constant 0 : i32
    %c0_i32_1 = arith.constant 0 : i32
    return %c0_i32, %c0_i32_0 : i32, i32
  }
  func.func @transform_12(%arg0: i32, %arg1: i32) -> (i32, i32) {
    %c0_i32 = arith.constant 0 : i32
    %c0_i32_0 = arith.constant 0 : i32
    %c0_i32_1 = arith.constant 0 : i32
    return %c0_i32, %c0_i32_0 : i32, i32
  }
  func.func @transform_13(%arg0: i32, %arg1: i32) -> (i32, i32) {
    %c0_i32 = arith.constant 0 : i32
    %c0_i32_0 = arith.constant 0 : i32
    %c0_i32_1 = arith.constant 0 : i32
    return %c0_i32, %c0_i32_0 : i32, i32
  }
  func.func @transform_14(%arg0: i32, %arg1: i32) -> (i32, i32, i32) {
    %c0_i32 = arith.constant 0 : i32
    %c0_i32_0 = arith.constant 0 : i32
    return %arg0, %arg1, %c0_i32 : i32, i32, i32
  }
}

module attributes {stable_mosaic.version = 11 : i64} {
  func.func @kernel(%arg0: i32, %arg1: i32, %arg2: memref<1x8x32xf32, #tpu.memory_space<vmem>>, %arg3: memref<1x8x16xbf16, #tpu.memory_space<vmem>>, %arg4: memref<1x8x16xbf16, #tpu.memory_space<vmem>>, %arg5: memref<32x16xbf16, #tpu.memory_space<vmem>>, %arg6: memref<16x32xbf16, #tpu.memory_space<vmem>>, %arg7: memref<1x32xf32, #tpu.memory_space<vmem>>, %arg8: memref<1x32xf32, #tpu.memory_space<vmem>>, %arg9: memref<1x32xf32, #tpu.memory_space<vmem>>, %arg10: memref<32x128xbf16, #tpu.memory_space<vmem>>, %arg11: memref<1x128xf32, #tpu.memory_space<vmem>>, %arg12: memref<32x128xbf16, #tpu.memory_space<vmem>>, %arg13: memref<1x128xf32, #tpu.memory_space<vmem>>, %arg14: memref<128x32xbf16, #tpu.memory_space<vmem>>, %arg15: memref<1x32xf32, #tpu.memory_space<vmem>>, %arg16: memref<1x8x32xf32, #tpu.memory_space<vmem>>) attributes {dimension_semantics = [#tpu.dimension_semantics<parallel>, #tpu.dimension_semantics<parallel>], iteration_bounds = array<i64: 2, 1>, scalar_prefetch = 0 : i64, scratch_operands = 0 : i64, tpu.core_type = #tpu.core_type<tc>, window_params = [{transform_indices = @transform_0, window_bounds = array<i64: 1, 8, 32>}, {transform_indices = @transform_1, window_bounds = array<i64: 1, 8, 16>}, {transform_indices = @transform_2, window_bounds = array<i64: 1, 8, 16>}, {pipeline_mode = #tpu.pipeline_mode<synchronous>, transform_indices = @transform_3, window_bounds = array<i64: 32, 16>}, {pipeline_mode = #tpu.pipeline_mode<synchronous>, transform_indices = @transform_4, window_bounds = array<i64: 16, 32>}, {pipeline_mode = #tpu.pipeline_mode<synchronous>, transform_indices = @transform_5, window_bounds = array<i64: 1, 32>}, {pipeline_mode = #tpu.pipeline_mode<synchronous>, transform_indices = @transform_6, window_bounds = array<i64: 1, 32>}, {pipeline_mode = #tpu.pipeline_mode<synchronous>, transform_indices = @transform_7, window_bounds = array<i64: 1, 32>}, {pipeline_mode = #tpu.pipeline_mode<synchronous>, transform_indices = @transform_8, window_bounds = array<i64: 32, 128>}, {pipeline_mode = #tpu.pipeline_mode<synchronous>, transform_indices = @transform_9, window_bounds = array<i64: 1, 128>}, {pipeline_mode = #tpu.pipeline_mode<synchronous>, transform_indices = @transform_10, window_bounds = array<i64: 32, 128>}, {pipeline_mode = #tpu.pipeline_mode<synchronous>, transform_indices = @transform_11, window_bounds = array<i64: 1, 128>}, {pipeline_mode = #tpu.pipeline_mode<synchronous>, transform_indices = @transform_12, window_bounds = array<i64: 128, 32>}, {pipeline_mode = #tpu.pipeline_mode<synchronous>, transform_indices = @transform_13, window_bounds = array<i64: 1, 32>}, {transform_indices = @transform_14, window_bounds = array<i64: 1, 8, 32>}]} {
    %c0 = arith.constant 0 : index
    %c0_0 = arith.constant 0 : index
    %c0_1 = arith.constant 0 : index
    %0 = vector.load %arg2[%c0, %c0_0, %c0_1] : memref<1x8x32xf32, #tpu.memory_space<vmem>>, vector<1x8x32xf32>
    %1 = vector.shape_cast %0 : vector<1x8x32xf32> to vector<8x32xf32>
    %c0_2 = arith.constant 0 : index
    %c0_3 = arith.constant 0 : index
    %c0_4 = arith.constant 0 : index
    %2 = vector.load %arg3[%c0_2, %c0_3, %c0_4] : memref<1x8x16xbf16, #tpu.memory_space<vmem>>, vector<1x8x16xbf16>
    %3 = vector.shape_cast %2 : vector<1x8x16xbf16> to vector<8x16xbf16>
    %c0_5 = arith.constant 0 : index
    %c0_6 = arith.constant 0 : index
    %c0_7 = arith.constant 0 : index
    %4 = vector.load %arg4[%c0_5, %c0_6, %c0_7] : memref<1x8x16xbf16, #tpu.memory_space<vmem>>, vector<1x8x16xbf16>
    %5 = vector.shape_cast %4 : vector<1x8x16xbf16> to vector<8x16xbf16>
    %6 = arith.truncf %1 : vector<8x32xf32> to vector<8x32xbf16>
    %c0_8 = arith.constant 0 : index
    %c0_9 = arith.constant 0 : index
    %7 = vector.load %arg5[%c0_8, %c0_9] : memref<32x16xbf16, #tpu.memory_space<vmem>>, vector<32x16xbf16>
    %cst = arith.constant dense<0.000000e+00> : vector<8x16xf32>
    %8 = tpu.matmul %6, %7, %cst {dimension_numbers = #tpu.dot_dimension_numbers<[1], [0], [0], [1], [0, 0, 1, 1], [], []>} : vector<8x32xbf16>, vector<32x16xbf16>, vector<8x16xf32> -> vector<8x16xf32>
    %9 = vector.extract_strided_slice %8 {offsets = [0, 0], sizes = [8, 8], strides = [1, 1]} : vector<8x16xf32> to vector<8x8xf32>
    %10 = arith.truncf %9 : vector<8x8xf32> to vector<8x8xbf16>
    %11 = vector.extract_strided_slice %3 {offsets = [0, 0], sizes = [8, 8], strides = [1, 1]} : vector<8x16xbf16> to vector<8x8xbf16>
    %cst_10 = arith.constant dense<0.000000e+00> : vector<8x8xf32>
    %12 = tpu.matmul %10, %11, %cst_10 {dimension_numbers = #tpu.dot_dimension_numbers<[1], [1], [0], [0], [0, 0, 1, 0], [], []>} : vector<8x8xbf16>, vector<8x8xbf16>, vector<8x8xf32> -> vector<8x8xf32>
    %cst_11 = arith.constant dense<0xFF800000> : vector<8xf32>
    %13 = vector.multi_reduction <maximumf>, %12, %cst_11 [1] : vector<8x8xf32> to vector<8xf32>
    %14 = vector.shape_cast %13 : vector<8xf32> to vector<8x1xf32>
    %15 = vector.broadcast %14 : vector<8x1xf32> to vector<8x8xf32>
    %16 = arith.subf %12, %15 : vector<8x8xf32>
    %17 = math.exp %16 : vector<8x8xf32>
    %cst_12 = arith.constant dense<0.000000e+00> : vector<8xf32>
    %18 = vector.multi_reduction <add>, %17, %cst_12 [1] : vector<8x8xf32> to vector<8xf32>
    %19 = vector.shape_cast %18 : vector<8xf32> to vector<8x1xf32>
    %20 = tpu.reciprocal %19 {approx = true} : vector<8x1xf32> -> vector<8x1xf32>
    %21 = vector.broadcast %20 : vector<8x1xf32> to vector<8x8xf32>
    %22 = arith.mulf %17, %21 : vector<8x8xf32>
    %23 = arith.truncf %22 : vector<8x8xf32> to vector<8x8xbf16>
    %24 = vector.extract_strided_slice %5 {offsets = [0, 0], sizes = [8, 8], strides = [1, 1]} : vector<8x16xbf16> to vector<8x8xbf16>
    %cst_13 = arith.constant dense<0.000000e+00> : vector<8x8xf32>
    %25 = tpu.matmul %23, %24, %cst_13 {dimension_numbers = #tpu.dot_dimension_numbers<[1], [0], [0], [1], [0, 0, 1, 1], [], []>} : vector<8x8xbf16>, vector<8x8xbf16>, vector<8x8xf32> -> vector<8x8xf32>
    %26 = vector.extract_strided_slice %8 {offsets = [0, 8], sizes = [8, 8], strides = [1, 1]} : vector<8x16xf32> to vector<8x8xf32>
    %27 = arith.truncf %26 : vector<8x8xf32> to vector<8x8xbf16>
    %28 = vector.extract_strided_slice %3 {offsets = [0, 8], sizes = [8, 8], strides = [1, 1]} : vector<8x16xbf16> to vector<8x8xbf16>
    %cst_14 = arith.constant dense<0.000000e+00> : vector<8x8xf32>
    %29 = tpu.matmul %27, %28, %cst_14 {dimension_numbers = #tpu.dot_dimension_numbers<[1], [1], [0], [0], [0, 0, 1, 0], [], []>} : vector<8x8xbf16>, vector<8x8xbf16>, vector<8x8xf32> -> vector<8x8xf32>
    %cst_15 = arith.constant dense<0xFF800000> : vector<8xf32>
    %30 = vector.multi_reduction <maximumf>, %29, %cst_15 [1] : vector<8x8xf32> to vector<8xf32>
    %31 = vector.shape_cast %30 : vector<8xf32> to vector<8x1xf32>
    %32 = vector.broadcast %31 : vector<8x1xf32> to vector<8x8xf32>
    %33 = arith.subf %29, %32 : vector<8x8xf32>
    %34 = math.exp %33 : vector<8x8xf32>
    %cst_16 = arith.constant dense<0.000000e+00> : vector<8xf32>
    %35 = vector.multi_reduction <add>, %34, %cst_16 [1] : vector<8x8xf32> to vector<8xf32>
    %36 = vector.shape_cast %35 : vector<8xf32> to vector<8x1xf32>
    %37 = tpu.reciprocal %36 {approx = true} : vector<8x1xf32> -> vector<8x1xf32>
    %38 = vector.broadcast %37 : vector<8x1xf32> to vector<8x8xf32>
    %39 = arith.mulf %34, %38 : vector<8x8xf32>
    %40 = arith.truncf %39 : vector<8x8xf32> to vector<8x8xbf16>
    %41 = vector.extract_strided_slice %5 {offsets = [0, 8], sizes = [8, 8], strides = [1, 1]} : vector<8x16xbf16> to vector<8x8xbf16>
    %cst_17 = arith.constant dense<0.000000e+00> : vector<8x8xf32>
    %42 = tpu.matmul %40, %41, %cst_17 {dimension_numbers = #tpu.dot_dimension_numbers<[1], [0], [0], [1], [0, 0, 1, 1], [], []>} : vector<8x8xbf16>, vector<8x8xbf16>, vector<8x8xf32> -> vector<8x8xf32>
    %43 = tpu.concatenate %25, %42 in 1 : vector<8x8xf32>, vector<8x8xf32> -> vector<8x16xf32>
    %44 = arith.truncf %43 : vector<8x16xf32> to vector<8x16xbf16>
    %c0_18 = arith.constant 0 : index
    %c0_19 = arith.constant 0 : index
    %45 = vector.load %arg6[%c0_18, %c0_19] : memref<16x32xbf16, #tpu.memory_space<vmem>>, vector<16x32xbf16>
    %cst_20 = arith.constant dense<0.000000e+00> : vector<8x32xf32>
    %46 = tpu.matmul %44, %45, %cst_20 {dimension_numbers = #tpu.dot_dimension_numbers<[1], [0], [0], [1], [0, 0, 1, 1], [], []>} : vector<8x16xbf16>, vector<16x32xbf16>, vector<8x32xf32> -> vector<8x32xf32>
    %c0_21 = arith.constant 0 : index
    %c0_22 = arith.constant 0 : index
    %47 = vector.load %arg7[%c0_21, %c0_22] : memref<1x32xf32, #tpu.memory_space<vmem>>, vector<1x32xf32>
    %48 = vector.broadcast %47 : vector<1x32xf32> to vector<8x32xf32>
    %49 = arith.addf %46, %48 : vector<8x32xf32>
    %50 = arith.addf %49, %1 : vector<8x32xf32>
    %c0_23 = arith.constant 0 : index
    %c0_24 = arith.constant 0 : index
    %51 = vector.load %arg8[%c0_23, %c0_24] : memref<1x32xf32, #tpu.memory_space<vmem>>, vector<1x32xf32>
    %c0_25 = arith.constant 0 : index
    %c0_26 = arith.constant 0 : index
    %52 = vector.load %arg9[%c0_25, %c0_26] : memref<1x32xf32, #tpu.memory_space<vmem>>, vector<1x32xf32>
    %cst_27 = arith.constant dense<0.000000e+00> : vector<8xf32>
    %53 = vector.multi_reduction <add>, %50, %cst_27 [1] : vector<8x32xf32> to vector<8xf32>
    %54 = vector.shape_cast %53 : vector<8xf32> to vector<8x1xf32>
    %cst_28 = arith.constant 3.200000e+01 : f32
    %55 = vector.broadcast %cst_28 : f32 to vector<8x1xf32>
    %56 = arith.divf %54, %55 : vector<8x1xf32>
    %57 = vector.broadcast %56 : vector<8x1xf32> to vector<8x32xf32>
    %58 = arith.subf %50, %57 : vector<8x32xf32>
    %59 = arith.mulf %58, %58 : vector<8x32xf32>
    %cst_29 = arith.constant dense<0.000000e+00> : vector<8xf32>
    %60 = vector.multi_reduction <add>, %59, %cst_29 [1] : vector<8x32xf32> to vector<8xf32>
    %61 = vector.shape_cast %60 : vector<8xf32> to vector<8x1xf32>
    %cst_30 = arith.constant 3.200000e+01 : f32
    %62 = vector.broadcast %cst_30 : f32 to vector<8x1xf32>
    %63 = arith.divf %61, %62 : vector<8x1xf32>
    %64 = vector.broadcast %56 : vector<8x1xf32> to vector<8x32xf32>
    %65 = arith.subf %50, %64 : vector<8x32xf32>
    %cst_31 = arith.constant 9.99999974E-6 : f32
    %66 = vector.broadcast %cst_31 : f32 to vector<8x1xf32>
    %67 = arith.addf %63, %66 : vector<8x1xf32>
    %68 = math.rsqrt %67 : vector<8x1xf32>
    %69 = vector.broadcast %68 : vector<8x1xf32> to vector<8x32xf32>
    %70 = arith.mulf %65, %69 : vector<8x32xf32>
    %71 = vector.broadcast %51 : vector<1x32xf32> to vector<8x32xf32>
    %72 = arith.mulf %70, %71 : vector<8x32xf32>
    %73 = vector.broadcast %52 : vector<1x32xf32> to vector<8x32xf32>
    %74 = arith.addf %72, %73 : vector<8x32xf32>
    %c0_32 = arith.constant 0 : index
    %c0_33 = arith.constant 0 : index
    %75 = vector.load %arg10[%c0_32, %c0_33] : memref<32x128xbf16, #tpu.memory_space<vmem>>, vector<32x128xbf16>
    %c0_34 = arith.constant 0 : index
    %c0_35 = arith.constant 0 : index
    %76 = vector.load %arg11[%c0_34, %c0_35] : memref<1x128xf32, #tpu.memory_space<vmem>>, vector<1x128xf32>
    %c0_36 = arith.constant 0 : index
    %c0_37 = arith.constant 0 : index
    %77 = vector.load %arg12[%c0_36, %c0_37] : memref<32x128xbf16, #tpu.memory_space<vmem>>, vector<32x128xbf16>
    %c0_38 = arith.constant 0 : index
    %c0_39 = arith.constant 0 : index
    %78 = vector.load %arg13[%c0_38, %c0_39] : memref<1x128xf32, #tpu.memory_space<vmem>>, vector<1x128xf32>
    %c0_40 = arith.constant 0 : index
    %c0_41 = arith.constant 0 : index
    %79 = vector.load %arg14[%c0_40, %c0_41] : memref<128x32xbf16, #tpu.memory_space<vmem>>, vector<128x32xbf16>
    %c0_42 = arith.constant 0 : index
    %c0_43 = arith.constant 0 : index
    %80 = vector.load %arg15[%c0_42, %c0_43] : memref<1x32xf32, #tpu.memory_space<vmem>>, vector<1x32xf32>
    %81 = arith.truncf %74 : vector<8x32xf32> to vector<8x32xbf16>
    %cst_44 = arith.constant dense<0.000000e+00> : vector<8x128xf32>
    %82 = tpu.matmul %81, %75, %cst_44 {dimension_numbers = #tpu.dot_dimension_numbers<[1], [0], [0], [1], [0, 0, 1, 1], [], []>} : vector<8x32xbf16>, vector<32x128xbf16>, vector<8x128xf32> -> vector<8x128xf32>
    %83 = vector.broadcast %76 : vector<1x128xf32> to vector<8x128xf32>
    %84 = arith.addf %82, %83 : vector<8x128xf32>
    %cst_45 = arith.constant dense<0.000000e+00> : vector<8x128xf32>
    %85 = tpu.matmul %81, %77, %cst_45 {dimension_numbers = #tpu.dot_dimension_numbers<[1], [0], [0], [1], [0, 0, 1, 1], [], []>} : vector<8x32xbf16>, vector<32x128xbf16>, vector<8x128xf32> -> vector<8x128xf32>
    %86 = vector.broadcast %78 : vector<1x128xf32> to vector<8x128xf32>
    %87 = arith.addf %85, %86 : vector<8x128xf32>
    %88 = arith.mulf %87, %87 : vector<8x128xf32>
    %89 = arith.mulf %87, %88 : vector<8x128xf32>
    %cst_46 = arith.constant 4.471500e-02 : f32
    %90 = vector.broadcast %cst_46 : f32 to vector<8x128xf32>
    %91 = arith.mulf %90, %89 : vector<8x128xf32>
    %92 = arith.addf %87, %91 : vector<8x128xf32>
    %cst_47 = arith.constant 0.797884583 : f32
    %93 = vector.broadcast %cst_47 : f32 to vector<8x128xf32>
    %94 = arith.mulf %93, %92 : vector<8x128xf32>
    %95 = math.tanh %94 : vector<8x128xf32>
    %cst_48 = arith.constant 1.000000e+00 : f32
    %96 = vector.broadcast %cst_48 : f32 to vector<8x128xf32>
    %97 = arith.addf %96, %95 : vector<8x128xf32>
    %cst_49 = arith.constant 5.000000e-01 : f32
    %98 = vector.broadcast %cst_49 : f32 to vector<8x128xf32>
    %99 = arith.mulf %98, %97 : vector<8x128xf32>
    %100 = arith.mulf %87, %99 : vector<8x128xf32>
    %101 = arith.mulf %84, %100 : vector<8x128xf32>
    %102 = arith.truncf %101 : vector<8x128xf32> to vector<8x128xbf16>
    %cst_50 = arith.constant dense<0.000000e+00> : vector<8x32xf32>
    %103 = tpu.matmul %102, %79, %cst_50 {dimension_numbers = #tpu.dot_dimension_numbers<[1], [0], [0], [1], [0, 0, 1, 1], [], []>} : vector<8x128xbf16>, vector<128x32xbf16>, vector<8x32xf32> -> vector<8x32xf32>
    %104 = vector.broadcast %80 : vector<1x32xf32> to vector<8x32xf32>
    %105 = arith.addf %103, %104 : vector<8x32xf32>
    %106 = arith.addf %105, %74 : vector<8x32xf32>
    %c0_51 = arith.constant 0 : index
    %c0_52 = arith.constant 0 : index
    %c0_53 = arith.constant 0 : index
    %107 = vector.load %arg16[%c0_51, %c0_52, %c0_53] : memref<1x8x32xf32, #tpu.memory_space<vmem>>, vector<1x8x32xf32>
    %108 = vector.shape_cast %107 : vector<1x8x32xf32> to vector<8x32xf32>
    %109 = vector.shape_cast %106 : vector<8x32xf32> to vector<1x8x32xf32>
    tpu.vector_store %arg16[%c0_51, %c0_52, %c0_53], %109 {strides = array<i32>} : memref<1x8x32xf32, #tpu.memory_space<vmem>>, vector<1x8x32xf32>,
    return
  }
  func.func @transform_0(%arg0: i32, %arg1: i32) -> (i32, i32, i32) {
    %c0_i32 = arith.constant 0 : i32
    %c0_i32_0 = arith.constant 0 : i32
    return %arg0, %arg1, %c0_i32 : i32, i32, i32
  }
  func.func @transform_1(%arg0: i32, %arg1: i32) -> (i32, i32, i32) {
    %c0_i32 = arith.constant 0 : i32
    %c0_i32_0 = arith.constant 0 : i32
    %c0_i32_1 = arith.constant 0 : i32
    return %arg0, %c0_i32, %c0_i32_0 : i32, i32, i32
  }
  func.func @transform_2(%arg0: i32, %arg1: i32) -> (i32, i32, i32) {
    %c0_i32 = arith.constant 0 : i32
    %c0_i32_0 = arith.constant 0 : i32
    %c0_i32_1 = arith.constant 0 : i32
    return %arg0, %c0_i32, %c0_i32_0 : i32, i32, i32
  }
  func.func @transform_3(%arg0: i32, %arg1: i32) -> (i32, i32) {
    %c0_i32 = arith.constant 0 : i32
    %c0_i32_0 = arith.constant 0 : i32
    %c0_i32_1 = arith.constant 0 : i32
    return %c0_i32, %c0_i32_0 : i32, i32
  }
  func.func @transform_4(%arg0: i32, %arg1: i32) -> (i32, i32) {
    %c0_i32 = arith.constant 0 : i32
    %c0_i32_0 = arith.constant 0 : i32
    %c0_i32_1 = arith.constant 0 : i32
    return %c0_i32, %c0_i32_0 : i32, i32
  }
  func.func @transform_5(%arg0: i32, %arg1: i32) -> (i32, i32) {
    %c0_i32 = arith.constant 0 : i32
    %c0_i32_0 = arith.constant 0 : i32
    %c0_i32_1 = arith.constant 0 : i32
    return %c0_i32, %c0_i32_0 : i32, i32
  }
  func.func @transform_6(%arg0: i32, %arg1: i32) -> (i32, i32) {
    %c0_i32 = arith.constant 0 : i32
    %c0_i32_0 = arith.constant 0 : i32
    %c0_i32_1 = arith.constant 0 : i32
    return %c0_i32, %c0_i32_0 : i32, i32
  }
  func.func @transform_7(%arg0: i32, %arg1: i32) -> (i32, i32) {
    %c0_i32 = arith.constant 0 : i32
    %c0_i32_0 = arith.constant 0 : i32
    %c0_i32_1 = arith.constant 0 : i32
    return %c0_i32, %c0_i32_0 : i32, i32
  }
  func.func @transform_8(%arg0: i32, %arg1: i32) -> (i32, i32) {
    %c0_i32 = arith.constant 0 : i32
    %c0_i32_0 = arith.constant 0 : i32
    %c0_i32_1 = arith.constant 0 : i32
    return %c0_i32, %c0_i32_0 : i32, i32
  }
  func.func @transform_9(%arg0: i32, %arg1: i32) -> (i32, i32) {
    %c0_i32 = arith.constant 0 : i32
    %c0_i32_0 = arith.constant 0 : i32
    %c0_i32_1 = arith.constant 0 : i32
    return %c0_i32, %c0_i32_0 : i32, i32
  }
  func.func @transform_10(%arg0: i32, %arg1: i32) -> (i32, i32) {
    %c0_i32 = arith.constant 0 : i32
    %c0_i32_0 = arith.constant 0 : i32
    %c0_i32_1 = arith.constant 0 : i32
    return %c0_i32, %c0_i32_0 : i32, i32
  }
  func.func @transform_11(%arg0: i32, %arg1: i32) -> (i32, i32) {
    %c0_i32 = arith.constant 0 : i32
    %c0_i32_0 = arith.constant 0 : i32
    %c0_i32_1 = arith.constant 0 : i32
    return %c0_i32, %c0_i32_0 : i32, i32
  }
  func.func @transform_12(%arg0: i32, %arg1: i32) -> (i32, i32) {
    %c0_i32 = arith.constant 0 : i32
    %c0_i32_0 = arith.constant 0 : i32
    %c0_i32_1 = arith.constant 0 : i32
    return %c0_i32, %c0_i32_0 : i32, i32
  }
  func.func @transform_13(%arg0: i32, %arg1: i32) -> (i32, i32) {
    %c0_i32 = arith.constant 0 : i32
    %c0_i32_0 = arith.constant 0 : i32
    %c0_i32_1 = arith.constant 0 : i32
    return %c0_i32, %c0_i32_0 : i32, i32
  }
  func.func @transform_14(%arg0: i32, %arg1: i32) -> (i32, i32, i32) {
    %c0_i32 = arith.constant 0 : i32
    %c0_i32_0 = arith.constant 0 : i32
    return %arg0, %arg1, %c0_i32 : i32, i32, i32
  }
}

module attributes {stable_mosaic.version = 11 : i64} {
  func.func @kernel(%arg0: i32, %arg1: i32, %arg2: memref<1x16x32xf32, #tpu.memory_space<vmem>>, %arg3: memref<1x16x16xbf16, #tpu.memory_space<vmem>>, %arg4: memref<1x16x16xbf16, #tpu.memory_space<vmem>>, %arg5: memref<32x16xbf16, #tpu.memory_space<vmem>>, %arg6: memref<16x32xbf16, #tpu.memory_space<vmem>>, %arg7: memref<1x32xf32, #tpu.memory_space<vmem>>, %arg8: memref<1x32xf32, #tpu.memory_space<vmem>>, %arg9: memref<1x32xf32, #tpu.memory_space<vmem>>, %arg10: memref<32x128xbf16, #tpu.memory_space<vmem>>, %arg11: memref<1x128xf32, #tpu.memory_space<vmem>>, %arg12: memref<32x128xbf16, #tpu.memory_space<vmem>>, %arg13: memref<1x128xf32, #tpu.memory_space<vmem>>, %arg14: memref<128x32xbf16, #tpu.memory_space<vmem>>, %arg15: memref<1x32xf32, #tpu.memory_space<vmem>>, %arg16: memref<1x16x32xf32, #tpu.memory_space<vmem>>) attributes {dimension_semantics = [#tpu.dimension_semantics<parallel>, #tpu.dimension_semantics<parallel>], iteration_bounds = array<i64: 1, 1>, scalar_prefetch = 0 : i64, scratch_operands = 0 : i64, tpu.core_type = #tpu.core_type<tc>, window_params = [{transform_indices = @transform_0, window_bounds = array<i64: 1, 16, 32>}, {transform_indices = @transform_1, window_bounds = array<i64: 1, 16, 16>}, {transform_indices = @transform_2, window_bounds = array<i64: 1, 16, 16>}, {pipeline_mode = #tpu.pipeline_mode<synchronous>, transform_indices = @transform_3, window_bounds = array<i64: 32, 16>}, {pipeline_mode = #tpu.pipeline_mode<synchronous>, transform_indices = @transform_4, window_bounds = array<i64: 16, 32>}, {pipeline_mode = #tpu.pipeline_mode<synchronous>, transform_indices = @transform_5, window_bounds = array<i64: 1, 32>}, {pipeline_mode = #tpu.pipeline_mode<synchronous>, transform_indices = @transform_6, window_bounds = array<i64: 1, 32>}, {pipeline_mode = #tpu.pipeline_mode<synchronous>, transform_indices = @transform_7, window_bounds = array<i64: 1, 32>}, {pipeline_mode = #tpu.pipeline_mode<synchronous>, transform_indices = @transform_8, window_bounds = array<i64: 32, 128>}, {pipeline_mode = #tpu.pipeline_mode<synchronous>, transform_indices = @transform_9, window_bounds = array<i64: 1, 128>}, {pipeline_mode = #tpu.pipeline_mode<synchronous>, transform_indices = @transform_10, window_bounds = array<i64: 32, 128>}, {pipeline_mode = #tpu.pipeline_mode<synchronous>, transform_indices = @transform_11, window_bounds = array<i64: 1, 128>}, {pipeline_mode = #tpu.pipeline_mode<synchronous>, transform_indices = @transform_12, window_bounds = array<i64: 128, 32>}, {pipeline_mode = #tpu.pipeline_mode<synchronous>, transform_indices = @transform_13, window_bounds = array<i64: 1, 32>}, {transform_indices = @transform_14, window_bounds = array<i64: 1, 16, 32>}]} {
    %c0 = arith.constant 0 : index
    %c0_0 = arith.constant 0 : index
    %c0_1 = arith.constant 0 : index
    %0 = vector.load %arg2[%c0, %c0_0, %c0_1] : memref<1x16x32xf32, #tpu.memory_space<vmem>>, vector<1x16x32xf32>
    %1 = vector.shape_cast %0 : vector<1x16x32xf32> to vector<16x32xf32>
    %c0_2 = arith.constant 0 : index
    %c0_3 = arith.constant 0 : index
    %c0_4 = arith.constant 0 : index
    %2 = vector.load %arg3[%c0_2, %c0_3, %c0_4] : memref<1x16x16xbf16, #tpu.memory_space<vmem>>, vector<1x16x16xbf16>
    %3 = vector.shape_cast %2 : vector<1x16x16xbf16> to vector<16x16xbf16>
    %c0_5 = arith.constant 0 : index
    %c0_6 = arith.constant 0 : index
    %c0_7 = arith.constant 0 : index
    %4 = vector.load %arg4[%c0_5, %c0_6, %c0_7] : memref<1x16x16xbf16, #tpu.memory_space<vmem>>, vector<1x16x16xbf16>
    %5 = vector.shape_cast %4 : vector<1x16x16xbf16> to vector<16x16xbf16>
    %6 = arith.truncf %1 : vector<16x32xf32> to vector<16x32xbf16>
    %c0_8 = arith.constant 0 : index
    %c0_9 = arith.constant 0 : index
    %7 = vector.load %arg5[%c0_8, %c0_9] : memref<32x16xbf16, #tpu.memory_space<vmem>>, vector<32x16xbf16>
    %cst = arith.constant dense<0.000000e+00> : vector<16x16xf32>
    %8 = tpu.matmul %6, %7, %cst {dimension_numbers = #tpu.dot_dimension_numbers<[1], [0], [0], [1], [0, 0, 1, 1], [], []>} : vector<16x32xbf16>, vector<32x16xbf16>, vector<16x16xf32> -> vector<16x16xf32>
    %9 = vector.extract_strided_slice %8 {offsets = [0, 0], sizes = [16, 8], strides = [1, 1]} : vector<16x16xf32> to vector<16x8xf32>
    %10 = arith.truncf %9 : vector<16x8xf32> to vector<16x8xbf16>
    %11 = vector.extract_strided_slice %3 {offsets = [0, 0], sizes = [16, 8], strides = [1, 1]} : vector<16x16xbf16> to vector<16x8xbf16>
    %cst_10 = arith.constant dense<0.000000e+00> : vector<16x16xf32>
    %12 = tpu.matmul %10, %11, %cst_10 {dimension_numbers = #tpu.dot_dimension_numbers<[1], [1], [0], [0], [0, 0, 1, 0], [], []>} : vector<16x8xbf16>, vector<16x8xbf16>, vector<16x16xf32> -> vector<16x16xf32>
    %cst_11 = arith.constant dense<0xFF800000> : vector<16xf32>
    %13 = vector.multi_reduction <maximumf>, %12, %cst_11 [1] : vector<16x16xf32> to vector<16xf32>
    %14 = vector.shape_cast %13 : vector<16xf32> to vector<16x1xf32>
    %15 = vector.broadcast %14 : vector<16x1xf32> to vector<16x16xf32>
    %16 = arith.subf %12, %15 : vector<16x16xf32>
    %17 = math.exp %16 : vector<16x16xf32>
    %cst_12 = arith.constant dense<0.000000e+00> : vector<16xf32>
    %18 = vector.multi_reduction <add>, %17, %cst_12 [1] : vector<16x16xf32> to vector<16xf32>
    %19 = vector.shape_cast %18 : vector<16xf32> to vector<16x1xf32>
    %20 = tpu.reciprocal %19 {approx = true} : vector<16x1xf32> -> vector<16x1xf32>
    %21 = vector.broadcast %20 : vector<16x1xf32> to vector<16x16xf32>
    %22 = arith.mulf %17, %21 : vector<16x16xf32>
    %23 = arith.truncf %22 : vector<16x16xf32> to vector<16x16xbf16>
    %24 = vector.extract_strided_slice %5 {offsets = [0, 0], sizes = [16, 8], strides = [1, 1]} : vector<16x16xbf16> to vector<16x8xbf16>
    %cst_13 = arith.constant dense<0.000000e+00> : vector<16x8xf32>
    %25 = tpu.matmul %23, %24, %cst_13 {dimension_numbers = #tpu.dot_dimension_numbers<[1], [0], [0], [1], [0, 0, 1, 1], [], []>} : vector<16x16xbf16>, vector<16x8xbf16>, vector<16x8xf32> -> vector<16x8xf32>
    %26 = vector.extract_strided_slice %8 {offsets = [0, 8], sizes = [16, 8], strides = [1, 1]} : vector<16x16xf32> to vector<16x8xf32>
    %27 = arith.truncf %26 : vector<16x8xf32> to vector<16x8xbf16>
    %28 = vector.extract_strided_slice %3 {offsets = [0, 8], sizes = [16, 8], strides = [1, 1]} : vector<16x16xbf16> to vector<16x8xbf16>
    %cst_14 = arith.constant dense<0.000000e+00> : vector<16x16xf32>
    %29 = tpu.matmul %27, %28, %cst_14 {dimension_numbers = #tpu.dot_dimension_numbers<[1], [1], [0], [0], [0, 0, 1, 0], [], []>} : vector<16x8xbf16>, vector<16x8xbf16>, vector<16x16xf32> -> vector<16x16xf32>
    %cst_15 = arith.constant dense<0xFF800000> : vector<16xf32>
    %30 = vector.multi_reduction <maximumf>, %29, %cst_15 [1] : vector<16x16xf32> to vector<16xf32>
    %31 = vector.shape_cast %30 : vector<16xf32> to vector<16x1xf32>
    %32 = vector.broadcast %31 : vector<16x1xf32> to vector<16x16xf32>
    %33 = arith.subf %29, %32 : vector<16x16xf32>
    %34 = math.exp %33 : vector<16x16xf32>
    %cst_16 = arith.constant dense<0.000000e+00> : vector<16xf32>
    %35 = vector.multi_reduction <add>, %34, %cst_16 [1] : vector<16x16xf32> to vector<16xf32>
    %36 = vector.shape_cast %35 : vector<16xf32> to vector<16x1xf32>
    %37 = tpu.reciprocal %36 {approx = true} : vector<16x1xf32> -> vector<16x1xf32>
    %38 = vector.broadcast %37 : vector<16x1xf32> to vector<16x16xf32>
    %39 = arith.mulf %34, %38 : vector<16x16xf32>
    %40 = arith.truncf %39 : vector<16x16xf32> to vector<16x16xbf16>
    %41 = vector.extract_strided_slice %5 {offsets = [0, 8], sizes = [16, 8], strides = [1, 1]} : vector<16x16xbf16> to vector<16x8xbf16>
    %cst_17 = arith.constant dense<0.000000e+00> : vector<16x8xf32>
    %42 = tpu.matmul %40, %41, %cst_17 {dimension_numbers = #tpu.dot_dimension_numbers<[1], [0], [0], [1], [0, 0, 1, 1], [], []>} : vector<16x16xbf16>, vector<16x8xbf16>, vector<16x8xf32> -> vector<16x8xf32>
    %43 = tpu.concatenate %25, %42 in 1 : vector<16x8xf32>, vector<16x8xf32> -> vector<16x16xf32>
    %44 = arith.truncf %43 : vector<16x16xf32> to vector<16x16xbf16>
    %c0_18 = arith.constant 0 : index
    %c0_19 = arith.constant 0 : index
    %45 = vector.load %arg6[%c0_18, %c0_19] : memref<16x32xbf16, #tpu.memory_space<vmem>>, vector<16x32xbf16>
    %cst_20 = arith.constant dense<0.000000e+00> : vector<16x32xf32>
    %46 = tpu.matmul %44, %45, %cst_20 {dimension_numbers = #tpu.dot_dimension_numbers<[1], [0], [0], [1], [0, 0, 1, 1], [], []>} : vector<16x16xbf16>, vector<16x32xbf16>, vector<16x32xf32> -> vector<16x32xf32>
    %c0_21 = arith.constant 0 : index
    %c0_22 = arith.constant 0 : index
    %47 = vector.load %arg7[%c0_21, %c0_22] : memref<1x32xf32, #tpu.memory_space<vmem>>, vector<1x32xf32>
    %48 = vector.broadcast %47 : vector<1x32xf32> to vector<16x32xf32>
    %49 = arith.addf %46, %48 : vector<16x32xf32>
    %50 = arith.addf %49, %1 : vector<16x32xf32>
    %c0_23 = arith.constant 0 : index
    %c0_24 = arith.constant 0 : index
    %51 = vector.load %arg8[%c0_23, %c0_24] : memref<1x32xf32, #tpu.memory_space<vmem>>, vector<1x32xf32>
    %c0_25 = arith.constant 0 : index
    %c0_26 = arith.constant 0 : index
    %52 = vector.load %arg9[%c0_25, %c0_26] : memref<1x32xf32, #tpu.memory_space<vmem>>, vector<1x32xf32>
    %cst_27 = arith.constant dense<0.000000e+00> : vector<16xf32>
    %53 = vector.multi_reduction <add>, %50, %cst_27 [1] : vector<16x32xf32> to vector<16xf32>
    %54 = vector.shape_cast %53 : vector<16xf32> to vector<16x1xf32>
    %cst_28 = arith.constant 3.200000e+01 : f32
    %55 = vector.broadcast %cst_28 : f32 to vector<16x1xf32>
    %56 = arith.divf %54, %55 : vector<16x1xf32>
    %57 = vector.broadcast %56 : vector<16x1xf32> to vector<16x32xf32>
    %58 = arith.subf %50, %57 : vector<16x32xf32>
    %59 = arith.mulf %58, %58 : vector<16x32xf32>
    %cst_29 = arith.constant dense<0.000000e+00> : vector<16xf32>
    %60 = vector.multi_reduction <add>, %59, %cst_29 [1] : vector<16x32xf32> to vector<16xf32>
    %61 = vector.shape_cast %60 : vector<16xf32> to vector<16x1xf32>
    %cst_30 = arith.constant 3.200000e+01 : f32
    %62 = vector.broadcast %cst_30 : f32 to vector<16x1xf32>
    %63 = arith.divf %61, %62 : vector<16x1xf32>
    %64 = vector.broadcast %56 : vector<16x1xf32> to vector<16x32xf32>
    %65 = arith.subf %50, %64 : vector<16x32xf32>
    %cst_31 = arith.constant 9.99999974E-6 : f32
    %66 = vector.broadcast %cst_31 : f32 to vector<16x1xf32>
    %67 = arith.addf %63, %66 : vector<16x1xf32>
    %68 = math.rsqrt %67 : vector<16x1xf32>
    %69 = vector.broadcast %68 : vector<16x1xf32> to vector<16x32xf32>
    %70 = arith.mulf %65, %69 : vector<16x32xf32>
    %71 = vector.broadcast %51 : vector<1x32xf32> to vector<16x32xf32>
    %72 = arith.mulf %70, %71 : vector<16x32xf32>
    %73 = vector.broadcast %52 : vector<1x32xf32> to vector<16x32xf32>
    %74 = arith.addf %72, %73 : vector<16x32xf32>
    %c0_32 = arith.constant 0 : index
    %c0_33 = arith.constant 0 : index
    %75 = vector.load %arg10[%c0_32, %c0_33] : memref<32x128xbf16, #tpu.memory_space<vmem>>, vector<32x128xbf16>
    %c0_34 = arith.constant 0 : index
    %c0_35 = arith.constant 0 : index
    %76 = vector.load %arg11[%c0_34, %c0_35] : memref<1x128xf32, #tpu.memory_space<vmem>>, vector<1x128xf32>
    %c0_36 = arith.constant 0 : index
    %c0_37 = arith.constant 0 : index
    %77 = vector.load %arg12[%c0_36, %c0_37] : memref<32x128xbf16, #tpu.memory_space<vmem>>, vector<32x128xbf16>
    %c0_38 = arith.constant 0 : index
    %c0_39 = arith.constant 0 : index
    %78 = vector.load %arg13[%c0_38, %c0_39] : memref<1x128xf32, #tpu.memory_space<vmem>>, vector<1x128xf32>
    %c0_40 = arith.constant 0 : index
    %c0_41 = arith.constant 0 : index
    %79 = vector.load %arg14[%c0_40, %c0_41] : memref<128x32xbf16, #tpu.memory_space<vmem>>, vector<128x32xbf16>
    %c0_42 = arith.constant 0 : index
    %c0_43 = arith.constant 0 : index
    %80 = vector.load %arg15[%c0_42, %c0_43] : memref<1x32xf32, #tpu.memory_space<vmem>>, vector<1x32xf32>
    %81 = arith.truncf %74 : vector<16x32xf32> to vector<16x32xbf16>
    %cst_44 = arith.constant dense<0.000000e+00> : vector<16x128xf32>
    %82 = tpu.matmul %81, %75, %cst_44 {dimension_numbers = #tpu.dot_dimension_numbers<[1], [0], [0], [1], [0, 0, 1, 1], [], []>} : vector<16x32xbf16>, vector<32x128xbf16>, vector<16x128xf32> -> vector<16x128xf32>
    %83 = vector.broadcast %76 : vector<1x128xf32> to vector<16x128xf32>
    %84 = arith.addf %82, %83 : vector<16x128xf32>
    %cst_45 = arith.constant dense<0.000000e+00> : vector<16x128xf32>
    %85 = tpu.matmul %81, %77, %cst_45 {dimension_numbers = #tpu.dot_dimension_numbers<[1], [0], [0], [1], [0, 0, 1, 1], [], []>} : vector<16x32xbf16>, vector<32x128xbf16>, vector<16x128xf32> -> vector<16x128xf32>
    %86 = vector.broadcast %78 : vector<1x128xf32> to vector<16x128xf32>
    %87 = arith.addf %85, %86 : vector<16x128xf32>
    %88 = arith.mulf %87, %87 : vector<16x128xf32>
    %89 = arith.mulf %87, %88 : vector<16x128xf32>
    %cst_46 = arith.constant 4.471500e-02 : f32
    %90 = vector.broadcast %cst_46 : f32 to vector<16x128xf32>
    %91 = arith.mulf %90, %89 : vector<16x128xf32>
    %92 = arith.addf %87, %91 : vector<16x128xf32>
    %cst_47 = arith.constant 0.797884583 : f32
    %93 = vector.broadcast %cst_47 : f32 to vector<16x128xf32>
    %94 = arith.mulf %93, %92 : vector<16x128xf32>
    %95 = math.tanh %94 : vector<16x128xf32>
    %cst_48 = arith.constant 1.000000e+00 : f32
    %96 = vector.broadcast %cst_48 : f32 to vector<16x128xf32>
    %97 = arith.addf %96, %95 : vector<16x128xf32>
    %cst_49 = arith.constant 5.000000e-01 : f32
    %98 = vector.broadcast %cst_49 : f32 to vector<16x128xf32>
    %99 = arith.mulf %98, %97 : vector<16x128xf32>
    %100 = arith.mulf %87, %99 : vector<16x128xf32>
    %101 = arith.mulf %84, %100 : vector<16x128xf32>
    %102 = arith.truncf %101 : vector<16x128xf32> to vector<16x128xbf16>
    %cst_50 = arith.constant dense<0.000000e+00> : vector<16x32xf32>
    %103 = tpu.matmul %102, %79, %cst_50 {dimension_numbers = #tpu.dot_dimension_numbers<[1], [0], [0], [1], [0, 0, 1, 1], [], []>} : vector<16x128xbf16>, vector<128x32xbf16>, vector<16x32xf32> -> vector<16x32xf32>
    %104 = vector.broadcast %80 : vector<1x32xf32> to vector<16x32xf32>
    %105 = arith.addf %103, %104 : vector<16x32xf32>
    %106 = arith.addf %105, %74 : vector<16x32xf32>
    %c0_51 = arith.constant 0 : index
    %c0_52 = arith.constant 0 : index
    %c0_53 = arith.constant 0 : index
    %107 = vector.load %arg16[%c0_51, %c0_52, %c0_53] : memref<1x16x32xf32, #tpu.memory_space<vmem>>, vector<1x16x32xf32>
    %108 = vector.shape_cast %107 : vector<1x16x32xf32> to vector<16x32xf32>
    %109 = vector.shape_cast %106 : vector<16x32xf32> to vector<1x16x32xf32>
    tpu.vector_store %arg16[%c0_51, %c0_52, %c0_53], %109 {strides = array<i32>} : memref<1x16x32xf32, #tpu.memory_space<vmem>>, vector<1x16x32xf32>,
    return
  }
  func.func @transform_0(%arg0: i32, %arg1: i32) -> (i32, i32, i32) {
    %c0_i32 = arith.constant 0 : i32
    %c0_i32_0 = arith.constant 0 : i32
    return %arg0, %arg1, %c0_i32 : i32, i32, i32
  }
  func.func @transform_1(%arg0: i32, %arg1: i32) -> (i32, i32, i32) {
    %c0_i32 = arith.constant 0 : i32
    %c0_i32_0 = arith.constant 0 : i32
    %c0_i32_1 = arith.constant 0 : i32
    return %arg0, %c0_i32, %c0_i32_0 : i32, i32, i32
  }
  func.func @transform_2(%arg0: i32, %arg1: i32) -> (i32, i32, i32) {
    %c0_i32 = arith.constant 0 : i32
    %c0_i32_0 = arith.constant 0 : i32
    %c0_i32_1 = arith.constant 0 : i32
    return %arg0, %c0_i32, %c0_i32_0 : i32, i32, i32
  }
  func.func @transform_3(%arg0: i32, %arg1: i32) -> (i32, i32) {
    %c0_i32 = arith.constant 0 : i32
    %c0_i32_0 = arith.constant 0 : i32
    %c0_i32_1 = arith.constant 0 : i32
    return %c0_i32, %c0_i32_0 : i32, i32
  }
  func.func @transform_4(%arg0: i32, %arg1: i32) -> (i32, i32) {
    %c0_i32 = arith.constant 0 : i32
    %c0_i32_0 = arith.constant 0 : i32
    %c0_i32_1 = arith.constant 0 : i32
    return %c0_i32, %c0_i32_0 : i32, i32
  }
  func.func @transform_5(%arg0: i32, %arg1: i32) -> (i32, i32) {
    %c0_i32 = arith.constant 0 : i32
    %c0_i32_0 = arith.constant 0 : i32
    %c0_i32_1 = arith.constant 0 : i32
    return %c0_i32, %c0_i32_0 : i32, i32
  }
  func.func @transform_6(%arg0: i32, %arg1: i32) -> (i32, i32) {
    %c0_i32 = arith.constant 0 : i32
    %c0_i32_0 = arith.constant 0 : i32
    %c0_i32_1 = arith.constant 0 : i32
    return %c0_i32, %c0_i32_0 : i32, i32
  }
  func.func @transform_7(%arg0: i32, %arg1: i32) -> (i32, i32) {
    %c0_i32 = arith.constant 0 : i32
    %c0_i32_0 = arith.constant 0 : i32
    %c0_i32_1 = arith.constant 0 : i32
    return %c0_i32, %c0_i32_0 : i32, i32
  }
  func.func @transform_8(%arg0: i32, %arg1: i32) -> (i32, i32) {
    %c0_i32 = arith.constant 0 : i32
    %c0_i32_0 = arith.constant 0 : i32
    %c0_i32_1 = arith.constant 0 : i32
    return %c0_i32, %c0_i32_0 : i32, i32
  }
  func.func @transform_9(%arg0: i32, %arg1: i32) -> (i32, i32) {
    %c0_i32 = arith.constant 0 : i32
    %c0_i32_0 = arith.constant 0 : i32
    %c0_i32_1 = arith.constant 0 : i32
    return %c0_i32, %c0_i32_0 : i32, i32
  }
  func.func @transform_10(%arg0: i32, %arg1: i32) -> (i32, i32) {
    %c0_i32 = arith.constant 0 : i32
    %c0_i32_0 = arith.constant 0 : i32
    %c0_i32_1 = arith.constant 0 : i32
    return %c0_i32, %c0_i32_0 : i32, i32
  }
  func.func @transform_11(%arg0: i32, %arg1: i32) -> (i32, i32) {
    %c0_i32 = arith.constant 0 : i32
    %c0_i32_0 = arith.constant 0 : i32
    %c0_i32_1 = arith.constant 0 : i32
    return %c0_i32, %c0_i32_0 : i32, i32
  }
  func.func @transform_12(%arg0: i32, %arg1: i32) -> (i32, i32) {
    %c0_i32 = arith.constant 0 : i32
    %c0_i32_0 = arith.constant 0 : i32
    %c0_i32_1 = arith.constant 0 : i32
    return %c0_i32, %c0_i32_0 : i32, i32
  }
  func.func @transform_13(%arg0: i32, %arg1: i32) -> (i32, i32) {
    %c0_i32 = arith.constant 0 : i32
    %c0_i32_0 = arith.constant 0 : i32
    %c0_i32_1 = arith.constant 0 : i32
    return %c0_i32, %c0_i32_0 : i32, i32
  }
  func.func @transform_14(%arg0: i32, %arg1: i32) -> (i32, i32, i32) {
    %c0_i32 = arith.constant 0 : i32
    %c0_i32_0 = arith.constant 0 : i32
    return %arg0, %arg1, %c0_i32 : i32, i32, i32
  }
}

</mosaic_0001>

<llo_original>
// kernel: tpu_custom_call.1
$region0: #{tpu_custom_call.1}
  #allocation0 [shape = 'u32[]', space=smem, size = 0x4, offset = 0x4, fixed_abs, tag = 'smem constant byte address 0x4 - core index']
  #allocation1 [shape = 'u32[72,128]{1,0:T(1,128)}', space=vmem, size = 0x9000, scoped, tag = 'internal scratch']
  %s0 = inlined_call_operand.hbm [shape: f32[8,128], index: 0, kind: input, shape index: {}]
  %s1 = inlined_call_operand.hbm [shape: f32[8,128], index: 1, kind: output, shape index: {}]
  %s2 = sld [smem:[#allocation0]]
  $region18: #{tpu_custom_call.1} parent=0
    _
  %s4 = ssub.s32 1, %s2
  %s5 = scalar_select 0, %s4, %s2
  $region1: #{tpu_custom_call.1} parent=0
    #allocation2 [shape = 'u8[4096]{0}', space=vmem, size = 0x1000, scoped, tag = 'input window, operand 0, single buffered']
    #allocation3 [shape = 's32[1]{0}', space=sflag, size = 0x4, scoped, tag = 'scoped memory for tpu_custom_call.1']
    #allocation4 [shape = 's32[1]{0}', space=sflag, size = 0x4, scoped, tag = 'scoped memory for tpu_custom_call.1']
    #allocation5 [shape = 'u8[4096]{0}', space=vmem, size = 0x1000, scoped, tag = 'output window, operand 0, single buffered']
    %6 = vsyncpa [#allocation3], 0
    %7 = vsyncpa [#allocation4], 0
    // Predicated region
    $region2: #{tpu_custom_call.1} parent=1 // pred_check
      _
    $region3: #{tpu_custom_call.1} parent=1 // pred_check_branch
      %9 = sbr.rel (0) target = $region5
    $region4: #{tpu_custom_call.1} parent=1 // pred_region
      %11 = vsyncadd [#allocation3], 0
      %s13 = sshll.u32 %s0, 4
      %s14 = int_to_ptr.hbm [resolvable:$true] %s13
      %s15 = sshll.u32 [#allocation2], 4
      %s16 = int_to_ptr.vmem [resolvable:$true] %s15
      %18 = dma.hbm_to_vmem [thread:$0]  %s14, 128, %s16, [#allocation3]
    $region5: #{tpu_custom_call.1} parent=1 // pred_fallthru
      _
    // Predicated region
    $region6: #{tpu_custom_call.1} parent=1 // pred_check
      _
    $region7: #{tpu_custom_call.1} parent=1 // pred_check_branch
      %20 = sbr.rel (0) target = $region9
    $region8: #{tpu_custom_call.1} parent=1 // pred_region
      %22 = dma.done [#allocation3], 128
    $region9: #{tpu_custom_call.1} parent=1 // pred_fallthru
      _
    %v23 = vld [vmem:[#allocation2] sm:$0xff]
    %24 = vst [vmem:[#allocation5] sm:$0xff] %v23
    // Predicated region
    $region10: #{tpu_custom_call.1} parent=1 // pred_check
      _
    $region11: #{tpu_custom_call.1} parent=1 // pred_check_branch
      %26 = sbr.rel (0) target = $region13
    $region12: #{tpu_custom_call.1} parent=1 // pred_region
      %28 = vsyncadd [#allocation4], 0
      %s30 = sshll.u32 [#allocation5], 4
      %s31 = int_to_ptr.vmem [resolvable:$true] %s30
      %s32 = sshll.u32 %s1, 4
      %s33 = int_to_ptr.hbm [resolvable:$true] %s32
      %35 = dma.vmem_to_hbm [thread:$0]  %s31, 128, %s33, [#allocation4]
    $region13: #{tpu_custom_call.1} parent=1 // pred_fallthru
      _
    // Predicated region
    $region14: #{tpu_custom_call.1} parent=1 // pred_check
      _
    $region15: #{tpu_custom_call.1} parent=1 // pred_check_branch
      %37 = sbr.rel (0) target = $region17
    $region16: #{tpu_custom_call.1} parent=1 // pred_region
      %39 = dma.done [#allocation4], 128
    $region17: #{tpu_custom_call.1} parent=1 // pred_fallthru
      _
    %40 = vsyncpa [#allocation3], 1
    %41 = vsyncpa [#allocation4], 1

// kernel: contabulizer_forward.10
$region0: #{contabulizer_forward.10}
  #allocation0 [shape = 'u32[]', space=smem, size = 0x4, offset = 0x4, fixed_abs, tag = 'smem constant byte address 0x4 - core index']
  #allocation1 [shape = 'u32[72,128]{1,0:T(1,128)}', space=vmem, size = 0x9000, scoped, tag = 'internal scratch']
  %s0 = inlined_call_operand.vmem [shape: f32[16,32], index: 0, kind: input, shape index: {}]
  %s1 = inlined_call_operand.vmem [shape: f32[1,32], index: 1, kind: input, shape index: {}]
  %s2 = inlined_call_operand.vmem [shape: f32[1,32], index: 2, kind: input, shape index: {}]
  %s3 = inlined_call_operand.vmem [shape: bf16[32,16], index: 3, kind: input, shape index: {}]
  %s4 = inlined_call_operand.vmem [shape: bf16[32,16], index: 4, kind: input, shape index: {}]
  %s5 = inlined_call_operand.vmem [shape: f32[16,32], index: 5, kind: output, shape index: {0}]
  %s6 = inlined_call_operand.vmem [shape: bf16[16,16], index: 6, kind: output, shape index: {1}]
  %s7 = inlined_call_operand.vmem [shape: bf16[16,16], index: 7, kind: output, shape index: {2}]
  %8 = xla_tuple %s5, %s6, %s7
  %s9 = sld [smem:[#allocation0]]
  $region46: #{contabulizer_forward.10} parent=0
    _
  %s11 = ssub.s32 1, %s9
  %s12 = scalar_select 0, %s11, %s9
  // Predicated region
  $region2: #{contabulizer_forward.10} parent=0 // pred_check
    _
  $region3: #{contabulizer_forward.10} parent=0 // pred_check_branch
    %14 = sbr.rel (0) target = $region5
  $region4: #{contabulizer_forward.10} parent=0 // pred_region
    _
  $region5: #{contabulizer_forward.10} parent=0 // pred_fallthru
    _
  // Predicated region
  $region6: #{contabulizer_forward.10} parent=0 // pred_check
    _
  $region7: #{contabulizer_forward.10} parent=0 // pred_check_branch
    %16 = sbr.rel (0) target = $region9
  $region8: #{contabulizer_forward.10} parent=0 // pred_region
    _
  $region9: #{contabulizer_forward.10} parent=0 // pred_fallthru
    _
  // Predicated region
  $region10: #{contabulizer_forward.10} parent=0 // pred_check
    _
  $region11: #{contabulizer_forward.10} parent=0 // pred_check_branch
    %18 = sbr.rel (0) target = $region13
  $region12: #{contabulizer_forward.10} parent=0 // pred_region
    _
  $region13: #{contabulizer_forward.10} parent=0 // pred_fallthru
    _
  // Predicated region
  $region14: #{contabulizer_forward.10} parent=0 // pred_check
    _
  $region15: #{contabulizer_forward.10} parent=0 // pred_check_branch
    %20 = sbr.rel (0) target = $region17
  $region16: #{contabulizer_forward.10} parent=0 // pred_region
    _
  $region17: #{contabulizer_forward.10} parent=0 // pred_fallthru
    _
  // Predicated region
  $region18: #{contabulizer_forward.10} parent=0 // pred_check
    _
  $region19: #{contabulizer_forward.10} parent=0 // pred_check_branch
    %22 = sbr.rel (0) target = $region21
  $region20: #{contabulizer_forward.10} parent=0 // pred_region
    _
  $region21: #{contabulizer_forward.10} parent=0 // pred_fallthru
    _
  %v24 = vld [vmem:[%s0] sm:$0xff]
  %v25 = vld [vmem:[%s0 + $0x8] sm:$0xff]
  %v26 = vld [vmem:[%s1] sm:$0x1]
  %v27 = vld [vmem:[%s2] sm:$0x1]
  %vm28 = vcmask 261120
  %v29 = vsel %vm28, %v24, 0.0
  %30 = vadd.xlane.f32.xlu0 %v29
  %v31 = vpop.xlane.xlu0 %30
  %v32 = vsel %vm28, %v25, 0.0
  %33 = vadd.xlane.f32.xlu0 %v32
  %v34 = vpop.xlane.xlu0 %33
  %v35 = vrcp.pop 32.0
  %v36 = vmul.f32 32.0, %v35
  %v37 = vsub.f32 1.0, %v36
  %v38 = vmul.f32 %v35, %v37
  %v39 = vadd.f32 %v35, %v38
  %vm40 = vweird.f32 %v35
  %v41 = vsel %vm40, %v35, %v39
  %v42 = vmul.f32 %v31, %v41
  %v43 = vmul.f32 %v34, %v41
  %v44 = vsub.f32 %v24, %v42
  %v45 = vsub.f32 %v25, %v43
  %v46 = vmul.f32 %v44, %v44
  %v47 = vmul.f32 %v45, %v45
  %v48 = vsel %vm28, %v46, 0.0
  %49 = vadd.xlane.f32.xlu0 %v48
  %v50 = vpop.xlane.xlu0 %49
  %v51 = vsel %vm28, %v47, 0.0
  %52 = vadd.xlane.f32.xlu0 %v51
  %v53 = vpop.xlane.xlu0 %52
  %v54 = vmul.f32 %v50, %v41
  %v55 = vmul.f32 %v53, %v41
  %v56 = vadd.f32 %v54, 1e-05
  %v57 = vadd.f32 %v55, 1e-05
  %v58 = vrsqrt.pop %v56
  %v59 = vmul.f32 %v58, %v56
  %v60 = vmul.f32 %v59, %v58
  %v61 = vmul.f32 0.5, %v60
  %v62 = vsub.f32 1.5, %v61
  %v63 = vmul.f32 %v58, %v62
  %vm64 = vweird.f32 %v56
  %vm65 = vweird.f32 %v58
  %vm66 = vmor %vm64, %vm65
  %v67 = vsel %vm66, %v58, %v63
  %v68 = vrsqrt.pop %v57
  %v69 = vmul.f32 %v68, %v57
  %v70 = vmul.f32 %v69, %v68
  %v71 = vmul.f32 0.5, %v70
  %v72 = vsub.f32 1.5, %v71
  %v73 = vmul.f32 %v68, %v72
  %vm74 = vweird.f32 %v57
  %vm75 = vweird.f32 %v68
  %vm76 = vmor %vm74, %vm75
  %v77 = vsel %vm76, %v68, %v73
  %v78 = vmul.f32 %v44, %v67
  %v79 = vmul.f32 %v45, %v77
  %v81 = vperm.slane %v26, 0
  %v83 = vmul.f32 %v78, %v81
  %v84 = vmul.f32 %v79, %v81
  %v86 = vperm.slane %v27, 0
  %v88 = vadd.f32 %v83, %v86
  %v89 = vadd.f32 %v84, %v86
  %90 = vst.msk [vmem:[%s5] sm:$0xff] %vm28, %v88
  %91 = vst.msk [vmem:[%s5 + $0x8] sm:$0xff] %vm28, %v89
  %v92 = vpack.c.bf16 %v89, %v88
  %v93 = vld [vmem:[%s3] sm:$0xf]
  %v94 = vld [vmem:[%s3 + $0x4] sm:$0xf]
  %v95 = vld [vmem:[%s3 + $0x8] sm:$0xf]
  %v96 = vld [vmem:[%s3 + $0xc] sm:$0xf]
  %v101 = vunpack.c.l.b16 %v93
  %v102 = vunpack.c.l.b16 %v94
  %v103 = vunpack.c.l.b16 %v95
  %v104 = vunpack.c.l.b16 %v96
  %v105 = vpack.c.b16 %v102, %v101
  %v106 = vpack.c.b16 %v104, %v103
  %v110 = vsel %vm28, %v92, 0
  %112 = vmatpush.bf16.msra.mxu0 0
  %113 = vmatpush.bf16.msra.mxu0 0
  %114 = vmatpush.bf16.msra.mxu0 0
  %115 = vmatpush.bf16.msra.mxu0 0
  %116 = vmatpush.bf16.msra.mxu0 0
  %117 = vmatpush.bf16.msra.mxu0 0
  %118 = vmatpush.bf16.msra.mxu0 %v106
  %119 = vmatpush.bf16.msra.mxu0 %v105
  %120 = vmatmul.bf16.gmra.mxu0 %v110
  %v121 = vpop.f32.mrf.mxu0
  %v122 = vadd.f32 0.0, %v121
  %v123 = vpop.f32.mrf.mxu0
  %v124 = vadd.f32 0.0, %v123
  %125 = vdwg.mxu0
  %v126 = vpack.c.bf16 %v122, %v122
  %v127 = vpack.c.bf16 %v124, %v124
  %vm128 = vcmask 125952
  %129 = vst.msk [vmem:[%s6] sm:$0xf] %vm128, %v126
  %130 = vst.msk [vmem:[%s6 + $0x4] sm:$0xf] %vm128, %v127
  %v131 = vld [vmem:[%s4] sm:$0xf]
  %v132 = vld [vmem:[%s4 + $0x4] sm:$0xf]
  %v133 = vld [vmem:[%s4 + $0x8] sm:$0xf]
  %v134 = vld [vmem:[%s4 + $0xc] sm:$0xf]
  %v139 = vunpack.c.l.b16 %v131
  %v140 = vunpack.c.l.b16 %v132
  %v141 = vunpack.c.l.b16 %v133
  %v142 = vunpack.c.l.b16 %v134
  %v143 = vpack.c.b16 %v140, %v139
  %v144 = vpack.c.b16 %v142, %v141
  %147 = vmatpush.bf16.msra.mxu0 0
  %148 = vmatpush.bf16.msra.mxu0 0
  %149 = vmatpush.bf16.msra.mxu0 0
  %150 = vmatpush.bf16.msra.mxu0 0
  %151 = vmatpush.bf16.msra.mxu0 0
  %152 = vmatpush.bf16.msra.mxu0 0
  %153 = vmatpush.bf16.msra.mxu0 %v144
  %154 = vmatpush.bf16.msra.mxu0 %v143
  %155 = vmatmul.bf16.gmra.mxu0 %v110
  %v156 = vpop.f32.mrf.mxu0
  %v157 = vadd.f32 0.0, %v156
  %v158 = vpop.f32.mrf.mxu0
  %v159 = vadd.f32 0.0, %v158
  %160 = vdwg.mxu0
  %v161 = vpack.c.bf16 %v157, %v157
  %v162 = vpack.c.bf16 %v159, %v159
  %163 = vst.msk [vmem:[%s7] sm:$0xf] %vm128, %v161
  %164 = vst.msk [vmem:[%s7 + $0x4] sm:$0xf] %vm128, %v162
  // Predicated region
  $region22: #{contabulizer_forward.10} parent=0 // pred_check
    _
  $region23: #{contabulizer_forward.10} parent=0 // pred_check_branch
    %166 = sbr.rel (0) target = $region25
  $region24: #{contabulizer_forward.10} parent=0 // pred_region
    _
  $region25: #{contabulizer_forward.10} parent=0 // pred_fallthru
    _
  // Predicated region
  $region26: #{contabulizer_forward.10} parent=0 // pred_check
    _
  $region27: #{contabulizer_forward.10} parent=0 // pred_check_branch
    %168 = sbr.rel (0) target = $region29
  $region28: #{contabulizer_forward.10} parent=0 // pred_region
    _
  $region29: #{contabulizer_forward.10} parent=0 // pred_fallthru
    _
  // Predicated region
  $region30: #{contabulizer_forward.10} parent=0 // pred_check
    _
  $region31: #{contabulizer_forward.10} parent=0 // pred_check_branch
    %170 = sbr.rel (0) target = $region33
  $region32: #{contabulizer_forward.10} parent=0 // pred_region
    _
  $region33: #{contabulizer_forward.10} parent=0 // pred_fallthru
    _
  // Predicated region
  $region34: #{contabulizer_forward.10} parent=0 // pred_check
    _
  $region35: #{contabulizer_forward.10} parent=0 // pred_check_branch
    %172 = sbr.rel (0) target = $region37
  $region36: #{contabulizer_forward.10} parent=0 // pred_region
    _
  $region37: #{contabulizer_forward.10} parent=0 // pred_fallthru
    _
  // Predicated region
  $region38: #{contabulizer_forward.10} parent=0 // pred_check
    _
  $region39: #{contabulizer_forward.10} parent=0 // pred_check_branch
    %174 = sbr.rel (0) target = $region41
  $region40: #{contabulizer_forward.10} parent=0 // pred_region
    _
  $region41: #{contabulizer_forward.10} parent=0 // pred_fallthru
    _
  // Predicated region
  $region42: #{contabulizer_forward.10} parent=0 // pred_check
    _
  $region43: #{contabulizer_forward.10} parent=0 // pred_check_branch
    %176 = sbr.rel (0) target = $region45
  $region44: #{contabulizer_forward.10} parent=0 // pred_region
    _
  $region45: #{contabulizer_forward.10} parent=0 // pred_fallthru
    _

// kernel: contabulizer_forward.9
$region0: #{contabulizer_forward.9}
  #allocation0 [shape = 'u32[]', space=smem, size = 0x4, offset = 0x4, fixed_abs, tag = 'smem constant byte address 0x4 - core index']
  #allocation1 [shape = 'u32[72,128]{1,0:T(1,128)}', space=vmem, size = 0x9000, scoped, tag = 'internal scratch']
  %s0 = inlined_call_operand.vmem [shape: f32[16,16], index: 0, kind: input, shape index: {}]
  %s1 = inlined_call_operand.vmem [shape: f32[1,16], index: 1, kind: input, shape index: {}]
  %s2 = inlined_call_operand.vmem [shape: f32[1,16], index: 2, kind: input, shape index: {}]
  %s3 = inlined_call_operand.vmem [shape: bf16[16,64], index: 3, kind: input, shape index: {}]
  %s4 = inlined_call_operand.vmem [shape: f32[1,64], index: 4, kind: input, shape index: {}]
  %s5 = inlined_call_operand.vmem [shape: bf16[16,64], index: 5, kind: input, shape index: {}]
  %s6 = inlined_call_operand.vmem [shape: f32[1,64], index: 6, kind: input, shape index: {}]
  %s7 = inlined_call_operand.vmem [shape: bf16[64,32], index: 7, kind: input, shape index: {}]
  %s8 = inlined_call_operand.vmem [shape: f32[1,32], index: 8, kind: input, shape index: {}]
  %s9 = inlined_call_operand.vmem [shape: f32[16,32], index: 9, kind: output, shape index: {}]
  %s10 = sld [smem:[#allocation0]]
  $region46: #{contabulizer_forward.9} parent=0
    _
  %s12 = ssub.s32 1, %s10
  %s13 = scalar_select 0, %s12, %s10
  // Predicated region
  $region2: #{contabulizer_forward.9} parent=0 // pred_check
    _
  $region3: #{contabulizer_forward.9} parent=0 // pred_check_branch
    %15 = sbr.rel (0) target = $region5
  $region4: #{contabulizer_forward.9} parent=0 // pred_region
    _
  $region5: #{contabulizer_forward.9} parent=0 // pred_fallthru
    _
  // Predicated region
  $region6: #{contabulizer_forward.9} parent=0 // pred_check
    _
  $region7: #{contabulizer_forward.9} parent=0 // pred_check_branch
    %17 = sbr.rel (0) target = $region9
  $region8: #{contabulizer_forward.9} parent=0 // pred_region
    _
  $region9: #{contabulizer_forward.9} parent=0 // pred_fallthru
    _
  // Predicated region
  $region10: #{contabulizer_forward.9} parent=0 // pred_check
    _
  $region11: #{contabulizer_forward.9} parent=0 // pred_check_branch
    %19 = sbr.rel (0) target = $region13
  $region12: #{contabulizer_forward.9} parent=0 // pred_region
    _
  $region13: #{contabulizer_forward.9} parent=0 // pred_fallthru
    _
  // Predicated region
  $region14: #{contabulizer_forward.9} parent=0 // pred_check
    _
  $region15: #{contabulizer_forward.9} parent=0 // pred_check_branch
    %21 = sbr.rel (0) target = $region17
  $region16: #{contabulizer_forward.9} parent=0 // pred_region
    _
  $region17: #{contabulizer_forward.9} parent=0 // pred_fallthru
    _
  // Predicated region
  $region18: #{contabulizer_forward.9} parent=0 // pred_check
    _
  $region19: #{contabulizer_forward.9} parent=0 // pred_check_branch
    %23 = sbr.rel (0) target = $region21
  $region20: #{contabulizer_forward.9} parent=0 // pred_region
    _
  $region21: #{contabulizer_forward.9} parent=0 // pred_fallthru
    _
  // Predicated region
  $region22: #{contabulizer_forward.9} parent=0 // pred_check
    _
  $region23: #{contabulizer_forward.9} parent=0 // pred_check_branch
    %25 = sbr.rel (0) target = $region25
  $region24: #{contabulizer_forward.9} parent=0 // pred_region
    _
  $region25: #{contabulizer_forward.9} parent=0 // pred_fallthru
    _
  // Predicated region
  $region26: #{contabulizer_forward.9} parent=0 // pred_check
    _
  $region27: #{contabulizer_forward.9} parent=0 // pred_check_branch
    %27 = sbr.rel (0) target = $region29
  $region28: #{contabulizer_forward.9} parent=0 // pred_region
    _
  $region29: #{contabulizer_forward.9} parent=0 // pred_fallthru
    _
  // Predicated region
  $region30: #{contabulizer_forward.9} parent=0 // pred_check
    _
  $region31: #{contabulizer_forward.9} parent=0 // pred_check_branch
    %29 = sbr.rel (0) target = $region33
  $region32: #{contabulizer_forward.9} parent=0 // pred_region
    _
  $region33: #{contabulizer_forward.9} parent=0 // pred_fallthru
    _
  // Predicated region
  $region34: #{contabulizer_forward.9} parent=0 // pred_check
    _
  $region35: #{contabulizer_forward.9} parent=0 // pred_check_branch
    %31 = sbr.rel (0) target = $region37
  $region36: #{contabulizer_forward.9} parent=0 // pred_region
    _
  $region37: #{contabulizer_forward.9} parent=0 // pred_fallthru
    _
  %v33 = vld [vmem:[%s0] sm:$0xff]
  %v34 = vld [vmem:[%s0 + $0x8] sm:$0xff]
  %v35 = vld [vmem:[%s1] sm:$0x1]
  %v36 = vld [vmem:[%s2] sm:$0x1]
  %vm37 = vcmask 130048
  %v38 = vsel %vm37, %v33, 0.0
  %39 = vadd.xlane.f32.xlu0 %v38
  %v40 = vpop.xlane.xlu0 %39
  %v41 = vsel %vm37, %v34, 0.0
  %42 = vadd.xlane.f32.xlu0 %v41
  %v43 = vpop.xlane.xlu0 %42
  %v44 = vrcp.pop 16.0
  %v45 = vmul.f32 16.0, %v44
  %v46 = vsub.f32 1.0, %v45
  %v47 = vmul.f32 %v44, %v46
  %v48 = vadd.f32 %v44, %v47
  %vm49 = vweird.f32 %v44
  %v50 = vsel %vm49, %v44, %v48
  %v51 = vmul.f32 %v40, %v50
  %v52 = vmul.f32 %v43, %v50
  %v53 = vsub.f32 %v33, %v51
  %v54 = vsub.f32 %v34, %v52
  %v55 = vmul.f32 %v53, %v53
  %v56 = vmul.f32 %v54, %v54
  %v57 = vsel %vm37, %v55, 0.0
  %58 = vadd.xlane.f32.xlu0 %v57
  %v59 = vpop.xlane.xlu0 %58
  %v60 = vsel %vm37, %v56, 0.0
  %61 = vadd.xlane.f32.xlu0 %v60
  %v62 = vpop.xlane.xlu0 %61
  %v63 = vmul.f32 %v59, %v50
  %v64 = vmul.f32 %v62, %v50
  %v65 = vadd.f32 %v63, 1e-05
  %v66 = vadd.f32 %v64, 1e-05
  %v67 = vrsqrt.pop %v65
  %v68 = vmul.f32 %v67, %v65
  %v69 = vmul.f32 %v68, %v67
  %v70 = vmul.f32 0.5, %v69
  %v71 = vsub.f32 1.5, %v70
  %v72 = vmul.f32 %v67, %v71
  %vm73 = vweird.f32 %v65
  %vm74 = vweird.f32 %v67
  %vm75 = vmor %vm73, %vm74
  %v76 = vsel %vm75, %v67, %v72
  %v77 = vrsqrt.pop %v66
  %v78 = vmul.f32 %v77, %v66
  %v79 = vmul.f32 %v78, %v77
  %v80 = vmul.f32 0.5, %v79
  %v81 = vsub.f32 1.5, %v80
  %v82 = vmul.f32 %v77, %v81
  %vm83 = vweird.f32 %v66
  %vm84 = vweird.f32 %v77
  %vm85 = vmor %vm83, %vm84
  %v86 = vsel %vm85, %v77, %v82
  %v87 = vmul.f32 %v53, %v76
  %v88 = vmul.f32 %v54, %v86
  %v90 = vperm.slane %v35, 0
  %v92 = vmul.f32 %v87, %v90
  %v93 = vmul.f32 %v88, %v90
  %v95 = vperm.slane %v36, 0
  %v97 = vadd.f32 %v92, %v95
  %v98 = vadd.f32 %v93, %v95
  %v99 = vld [vmem:[%s3] sm:$0xf]
  %v100 = vld [vmem:[%s3 + $0x4] sm:$0xf]
  %v101 = vld [vmem:[%s4] sm:$0x1]
  %v102 = vld [vmem:[%s5] sm:$0xf]
  %v103 = vld [vmem:[%s5 + $0x4] sm:$0xf]
  %v104 = vld [vmem:[%s6] sm:$0x1]
  %v105 = vld [vmem:[%s7] sm:$0xf]
  %v106 = vld [vmem:[%s7 + $0x4] sm:$0xf]
  %v107 = vld [vmem:[%s7 + $0x8] sm:$0xf]
  %v108 = vld [vmem:[%s7 + $0xc] sm:$0xf]
  %v109 = vld [vmem:[%s7 + $0x10] sm:$0xf]
  %v110 = vld [vmem:[%s7 + $0x14] sm:$0xf]
  %v111 = vld [vmem:[%s7 + $0x18] sm:$0xf]
  %v112 = vld [vmem:[%s7 + $0x1c] sm:$0xf]
  %v113 = vld [vmem:[%s8] sm:$0x1]
  %v114 = vpack.c.bf16 %v98, %v97
  %v116 = vperm.slane %v101, 0
  %v120 = vunpack.c.l.b16 %v99
  %v121 = vunpack.c.l.b16 %v100
  %v122 = vpack.c.b16 %v121, %v120
  %v125 = vsel %vm37, %v114, 0
  %127 = vmatpush.bf16.msra.mxu0 0
  %128 = vmatpush.bf16.msra.mxu0 0
  %129 = vmatpush.bf16.msra.mxu0 0
  %130 = vmatpush.bf16.msra.mxu0 0
  %131 = vmatpush.bf16.msra.mxu0 0
  %132 = vmatpush.bf16.msra.mxu0 0
  %133 = vmatpush.bf16.msra.mxu0 0
  %134 = vmatpush.bf16.msra.mxu0 %v122
  %135 = vmatmul.bf16.gmra.mxu0 %v125
  %v136 = vpop.f32.mrf.mxu0
  %v137 = vadd.f32 %v116, %v136
  %v138 = vpop.f32.mrf.mxu0
  %v139 = vadd.f32 %v116, %v138
  %140 = vdwg.mxu0
  %v142 = vperm.slane %v104, 0
  %v146 = vunpack.c.l.b16 %v102
  %v147 = vunpack.c.l.b16 %v103
  %v148 = vpack.c.b16 %v147, %v146
  %150 = vmatpush.bf16.msra.mxu0 0
  %151 = vmatpush.bf16.msra.mxu0 0
  %152 = vmatpush.bf16.msra.mxu0 0
  %153 = vmatpush.bf16.msra.mxu0 0
  %154 = vmatpush.bf16.msra.mxu0 0
  %155 = vmatpush.bf16.msra.mxu0 0
  %156 = vmatpush.bf16.msra.mxu0 0
  %157 = vmatpush.bf16.msra.mxu0 %v148
  %158 = vmatmul.bf16.gmra.mxu0 %v125
  %v159 = vpop.f32.mrf.mxu0
  %v160 = vadd.f32 %v142, %v159
  %v161 = vpop.f32.mrf.mxu0
  %v162 = vadd.f32 %v142, %v161
  %163 = vdwg.mxu0
  %v164 = vmul.f32 %v160, %v160
  %v165 = vmul.f32 %v162, %v162
  %v166 = vmul.f32 %v160, %v164
  %v167 = vmul.f32 %v162, %v165
  %v168 = vmul.f32 %v166, 0.044715
  %v169 = vmul.f32 %v167, 0.044715
  %v170 = vadd.f32 %v160, %v168
  %v171 = vadd.f32 %v162, %v169
  %v172 = vmul.f32 %v170, 0.7978846
  %v173 = vmul.f32 %v171, 0.7978846
  %v174 = vtanh.pop %v172
  %v175 = vtanh.pop %v173
  %v176 = vadd.f32 %v174, 1.0
  %v177 = vadd.f32 %v175, 1.0
  %v178 = vmul.f32 %v176, 0.5
  %v179 = vmul.f32 %v177, 0.5
  %v180 = vmul.f32 %v160, %v178
  %v181 = vmul.f32 %v162, %v179
  %v182 = vmul.f32 %v137, %v180
  %v183 = vmul.f32 %v139, %v181
  %v184 = vpack.c.bf16 %v183, %v182
  %v186 = vperm.slane %v113, 0
  %v196 = vunpack.c.l.b16 %v105
  %v197 = vunpack.c.l.b16 %v106
  %v198 = vunpack.c.l.b16 %v107
  %v199 = vunpack.c.l.b16 %v108
  %v200 = vunpack.c.l.b16 %v109
  %v201 = vunpack.c.l.b16 %v110
  %v202 = vunpack.c.l.b16 %v111
  %v203 = vunpack.c.l.b16 %v112
  %v204 = vpack.c.b16 %v197, %v196
  %v205 = vpack.c.b16 %v199, %v198
  %v206 = vpack.c.b16 %v201, %v200
  %v207 = vpack.c.b16 %v203, %v202
  %vm212 = vcmask 523264
  %v214 = vsel %vm212, %v184, 0
  %216 = vmatpush.bf16.msra.mxu0 0
  %217 = vmatpush.bf16.msra.mxu0 0
  %218 = vmatpush.bf16.msra.mxu0 0
  %219 = vmatpush.bf16.msra.mxu0 0
  %220 = vmatpush.bf16.msra.mxu0 %v207
  %221 = vmatpush.bf16.msra.mxu0 %v206
  %222 = vmatpush.bf16.msra.mxu0 %v205
  %223 = vmatpush.bf16.msra.mxu0 %v204
  %224 = vmatmul.bf16.gmra.mxu0 %v214
  %v225 = vpop.f32.mrf.mxu0
  %v226 = vadd.f32 %v186, %v225
  %v227 = vpop.f32.mrf.mxu0
  %v228 = vadd.f32 %v186, %v227
  %229 = vdwg.mxu0
  %vm230 = vcmask 261120
  %231 = vst.msk [vmem:[%s9] sm:$0xff] %vm230, %v226
  %232 = vst.msk [vmem:[%s9 + $0x8] sm:$0xff] %vm230, %v228
  // Predicated region
  $region38: #{contabulizer_forward.9} parent=0 // pred_check
    _
  $region39: #{contabulizer_forward.9} parent=0 // pred_check_branch
    %234 = sbr.rel (0) target = $region41
  $region40: #{contabulizer_forward.9} parent=0 // pred_region
    _
  $region41: #{contabulizer_forward.9} parent=0 // pred_fallthru
    _
  // Predicated region
  $region42: #{contabulizer_forward.9} parent=0 // pred_check
    _
  $region43: #{contabulizer_forward.9} parent=0 // pred_check_branch
    %236 = sbr.rel (0) target = $region45
  $region44: #{contabulizer_forward.9} parent=0 // pred_region
    _
  $region45: #{contabulizer_forward.9} parent=0 // pred_fallthru
    _

// kernel: contabulizer_forward.13
$region0: #{contabulizer_forward.13}
  #allocation0 [shape = 'u32[]', space=smem, size = 0x4, offset = 0x4, fixed_abs, tag = 'smem constant byte address 0x4 - core index']
  #allocation1 [shape = 'u32[72,128]{1,0:T(1,128)}', space=vmem, size = 0x9000, scoped, tag = 'internal scratch']
  %s0 = inlined_call_operand.vmem [shape: f32[1,16,32], index: 0, kind: input, shape index: {}]
  %s1 = inlined_call_operand.vmem [shape: bf16[1,16,16], index: 1, kind: input, shape index: {}]
  %s2 = inlined_call_operand.vmem [shape: bf16[1,16,16], index: 2, kind: input, shape index: {}]
  %s3 = inlined_call_operand.vmem [shape: bf16[32,16], index: 3, kind: input, shape index: {}]
  %s4 = inlined_call_operand.vmem [shape: bf16[16,32], index: 4, kind: input, shape index: {}]
  %s5 = inlined_call_operand.vmem [shape: f32[1,32], index: 5, kind: input, shape index: {}]
  %s6 = inlined_call_operand.vmem [shape: f32[1,32], index: 6, kind: input, shape index: {}]
  %s7 = inlined_call_operand.vmem [shape: f32[1,32], index: 7, kind: input, shape index: {}]
  %s8 = inlined_call_operand.vmem [shape: bf16[32,128], index: 8, kind: input, shape index: {}]
  %s9 = inlined_call_operand.vmem [shape: f32[1,128], index: 9, kind: input, shape index: {}]
  %s10 = inlined_call_operand.vmem [shape: bf16[32,128], index: 10, kind: input, shape index: {}]
  %s11 = inlined_call_operand.vmem [shape: f32[1,128], index: 11, kind: input, shape index: {}]
  %s12 = inlined_call_operand.vmem [shape: bf16[128,32], index: 12, kind: input, shape index: {}]
  %s13 = inlined_call_operand.vmem [shape: f32[1,32], index: 13, kind: input, shape index: {}]
  %s14 = inlined_call_operand.vmem [shape: f32[1,16,32], index: 14, kind: output, shape index: {}]
  %s15 = sld [smem:[#allocation0]]
  $region66: #{contabulizer_forward.13} parent=0
    _
  %s17 = ssub.s32 1, %s15
  %s18 = scalar_select 0, %s17, %s15
  // Predicated region
  $region2: #{contabulizer_forward.13} parent=0 // pred_check
    _
  $region3: #{contabulizer_forward.13} parent=0 // pred_check_branch
    %20 = sbr.rel (0) target = $region5
  $region4: #{contabulizer_forward.13} parent=0 // pred_region
    _
  $region5: #{contabulizer_forward.13} parent=0 // pred_fallthru
    _
  // Predicated region
  $region6: #{contabulizer_forward.13} parent=0 // pred_check
    _
  $region7: #{contabulizer_forward.13} parent=0 // pred_check_branch
    %22 = sbr.rel (0) target = $region9
  $region8: #{contabulizer_forward.13} parent=0 // pred_region
    _
  $region9: #{contabulizer_forward.13} parent=0 // pred_fallthru
    _
  // Predicated region
  $region10: #{contabulizer_forward.13} parent=0 // pred_check
    _
  $region11: #{contabulizer_forward.13} parent=0 // pred_check_branch
    %24 = sbr.rel (0) target = $region13
  $region12: #{contabulizer_forward.13} parent=0 // pred_region
    _
  $region13: #{contabulizer_forward.13} parent=0 // pred_fallthru
    _
  // Predicated region
  $region14: #{contabulizer_forward.13} parent=0 // pred_check
    _
  $region15: #{contabulizer_forward.13} parent=0 // pred_check_branch
    %26 = sbr.rel (0) target = $region17
  $region16: #{contabulizer_forward.13} parent=0 // pred_region
    _
  $region17: #{contabulizer_forward.13} parent=0 // pred_fallthru
    _
  // Predicated region
  $region18: #{contabulizer_forward.13} parent=0 // pred_check
    _
  $region19: #{contabulizer_forward.13} parent=0 // pred_check_branch
    %28 = sbr.rel (0) target = $region21
  $region20: #{contabulizer_forward.13} parent=0 // pred_region
    _
  $region21: #{contabulizer_forward.13} parent=0 // pred_fallthru
    _
  // Predicated region
  $region22: #{contabulizer_forward.13} parent=0 // pred_check
    _
  $region23: #{contabulizer_forward.13} parent=0 // pred_check_branch
    %30 = sbr.rel (0) target = $region25
  $region24: #{contabulizer_forward.13} parent=0 // pred_region
    _
  $region25: #{contabulizer_forward.13} parent=0 // pred_fallthru
    _
  // Predicated region
  $region26: #{contabulizer_forward.13} parent=0 // pred_check
    _
  $region27: #{contabulizer_forward.13} parent=0 // pred_check_branch
    %32 = sbr.rel (0) target = $region29
  $region28: #{contabulizer_forward.13} parent=0 // pred_region
    _
  $region29: #{contabulizer_forward.13} parent=0 // pred_fallthru
    _
  // Predicated region
  $region30: #{contabulizer_forward.13} parent=0 // pred_check
    _
  $region31: #{contabulizer_forward.13} parent=0 // pred_check_branch
    %34 = sbr.rel (0) target = $region33
  $region32: #{contabulizer_forward.13} parent=0 // pred_region
    _
  $region33: #{contabulizer_forward.13} parent=0 // pred_fallthru
    _
  // Predicated region
  $region34: #{contabulizer_forward.13} parent=0 // pred_check
    _
  $region35: #{contabulizer_forward.13} parent=0 // pred_check_branch
    %36 = sbr.rel (0) target = $region37
  $region36: #{contabulizer_forward.13} parent=0 // pred_region
    _
  $region37: #{contabulizer_forward.13} parent=0 // pred_fallthru
    _
  // Predicated region
  $region38: #{contabulizer_forward.13} parent=0 // pred_check
    _
  $region39: #{contabulizer_forward.13} parent=0 // pred_check_branch
    %38 = sbr.rel (0) target = $region41
  $region40: #{contabulizer_forward.13} parent=0 // pred_region
    _
  $region41: #{contabulizer_forward.13} parent=0 // pred_fallthru
    _
  // Predicated region
  $region42: #{contabulizer_forward.13} parent=0 // pred_check
    _
  $region43: #{contabulizer_forward.13} parent=0 // pred_check_branch
    %40 = sbr.rel (0) target = $region45
  $region44: #{contabulizer_forward.13} parent=0 // pred_region
    _
  $region45: #{contabulizer_forward.13} parent=0 // pred_fallthru
    _
  // Predicated region
  $region46: #{contabulizer_forward.13} parent=0 // pred_check
    _
  $region47: #{contabulizer_forward.13} parent=0 // pred_check_branch
    %42 = sbr.rel (0) target = $region49
  $region48: #{contabulizer_forward.13} parent=0 // pred_region
    _
  $region49: #{contabulizer_forward.13} parent=0 // pred_fallthru
    _
  // Predicated region
  $region50: #{contabulizer_forward.13} parent=0 // pred_check
    _
  $region51: #{contabulizer_forward.13} parent=0 // pred_check_branch
    %44 = sbr.rel (0) target = $region53
  $region52: #{contabulizer_forward.13} parent=0 // pred_region
    _
  $region53: #{contabulizer_forward.13} parent=0 // pred_fallthru
    _
  // Predicated region
  $region54: #{contabulizer_forward.13} parent=0 // pred_check
    _
  $region55: #{contabulizer_forward.13} parent=0 // pred_check_branch
    %46 = sbr.rel (0) target = $region57
  $region56: #{contabulizer_forward.13} parent=0 // pred_region
    _
  $region57: #{contabulizer_forward.13} parent=0 // pred_fallthru
    _
  %v48 = vld [vmem:[%s0] sm:$0xff]
  %v49 = vld [vmem:[%s0 + $0x8] sm:$0xff]
  %v50 = vld [vmem:[%s1] sm:$0xf]
  %v51 = vld [vmem:[%s1 + $0x4] sm:$0xf]
  %v52 = vld [vmem:[%s2] sm:$0xf]
  %v53 = vld [vmem:[%s2 + $0x4] sm:$0xf]
  %v54 = vpack.c.bf16 %v49, %v48
  %v55 = vld [vmem:[%s3] sm:$0xf]
  %v56 = vld [vmem:[%s3 + $0x4] sm:$0xf]
  %v57 = vld [vmem:[%s3 + $0x8] sm:$0xf]
  %v58 = vld [vmem:[%s3 + $0xc] sm:$0xf]
  %v63 = vunpack.c.l.b16 %v55
  %v64 = vunpack.c.l.b16 %v56
  %v65 = vunpack.c.l.b16 %v57
  %v66 = vunpack.c.l.b16 %v58
  %v67 = vpack.c.b16 %v64, %v63
  %v68 = vpack.c.b16 %v66, %v65
  %vm71 = vcmask 261120
  %v73 = vsel %vm71, %v54, 0
  %75 = vmatpush.bf16.msra.mxu0 0
  %76 = vmatpush.bf16.msra.mxu0 0
  %77 = vmatpush.bf16.msra.mxu0 0
  %78 = vmatpush.bf16.msra.mxu0 0
  %79 = vmatpush.bf16.msra.mxu0 0
  %80 = vmatpush.bf16.msra.mxu0 0
  %81 = vmatpush.bf16.msra.mxu0 %v68
  %82 = vmatpush.bf16.msra.mxu0 %v67
  %83 = vmatmul.bf16.gmra.mxu0 %v73
  %v84 = vpop.f32.mrf.mxu0
  %v85 = vadd.f32 0.0, %v84
  %v86 = vpop.f32.mrf.mxu0
  %v87 = vadd.f32 0.0, %v86
  %88 = vdwg.mxu0
  %v89 = vpack.c.bf16 %v87, %v85
  %v92 = vunpack.c.l.b16 %v50
  %v93 = vunpack.c.l.b16 %v51
  %v94 = vpack.c.b16 %v93, %v92
  %vm95 = vcmask 64512
  %v97 = vsel %vm95, %v89, 0
  %v100 = vsel %vm95, %v94, 0
  %102 = vmatpush.bf16.xpose.msra.mxu0 0
  %103 = vmatpush.bf16.xpose.msra.mxu0 0
  %104 = vmatpush.bf16.xpose.msra.mxu0 0
  %105 = vmatpush.bf16.xpose.msra.mxu0 0
  %106 = vmatpush.bf16.xpose.msra.mxu0 0
  %107 = vmatpush.bf16.xpose.msra.mxu0 0
  %108 = vmatpush.bf16.xpose.msra.mxu0 0
  %109 = vmatpush.bf16.xpose.msra.mxu0 %v100
  %110 = vmatmul.bf16.gmra.mxu0 %v97
  %v111 = vpop.f32.mrf.mxu0
  %v112 = vadd.f32 0.0, %v111
  %v113 = vpop.f32.mrf.mxu0
  %v114 = vadd.f32 0.0, %v113
  %115 = vdwg.mxu0
  %vm116 = vcmask 130048
  %v117 = vsel %vm116, %v112, -inf
  %118 = vmax.xlane.f32.xlu0 %v117
  %v119 = vpop.xlane.xlu0 %118
  %v120 = vsel %vm116, %v114, -inf
  %121 = vmax.xlane.f32.xlu0 %v120
  %v122 = vpop.xlane.xlu0 %121
  %v123 = vsub.f32 %v112, %v119
  %v124 = vsub.f32 %v114, %v122
  %v125 = vmul.f32 %v123, 1.442695
  %v126 = vpow.pop %v125
  %v127 = vmul.f32 %v124, 1.442695
  %v128 = vpow.pop %v127
  %v129 = vsel %vm116, %v126, 0.0
  %130 = vadd.xlane.f32.xlu0 %v129
  %v131 = vpop.xlane.xlu0 %130
  %v132 = vsel %vm116, %v128, 0.0
  %133 = vadd.xlane.f32.xlu0 %v132
  %v134 = vpop.xlane.xlu0 %133
  %v135 = vrcp.pop %v131
  %v136 = vrcp.pop %v134
  %v137 = vmul.f32 %v126, %v135
  %v138 = vmul.f32 %v128, %v136
  %v139 = vpack.c.bf16 %v138, %v137
  %v142 = vunpack.c.l.b16 %v52
  %v143 = vunpack.c.l.b16 %v53
  %v144 = vpack.c.b16 %v143, %v142
  %v147 = vsel %vm116, %v139, 0
  %149 = vmatpush.bf16.msra.mxu0 0
  %150 = vmatpush.bf16.msra.mxu0 0
  %151 = vmatpush.bf16.msra.mxu0 0
  %152 = vmatpush.bf16.msra.mxu0 0
  %153 = vmatpush.bf16.msra.mxu0 0
  %154 = vmatpush.bf16.msra.mxu0 0
  %155 = vmatpush.bf16.msra.mxu0 0
  %156 = vmatpush.bf16.msra.mxu0 %v144
  %157 = vmatmul.bf16.gmra.mxu0 %v147
  %v158 = vpop.f32.mrf.mxu0
  %v159 = vadd.f32 0.0, %v158
  %v160 = vpop.f32.mrf.mxu0
  %v161 = vadd.f32 0.0, %v160
  %162 = vdwg.mxu0
  %164 = vrot.lane.b32.xlu0 %v89, 120
  %v165 = vpop.permute.xlu0 %164
  %166 = vrot.lane.b32.xlu0 %v94, 120
  %v167 = vpop.permute.xlu0 %166
  %v169 = vsel %vm95, %v165, 0
  %v172 = vsel %vm95, %v167, 0
  %174 = vmatpush.bf16.xpose.msra.mxu0 0
  %175 = vmatpush.bf16.xpose.msra.mxu0 0
  %176 = vmatpush.bf16.xpose.msra.mxu0 0
  %177 = vmatpush.bf16.xpose.msra.mxu0 0
  %178 = vmatpush.bf16.xpose.msra.mxu0 0
  %179 = vmatpush.bf16.xpose.msra.mxu0 0
  %180 = vmatpush.bf16.xpose.msra.mxu0 0
  %181 = vmatpush.bf16.xpose.msra.mxu0 %v172
  %182 = vmatmul.bf16.gmra.mxu0 %v169
  %v183 = vpop.f32.mrf.mxu0
  %v184 = vadd.f32 0.0, %v183
  %v185 = vpop.f32.mrf.mxu0
  %v186 = vadd.f32 0.0, %v185
  %187 = vdwg.mxu0
  %v188 = vsel %vm116, %v184, -inf
  %189 = vmax.xlane.f32.xlu0 %v188
  %v190 = vpop.xlane.xlu0 %189
  %v191 = vsel %vm116, %v186, -inf
  %192 = vmax.xlane.f32.xlu0 %v191
  %v193 = vpop.xlane.xlu0 %192
  %v194 = vsub.f32 %v184, %v190
  %v195 = vsub.f32 %v186, %v193
  %v196 = vmul.f32 %v194, 1.442695
  %v197 = vpow.pop %v196
  %v198 = vmul.f32 %v195, 1.442695
  %v199 = vpow.pop %v198
  %v200 = vsel %vm116, %v197, 0.0
  %201 = vadd.xlane.f32.xlu0 %v200
  %v202 = vpop.xlane.xlu0 %201
  %v203 = vsel %vm116, %v199, 0.0
  %204 = vadd.xlane.f32.xlu0 %v203
  %v205 = vpop.xlane.xlu0 %204
  %v206 = vrcp.pop %v202
  %v207 = vrcp.pop %v205
  %v208 = vmul.f32 %v197, %v206
  %v209 = vmul.f32 %v199, %v207
  %v210 = vpack.c.bf16 %v209, %v208
  %211 = vrot.lane.b32.xlu0 %v144, 120
  %v212 = vpop.permute.xlu0 %211
  %v215 = vsel %vm116, %v210, 0
  %217 = vmatpush.bf16.msra.mxu0 0
  %218 = vmatpush.bf16.msra.mxu0 0
  %219 = vmatpush.bf16.msra.mxu0 0
  %220 = vmatpush.bf16.msra.mxu0 0
  %221 = vmatpush.bf16.msra.mxu0 0
  %222 = vmatpush.bf16.msra.mxu0 0
  %223 = vmatpush.bf16.msra.mxu0 0
  %224 = vmatpush.bf16.msra.mxu0 %v212
  %225 = vmatmul.bf16.gmra.mxu0 %v215
  %v226 = vpop.f32.mrf.mxu0
  %v227 = vadd.f32 0.0, %v226
  %v228 = vpop.f32.mrf.mxu0
  %v229 = vadd.f32 0.0, %v228
  %230 = vdwg.mxu0
  %233 = vrot.lane.b32.xlu0 %v227, 8
  %v234 = vpop.permute.xlu0 %233
  %235 = vrot.lane.b32.xlu0 %v229, 8
  %v236 = vpop.permute.xlu0 %235
  %v239 = vsel %vm95, %v159, %v234
  %v240 = vsel %vm95, %v161, %v236
  %v241 = vpack.c.bf16 %v240, %v239
  %v242 = vld [vmem:[%s4] sm:$0xf]
  %v243 = vld [vmem:[%s4 + $0x4] sm:$0xf]
  %v244 = vld [vmem:[%s5] sm:$0x1]
  %v246 = vperm.slane %v244, 0
  %v250 = vunpack.c.l.b16 %v242
  %v251 = vunpack.c.l.b16 %v243
  %v252 = vpack.c.b16 %v251, %v250
  %v255 = vsel %vm116, %v241, 0
  %257 = vmatpush.bf16.msra.mxu0 0
  %258 = vmatpush.bf16.msra.mxu0 0
  %259 = vmatpush.bf16.msra.mxu0 0
  %260 = vmatpush.bf16.msra.mxu0 0
  %261 = vmatpush.bf16.msra.mxu0 0
  %262 = vmatpush.bf16.msra.mxu0 0
  %263 = vmatpush.bf16.msra.mxu0 0
  %264 = vmatpush.bf16.msra.mxu0 %v252
  %265 = vmatmul.bf16.gmra.mxu0 %v255
  %v266 = vpop.f32.mrf.mxu0
  %v267 = vadd.f32 %v246, %v266
  %v268 = vpop.f32.mrf.mxu0
  %v269 = vadd.f32 %v246, %v268
  %270 = vdwg.mxu0
  %v271 = vadd.f32 %v267, %v48
  %v272 = vadd.f32 %v269, %v49
  %v273 = vld [vmem:[%s6] sm:$0x1]
  %v274 = vld [vmem:[%s7] sm:$0x1]
  %v275 = vsel %vm71, %v271, 0.0
  %276 = vadd.xlane.f32.xlu0 %v275
  %v277 = vpop.xlane.xlu0 %276
  %v278 = vsel %vm71, %v272, 0.0
  %279 = vadd.xlane.f32.xlu0 %v278
  %v280 = vpop.xlane.xlu0 %279
  %v281 = vrcp.pop 32.0
  %v282 = vmul.f32 32.0, %v281
  %v283 = vsub.f32 1.0, %v282
  %v284 = vmul.f32 %v281, %v283
  %v285 = vadd.f32 %v281, %v284
  %vm286 = vweird.f32 %v281
  %v287 = vsel %vm286, %v281, %v285
  %v288 = vmul.f32 %v277, %v287
  %v289 = vmul.f32 %v280, %v287
  %v290 = vsub.f32 %v271, %v288
  %v291 = vsub.f32 %v272, %v289
  %v292 = vmul.f32 %v290, %v290
  %v293 = vmul.f32 %v291, %v291
  %v294 = vsel %vm71, %v292, 0.0
  %295 = vadd.xlane.f32.xlu0 %v294
  %v296 = vpop.xlane.xlu0 %295
  %v297 = vsel %vm71, %v293, 0.0
  %298 = vadd.xlane.f32.xlu0 %v297
  %v299 = vpop.xlane.xlu0 %298
  %v300 = vmul.f32 %v296, %v287
  %v301 = vmul.f32 %v299, %v287
  %v302 = vadd.f32 %v300, 1e-05
  %v303 = vadd.f32 %v301, 1e-05
  %v304 = vrsqrt.pop %v302
  %v305 = vmul.f32 %v304, %v302
  %v306 = vmul.f32 %v305, %v304
  %v307 = vmul.f32 0.5, %v306
  %v308 = vsub.f32 1.5, %v307
  %v309 = vmul.f32 %v304, %v308
  %vm310 = vweird.f32 %v302
  %vm311 = vweird.f32 %v304
  %vm312 = vmor %vm310, %vm311
  %v313 = vsel %vm312, %v304, %v309
  %v314 = vrsqrt.pop %v303
  %v315 = vmul.f32 %v314, %v303
  %v316 = vmul.f32 %v315, %v314
  %v317 = vmul.f32 0.5, %v316
  %v318 = vsub.f32 1.5, %v317
  %v319 = vmul.f32 %v314, %v318
  %vm320 = vweird.f32 %v303
  %vm321 = vweird.f32 %v314
  %vm322 = vmor %vm320, %vm321
  %v323 = vsel %vm322, %v314, %v319
  %v324 = vmul.f32 %v290, %v313
  %v325 = vmul.f32 %v291, %v323
  %v327 = vperm.slane %v273, 0
  %v329 = vmul.f32 %v324, %v327
  %v330 = vmul.f32 %v325, %v327
  %v332 = vperm.slane %v274, 0
  %v334 = vadd.f32 %v329, %v332
  %v335 = vadd.f32 %v330, %v332
  %v336 = vld [vmem:[%s8] sm:$0xf]
  %v337 = vld [vmem:[%s8 + $0x4] sm:$0xf]
  %v338 = vld [vmem:[%s8 + $0x8] sm:$0xf]
  %v339 = vld [vmem:[%s8 + $0xc] sm:$0xf]
  %v340 = vld [vmem:[%s9] sm:$0x1]
  %v341 = vld [vmem:[%s10] sm:$0xf]
  %v342 = vld [vmem:[%s10 + $0x4] sm:$0xf]
  %v343 = vld [vmem:[%s10 + $0x8] sm:$0xf]
  %v344 = vld [vmem:[%s10 + $0xc] sm:$0xf]
  %v345 = vld [vmem:[%s11] sm:$0x1]
  %v346 = vld [vmem:[%s12] sm:$0xf]
  %v347 = vld [vmem:[%s12 + $0x4] sm:$0xf]
  %v348 = vld [vmem:[%s12 + $0x8] sm:$0xf]
  %v349 = vld [vmem:[%s12 + $0xc] sm:$0xf]
  %v350 = vld [vmem:[%s12 + $0x10] sm:$0xf]
  %v351 = vld [vmem:[%s12 + $0x14] sm:$0xf]
  %v352 = vld [vmem:[%s12 + $0x18] sm:$0xf]
  %v353 = vld [vmem:[%s12 + $0x1c] sm:$0xf]
  %v354 = vld [vmem:[%s12 + $0x20] sm:$0xf]
  %v355 = vld [vmem:[%s12 + $0x24] sm:$0xf]
  %v356 = vld [vmem:[%s12 + $0x28] sm:$0xf]
  %v357 = vld [vmem:[%s12 + $0x2c] sm:$0xf]
  %v358 = vld [vmem:[%s12 + $0x30] sm:$0xf]
  %v359 = vld [vmem:[%s12 + $0x34] sm:$0xf]
  %v360 = vld [vmem:[%s12 + $0x38] sm:$0xf]
  %v361 = vld [vmem:[%s12 + $0x3c] sm:$0xf]
  %v362 = vld [vmem:[%s13] sm:$0x1]
  %v363 = vpack.c.bf16 %v335, %v334
  %v365 = vperm.slane %v340, 0
  %v371 = vunpack.c.l.b16 %v336
  %v372 = vunpack.c.l.b16 %v337
  %v373 = vunpack.c.l.b16 %v338
  %v374 = vunpack.c.l.b16 %v339
  %v375 = vpack.c.b16 %v372, %v371
  %v376 = vpack.c.b16 %v374, %v373
  %v380 = vsel %vm71, %v363, 0
  %382 = vmatpush.bf16.msra.mxu0 0
  %383 = vmatpush.bf16.msra.mxu0 0
  %384 = vmatpush.bf16.msra.mxu0 0
  %385 = vmatpush.bf16.msra.mxu0 0
  %386 = vmatpush.bf16.msra.mxu0 0
  %387 = vmatpush.bf16.msra.mxu0 0
  %388 = vmatpush.bf16.msra.mxu0 %v376
  %389 = vmatpush.bf16.msra.mxu0 %v375
  %390 = vmatmul.bf16.gmra.mxu0 %v380
  %v391 = vpop.f32.mrf.mxu0
  %v392 = vadd.f32 %v365, %v391
  %v393 = vpop.f32.mrf.mxu0
  %v394 = vadd.f32 %v365, %v393
  %395 = vdwg.mxu0
  %v397 = vperm.slane %v345, 0
  %v403 = vunpack.c.l.b16 %v341
  %v404 = vunpack.c.l.b16 %v342
  %v405 = vunpack.c.l.b16 %v343
  %v406 = vunpack.c.l.b16 %v344
  %v407 = vpack.c.b16 %v404, %v403
  %v408 = vpack.c.b16 %v406, %v405
  %411 = vmatpush.bf16.msra.mxu0 0
  %412 = vmatpush.bf16.msra.mxu0 0
  %413 = vmatpush.bf16.msra.mxu0 0
  %414 = vmatpush.bf16.msra.mxu0 0
  %415 = vmatpush.bf16.msra.mxu0 0
  %416 = vmatpush.bf16.msra.mxu0 0
  %417 = vmatpush.bf16.msra.mxu0 %v408
  %418 = vmatpush.bf16.msra.mxu0 %v407
  %419 = vmatmul.bf16.gmra.mxu0 %v380
  %v420 = vpop.f32.mrf.mxu0
  %v421 = vadd.f32 %v397, %v420
  %v422 = vpop.f32.mrf.mxu0
  %v423 = vadd.f32 %v397, %v422
  %424 = vdwg.mxu0
  %v425 = vmul.f32 %v421, %v421
  %v426 = vmul.f32 %v423, %v423
  %v427 = vmul.f32 %v421, %v425
  %v428 = vmul.f32 %v423, %v426
  %v429 = vmul.f32 %v427, 0.044715
  %v430 = vmul.f32 %v428, 0.044715
  %v431 = vadd.f32 %v421, %v429
  %v432 = vadd.f32 %v423, %v430
  %v433 = vmul.f32 %v431, 0.7978846
  %v434 = vmul.f32 %v432, 0.7978846
  %v435 = vtanh.pop %v433
  %v436 = vtanh.pop %v434
  %v437 = vadd.f32 %v435, 1.0
  %v438 = vadd.f32 %v436, 1.0
  %v439 = vmul.f32 %v437, 0.5
  %v440 = vmul.f32 %v438, 0.5
  %v441 = vmul.f32 %v421, %v439
  %v442 = vmul.f32 %v423, %v440
  %v443 = vmul.f32 %v392, %v441
  %v444 = vmul.f32 %v394, %v442
  %v445 = vpack.c.bf16 %v444, %v443
  %v447 = vperm.slane %v362, 0
  %v465 = vunpack.c.l.b16 %v346
  %v466 = vunpack.c.l.b16 %v347
  %v467 = vunpack.c.l.b16 %v348
  %v468 = vunpack.c.l.b16 %v349
  %v469 = vunpack.c.l.b16 %v350
  %v470 = vunpack.c.l.b16 %v351
  %v471 = vunpack.c.l.b16 %v352
  %v472 = vunpack.c.l.b16 %v353
  %v473 = vunpack.c.l.b16 %v354
  %v474 = vunpack.c.l.b16 %v355
  %v475 = vunpack.c.l.b16 %v356
  %v476 = vunpack.c.l.b16 %v357
  %v477 = vunpack.c.l.b16 %v358
  %v478 = vunpack.c.l.b16 %v359
  %v479 = vunpack.c.l.b16 %v360
  %v480 = vunpack.c.l.b16 %v361
  %v481 = vpack.c.b16 %v466, %v465
  %v482 = vpack.c.b16 %v468, %v467
  %v483 = vpack.c.b16 %v470, %v469
  %v484 = vpack.c.b16 %v472, %v471
  %v485 = vpack.c.b16 %v474, %v473
  %v486 = vpack.c.b16 %v476, %v475
  %v487 = vpack.c.b16 %v478, %v477
  %v488 = vpack.c.b16 %v480, %v479
  %497 = vmatpush.bf16.msra.mxu0 %v488
  %498 = vmatpush.bf16.msra.mxu0 %v487
  %499 = vmatpush.bf16.msra.mxu0 %v486
  %500 = vmatpush.bf16.msra.mxu0 %v485
  %501 = vmatpush.bf16.msra.mxu0 %v484
  %502 = vmatpush.bf16.msra.mxu0 %v483
  %503 = vmatpush.bf16.msra.mxu0 %v482
  %504 = vmatpush.bf16.msra.mxu0 %v481
  %505 = vmatmul.bf16.gmra.mxu0 %v445
  %v506 = vpop.f32.mrf.mxu0
  %v507 = vadd.f32 %v447, %v506
  %v508 = vpop.f32.mrf.mxu0
  %v509 = vadd.f32 %v447, %v508
  %510 = vdwg.mxu0
  %v511 = vadd.f32 %v507, %v334
  %v512 = vadd.f32 %v509, %v335
  %513 = vst.msk [vmem:[%s14] sm:$0xff] %vm71, %v511
  %514 = vst.msk [vmem:[%s14 + $0x8] sm:$0xff] %vm71, %v512
  // Predicated region
  $region58: #{contabulizer_forward.13} parent=0 // pred_check
    _
  $region59: #{contabulizer_forward.13} parent=0 // pred_check_branch
    %516 = sbr.rel (0) target = $region61
  $region60: #{contabulizer_forward.13} parent=0 // pred_region
    _
  $region61: #{contabulizer_forward.13} parent=0 // pred_fallthru
    _
  // Predicated region
  $region62: #{contabulizer_forward.13} parent=0 // pred_check
    _
  $region63: #{contabulizer_forward.13} parent=0 // pred_check_branch
    %518 = sbr.rel (0) target = $region65
  $region64: #{contabulizer_forward.13} parent=0 // pred_region
    _
  $region65: #{contabulizer_forward.13} parent=0 // pred_fallthru
    _

// kernel: contabulizer_forward.11
$region0: #{contabulizer_forward.11}
  #allocation0 [shape = 'u32[]', space=smem, size = 0x4, offset = 0x4, fixed_abs, tag = 'smem constant byte address 0x4 - core index']
  #allocation1 [shape = 'u32[72,128]{1,0:T(1,128)}', space=vmem, size = 0x9000, scoped, tag = 'internal scratch']
  %s0 = inlined_call_operand.vmem [shape: f32[2,8,32], index: 0, kind: input, shape index: {}]
  %s1 = inlined_call_operand.vmem [shape: bf16[2,8,16], index: 1, kind: input, shape index: {}]
  %s2 = inlined_call_operand.vmem [shape: bf16[2,8,16], index: 2, kind: input, shape index: {}]
  %s3 = inlined_call_operand.vmem [shape: bf16[32,16], index: 3, kind: input, shape index: {}]
  %s4 = inlined_call_operand.vmem [shape: bf16[16,32], index: 4, kind: input, shape index: {}]
  %s5 = inlined_call_operand.vmem [shape: f32[1,32], index: 5, kind: input, shape index: {}]
  %s6 = inlined_call_operand.vmem [shape: f32[1,32], index: 6, kind: input, shape index: {}]
  %s7 = inlined_call_operand.vmem [shape: f32[1,32], index: 7, kind: input, shape index: {}]
  %s8 = inlined_call_operand.vmem [shape: bf16[32,128], index: 8, kind: input, shape index: {}]
  %s9 = inlined_call_operand.vmem [shape: f32[1,128], index: 9, kind: input, shape index: {}]
  %s10 = inlined_call_operand.vmem [shape: bf16[32,128], index: 10, kind: input, shape index: {}]
  %s11 = inlined_call_operand.vmem [shape: f32[1,128], index: 11, kind: input, shape index: {}]
  %s12 = inlined_call_operand.vmem [shape: bf16[128,32], index: 12, kind: input, shape index: {}]
  %s13 = inlined_call_operand.vmem [shape: f32[1,32], index: 13, kind: input, shape index: {}]
  %s14 = inlined_call_operand.vmem [shape: f32[2,8,32], index: 14, kind: output, shape index: {}]
  %s15 = sld [smem:[#allocation0]]
  $region89: #{contabulizer_forward.11} parent=0
    _
  %s17 = ssub.s32 1, %s15
  %s18 = scalar_select 0, %s17, %s15
  loop: start=0, step=1, limit=4
  $region2: #{contabulizer_forward.11} parent=0 // loop_pre_header
    _
  $region3: #{contabulizer_forward.11} parent=0 // loop_header
    %s20 = sphi 0, %s24
    %p21 = scmp.ge.s32.totalorder %s20, 4
    %s27 = sphi 0, %s39
    %s28 = sphi 0, %s35
    %s29 = sphi 0, %s27
    %s30 = sphi 0, %s28
    %s31 = sphi 0, %s29
    %s32 = sphi 0, %s30
    %s44 = sphi 0, %s46
    %s47 = sphi 0, %s44
    %s48 = sphi 0, %s47
    %s64 = sphi 0, %s48
    %s70 = sphi 0, %s72
    %s73 = sphi 0, %s70
    %s74 = sphi 0, %s73
    %s90 = sphi 0, %s74
    %s96 = sphi 0, %s98
    %s99 = sphi 0, %s96
    %s100 = sphi 0, %s99
    %s116 = sphi 0, %s100
    %s120 = sphi 0, %s120
    %s122 = sphi 0, %s120
    %s123 = sphi 0, %s122
    %s137 = sphi 0, %s123
    %s141 = sphi 0, %s141
    %s143 = sphi 0, %s141
    %s144 = sphi 0, %s143
    %s158 = sphi 0, %s144
    %s162 = sphi 0, %s162
    %s164 = sphi 0, %s162
    %s165 = sphi 0, %s164
    %s179 = sphi 0, %s165
    %s183 = sphi 0, %s183
    %s185 = sphi 0, %s183
    %s186 = sphi 0, %s185
    %s200 = sphi 0, %s186
    %s204 = sphi 0, %s204
    %s206 = sphi 0, %s204
    %s207 = sphi 0, %s206
    %s221 = sphi 0, %s207
    %s225 = sphi 0, %s225
    %s227 = sphi 0, %s225
    %s228 = sphi 0, %s227
    %s242 = sphi 0, %s228
    %s246 = sphi 0, %s246
    %s248 = sphi 0, %s246
    %s249 = sphi 0, %s248
    %s263 = sphi 0, %s249
    %s267 = sphi 0, %s267
    %s269 = sphi 0, %s267
    %s270 = sphi 0, %s269
    %s284 = sphi 0, %s270
    %s288 = sphi 0, %s288
    %s290 = sphi 0, %s288
    %s291 = sphi 0, %s290
    %s305 = sphi 0, %s291
    %s309 = sphi 0, %s309
    %s311 = sphi 0, %s309
    %s312 = sphi 0, %s311
    %s326 = sphi 0, %s312
    %s330 = sphi 0, %s330
    %s332 = sphi 0, %s330
    %s333 = sphi 0, %s332
    %s347 = sphi 0, %s333
    %s355 = sphi 0, %s357
    %s358 = sphi 0, %s355
    %s359 = sphi 0, %s358
    %s375 = sphi 0, %s359
  $region4: #{contabulizer_forward.11} parent=0 // loop_header_branch
    %23 = sbr.rel (%p21) target = $region8
  $region5: #{contabulizer_forward.11} parent=0 // loop_body
    %s25 = ssub.s32 %s20, 1
    %s26 = ssub.s32 %s20, 2
    %s33 = sadd.s32 1, %s28
    %p34 = scmp.ge.s32.totalorder %s33, 1
    %s35 = scalar_select %p34, 0, %s33
    %s36 = sadd.s32 1, %s27
    %s37 = scalar_select %p34, %s36, %s27
    %p38 = scmp.ge.s32.totalorder %s37, 2
    %s39 = scalar_select %p38, 0, %s37
    %s40 = ssub.s32 %s27, %s39
    %s41 = ssub.s32 %s28, %s35
    %s42 = sor.u32 %s40, %s41
    %p43 = scmp.eq.s32.totalorder %s42, 0
    %s45 = sadd.s32 %s44, 1
    %s46 = scalar_select %p43, %s44, %s45
    %p49 = pneg %p43
    %p50 = scmp.eq.s32.totalorder %s20, 1
    %p51 = por %p49, %p50
    %p52 = scmp.ne.s32.totalorder %s44, %s47
    %p53 = scmp.eq.s32.totalorder %s20, 0
    %p54 = por %p52, %p53
    %p55 = scmp.ne.s32.totalorder %s44, %s47
    %p56 = scmp.eq.s32.totalorder %s25, 1
    %p57 = por %p55, %p56
    %p58 = scmp.ne.s32.totalorder %s47, %s48
    %p59 = scmp.eq.s32.totalorder %s25, 0
    %p60 = por %p58, %p59
    %p61 = scmp.ne.s32.totalorder %s47, %s48
    %p62 = scmp.eq.s32.totalorder %s26, 1
    %p63 = por %p61, %p62
    %p65 = scmp.ne.s32.totalorder %s48, %s64
    %p66 = scmp.eq.s32.totalorder %s26, 0
    %p67 = por %p65, %p66
    %s68 = ssub.s32 %s27, %s39
    %p69 = scmp.eq.s32.totalorder %s68, 0
    %s71 = sadd.s32 %s70, 1
    %s72 = scalar_select %p69, %s70, %s71
    %p75 = pneg %p69
    %p76 = scmp.eq.s32.totalorder %s20, 1
    %p77 = por %p75, %p76
    %p78 = scmp.ne.s32.totalorder %s70, %s73
    %p79 = scmp.eq.s32.totalorder %s20, 0
    %p80 = por %p78, %p79
    %p81 = scmp.ne.s32.totalorder %s70, %s73
    %p82 = scmp.eq.s32.totalorder %s25, 1
    %p83 = por %p81, %p82
    %p84 = scmp.ne.s32.totalorder %s73, %s74
    %p85 = scmp.eq.s32.totalorder %s25, 0
    %p86 = por %p84, %p85
    %p87 = scmp.ne.s32.totalorder %s73, %s74
    %p88 = scmp.eq.s32.totalorder %s26, 1
    %p89 = por %p87, %p88
    %p91 = scmp.ne.s32.totalorder %s74, %s90
    %p92 = scmp.eq.s32.totalorder %s26, 0
    %p93 = por %p91, %p92
    %s94 = ssub.s32 %s27, %s39
    %p95 = scmp.eq.s32.totalorder %s94, 0
    %s97 = sadd.s32 %s96, 1
    %s98 = scalar_select %p95, %s96, %s97
    %p101 = pneg %p95
    %p102 = scmp.eq.s32.totalorder %s20, 1
    %p103 = por %p101, %p102
    %p104 = scmp.ne.s32.totalorder %s96, %s99
    %p105 = scmp.eq.s32.totalorder %s20, 0
    %p106 = por %p104, %p105
    %p107 = scmp.ne.s32.totalorder %s96, %s99
    %p108 = scmp.eq.s32.totalorder %s25, 1
    %p109 = por %p107, %p108
    %p110 = scmp.ne.s32.totalorder %s99, %s100
    %p111 = scmp.eq.s32.totalorder %s25, 0
    %p112 = por %p110, %p111
    %p113 = scmp.ne.s32.totalorder %s99, %s100
    %p114 = scmp.eq.s32.totalorder %s26, 1
    %p115 = por %p113, %p114
    %p117 = scmp.ne.s32.totalorder %s100, %s116
    %p118 = scmp.eq.s32.totalorder %s26, 0
    %p119 = por %p117, %p118
    %s121 = sadd.s32 %s120, 1
    %p124 = scmp.eq.s32.totalorder %s20, 1
    %p125 = scmp.ne.s32.totalorder %s120, %s122
    %p126 = scmp.eq.s32.totalorder %s20, 0
    %p127 = por %p125, %p126
    %p128 = scmp.ne.s32.totalorder %s120, %s122
    %p129 = scmp.eq.s32.totalorder %s25, 1
    %p130 = por %p128, %p129
    %p131 = scmp.ne.s32.totalorder %s122, %s123
    %p132 = scmp.eq.s32.totalorder %s25, 0
    %p133 = por %p131, %p132
    %p134 = scmp.ne.s32.totalorder %s122, %s123
    %p135 = scmp.eq.s32.totalorder %s26, 1
    %p136 = por %p134, %p135
    %p138 = scmp.ne.s32.totalorder %s123, %s137
    %p139 = scmp.eq.s32.totalorder %s26, 0
    %p140 = por %p138, %p139
    %s142 = sadd.s32 %s141, 1
    %p145 = scmp.eq.s32.totalorder %s20, 1
    %p146 = scmp.ne.s32.totalorder %s141, %s143
    %p147 = scmp.eq.s32.totalorder %s20, 0
    %p148 = por %p146, %p147
    %p149 = scmp.ne.s32.totalorder %s141, %s143
    %p150 = scmp.eq.s32.totalorder %s25, 1
    %p151 = por %p149, %p150
    %p152 = scmp.ne.s32.totalorder %s143, %s144
    %p153 = scmp.eq.s32.totalorder %s25, 0
    %p154 = por %p152, %p153
    %p155 = scmp.ne.s32.totalorder %s143, %s144
    %p156 = scmp.eq.s32.totalorder %s26, 1
    %p157 = por %p155, %p156
    %p159 = scmp.ne.s32.totalorder %s144, %s158
    %p160 = scmp.eq.s32.totalorder %s26, 0
    %p161 = por %p159, %p160
    %s163 = sadd.s32 %s162, 1
    %p166 = scmp.eq.s32.totalorder %s20, 1
    %p167 = scmp.ne.s32.totalorder %s162, %s164
    %p168 = scmp.eq.s32.totalorder %s20, 0
    %p169 = por %p167, %p168
    %p170 = scmp.ne.s32.totalorder %s162, %s164
    %p171 = scmp.eq.s32.totalorder %s25, 1
    %p172 = por %p170, %p171
    %p173 = scmp.ne.s32.totalorder %s164, %s165
    %p174 = scmp.eq.s32.totalorder %s25, 0
    %p175 = por %p173, %p174
    %p176 = scmp.ne.s32.totalorder %s164, %s165
    %p177 = scmp.eq.s32.totalorder %s26, 1
    %p178 = por %p176, %p177
    %p180 = scmp.ne.s32.totalorder %s165, %s179
    %p181 = scmp.eq.s32.totalorder %s26, 0
    %p182 = por %p180, %p181
    %s184 = sadd.s32 %s183, 1
    %p187 = scmp.eq.s32.totalorder %s20, 1
    %p188 = scmp.ne.s32.totalorder %s183, %s185
    %p189 = scmp.eq.s32.totalorder %s20, 0
    %p190 = por %p188, %p189
    %p191 = scmp.ne.s32.totalorder %s183, %s185
    %p192 = scmp.eq.s32.totalorder %s25, 1
    %p193 = por %p191, %p192
    %p194 = scmp.ne.s32.totalorder %s185, %s186
    %p195 = scmp.eq.s32.totalorder %s25, 0
    %p196 = por %p194, %p195
    %p197 = scmp.ne.s32.totalorder %s185, %s186
    %p198 = scmp.eq.s32.totalorder %s26, 1
    %p199 = por %p197, %p198
    %p201 = scmp.ne.s32.totalorder %s186, %s200
    %p202 = scmp.eq.s32.totalorder %s26, 0
    %p203 = por %p201, %p202
    %s205 = sadd.s32 %s204, 1
    %p208 = scmp.eq.s32.totalorder %s20, 1
    %p209 = scmp.ne.s32.totalorder %s204, %s206
    %p210 = scmp.eq.s32.totalorder %s20, 0
    %p211 = por %p209, %p210
    %p212 = scmp.ne.s32.totalorder %s204, %s206
    %p213 = scmp.eq.s32.totalorder %s25, 1
    %p214 = por %p212, %p213
    %p215 = scmp.ne.s32.totalorder %s206, %s207
    %p216 = scmp.eq.s32.totalorder %s25, 0
    %p217 = por %p215, %p216
    %p218 = scmp.ne.s32.totalorder %s206, %s207
    %p219 = scmp.eq.s32.totalorder %s26, 1
    %p220 = por %p218, %p219
    %p222 = scmp.ne.s32.totalorder %s207, %s221
    %p223 = scmp.eq.s32.totalorder %s26, 0
    %p224 = por %p222, %p223
    %s226 = sadd.s32 %s225, 1
    %p229 = scmp.eq.s32.totalorder %s20, 1
    %p230 = scmp.ne.s32.totalorder %s225, %s227
    %p231 = scmp.eq.s32.totalorder %s20, 0
    %p232 = por %p230, %p231
    %p233 = scmp.ne.s32.totalorder %s225, %s227
    %p234 = scmp.eq.s32.totalorder %s25, 1
    %p235 = por %p233, %p234
    %p236 = scmp.ne.s32.totalorder %s227, %s228
    %p237 = scmp.eq.s32.totalorder %s25, 0
    %p238 = por %p236, %p237
    %p239 = scmp.ne.s32.totalorder %s227, %s228
    %p240 = scmp.eq.s32.totalorder %s26, 1
    %p241 = por %p239, %p240
    %p243 = scmp.ne.s32.totalorder %s228, %s242
    %p244 = scmp.eq.s32.totalorder %s26, 0
    %p245 = por %p243, %p244
    %s247 = sadd.s32 %s246, 1
    %p250 = scmp.eq.s32.totalorder %s20, 1
    %p251 = scmp.ne.s32.totalorder %s246, %s248
    %p252 = scmp.eq.s32.totalorder %s20, 0
    %p253 = por %p251, %p252
    %p254 = scmp.ne.s32.totalorder %s246, %s248
    %p255 = scmp.eq.s32.totalorder %s25, 1
    %p256 = por %p254, %p255
    %p257 = scmp.ne.s32.totalorder %s248, %s249
    %p258 = scmp.eq.s32.totalorder %s25, 0
    %p259 = por %p257, %p258
    %p260 = scmp.ne.s32.totalorder %s248, %s249
    %p261 = scmp.eq.s32.totalorder %s26, 1
    %p262 = por %p260, %p261
    %p264 = scmp.ne.s32.totalorder %s249, %s263
    %p265 = scmp.eq.s32.totalorder %s26, 0
    %p266 = por %p264, %p265
    %s268 = sadd.s32 %s267, 1
    %p271 = scmp.eq.s32.totalorder %s20, 1
    %p272 = scmp.ne.s32.totalorder %s267, %s269
    %p273 = scmp.eq.s32.totalorder %s20, 0
    %p274 = por %p272, %p273
    %p275 = scmp.ne.s32.totalorder %s267, %s269
    %p276 = scmp.eq.s32.totalorder %s25, 1
    %p277 = por %p275, %p276
    %p278 = scmp.ne.s32.totalorder %s269, %s270
    %p279 = scmp.eq.s32.totalorder %s25, 0
    %p280 = por %p278, %p279
    %p281 = scmp.ne.s32.totalorder %s269, %s270
    %p282 = scmp.eq.s32.totalorder %s26, 1
    %p283 = por %p281, %p282
    %p285 = scmp.ne.s32.totalorder %s270, %s284
    %p286 = scmp.eq.s32.totalorder %s26, 0
    %p287 = por %p285, %p286
    %s289 = sadd.s32 %s288, 1
    %p292 = scmp.eq.s32.totalorder %s20, 1
    %p293 = scmp.ne.s32.totalorder %s288, %s290
    %p294 = scmp.eq.s32.totalorder %s20, 0
    %p295 = por %p293, %p294
    %p296 = scmp.ne.s32.totalorder %s288, %s290
    %p297 = scmp.eq.s32.totalorder %s25, 1
    %p298 = por %p296, %p297
    %p299 = scmp.ne.s32.totalorder %s290, %s291
    %p300 = scmp.eq.s32.totalorder %s25, 0
    %p301 = por %p299, %p300
    %p302 = scmp.ne.s32.totalorder %s290, %s291
    %p303 = scmp.eq.s32.totalorder %s26, 1
    %p304 = por %p302, %p303
    %p306 = scmp.ne.s32.totalorder %s291, %s305
    %p307 = scmp.eq.s32.totalorder %s26, 0
    %p308 = por %p306, %p307
    %s310 = sadd.s32 %s309, 1
    %p313 = scmp.eq.s32.totalorder %s20, 1
    %p314 = scmp.ne.s32.totalorder %s309, %s311
    %p315 = scmp.eq.s32.totalorder %s20, 0
    %p316 = por %p314, %p315
    %p317 = scmp.ne.s32.totalorder %s309, %s311
    %p318 = scmp.eq.s32.totalorder %s25, 1
    %p319 = por %p317, %p318
    %p320 = scmp.ne.s32.totalorder %s311, %s312
    %p321 = scmp.eq.s32.totalorder %s25, 0
    %p322 = por %p320, %p321
    %p323 = scmp.ne.s32.totalorder %s311, %s312
    %p324 = scmp.eq.s32.totalorder %s26, 1
    %p325 = por %p323, %p324
    %p327 = scmp.ne.s32.totalorder %s312, %s326
    %p328 = scmp.eq.s32.totalorder %s26, 0
    %p329 = por %p327, %p328
    %s331 = sadd.s32 %s330, 1
    %p334 = scmp.eq.s32.totalorder %s20, 1
    %p335 = scmp.ne.s32.totalorder %s330, %s332
    %p336 = scmp.eq.s32.totalorder %s20, 0
    %p337 = por %p335, %p336
    %p338 = scmp.ne.s32.totalorder %s330, %s332
    %p339 = scmp.eq.s32.totalorder %s25, 1
    %p340 = por %p338, %p339
    %p341 = scmp.ne.s32.totalorder %s332, %s333
    %p342 = scmp.eq.s32.totalorder %s25, 0
    %p343 = por %p341, %p342
    %p344 = scmp.ne.s32.totalorder %s332, %s333
    %p345 = scmp.eq.s32.totalorder %s26, 1
    %p346 = por %p344, %p345
    %p348 = scmp.ne.s32.totalorder %s333, %s347
    %p349 = scmp.eq.s32.totalorder %s26, 0
    %p350 = por %p348, %p349
    %s351 = ssub.s32 %s27, %s39
    %s352 = ssub.s32 %s28, %s35
    %s353 = sor.u32 %s351, %s352
    %p354 = scmp.eq.s32.totalorder %s353, 0
    %s356 = sadd.s32 %s355, 1
    %s357 = scalar_select %p354, %s355, %s356
    %p360 = pneg %p354
    %p361 = scmp.eq.s32.totalorder %s20, 1
    %p362 = por %p360, %p361
    %p363 = scmp.ne.s32.totalorder %s355, %s358
    %p364 = scmp.eq.s32.totalorder %s20, 0
    %p365 = por %p363, %p364
    %p366 = scmp.ne.s32.totalorder %s355, %s358
    %p367 = scmp.eq.s32.totalorder %s25, 1
    %p368 = por %p366, %p367
    %p369 = scmp.ne.s32.totalorder %s358, %s359
    %p370 = scmp.eq.s32.totalorder %s25, 0
    %p371 = por %p369, %p370
    %p372 = scmp.ne.s32.totalorder %s358, %s359
    %p373 = scmp.eq.s32.totalorder %s26, 1
    %p374 = por %p372, %p373
    %p376 = scmp.ne.s32.totalorder %s359, %s375
    %p377 = scmp.eq.s32.totalorder %s26, 0
    %p378 = por %p376, %p377
    %p379 = scmp.le.s32.totalorder 1, %s20
    %p380 = scmp.lt.s32.totalorder %s20, 3
    %p381 = pnand %p379, %p380
    %p382 = pneg %p381
    // Predicated region
    $region9: #{contabulizer_forward.11} parent=5 // pred_check
      _
    $region10: #{contabulizer_forward.11} parent=5 // pred_check_branch
      %384 = sbr.rel (%p381) target = $region12
    $region11: #{contabulizer_forward.11} parent=5 // pred_region
      %s385 = ssub.s32 %s20, 1
      // Predicated region
      $region13: #{contabulizer_forward.11} parent=11 // pred_check
        %p386 = pneg %p133
      $region14: #{contabulizer_forward.11} parent=11 // pred_check_branch
        %388 = sbr.rel (%p386) target = $region16
      $region15: #{contabulizer_forward.11} parent=11 // pred_region
        _
      $region16: #{contabulizer_forward.11} parent=11 // pred_fallthru
        _
      // Predicated region
      $region17: #{contabulizer_forward.11} parent=11 // pred_check
        %p389 = pneg %p154
      $region18: #{contabulizer_forward.11} parent=11 // pred_check_branch
        %391 = sbr.rel (%p389) target = $region20
      $region19: #{contabulizer_forward.11} parent=11 // pred_region
        _
      $region20: #{contabulizer_forward.11} parent=11 // pred_fallthru
        _
      // Predicated region
      $region21: #{contabulizer_forward.11} parent=11 // pred_check
        %p392 = pneg %p175
      $region22: #{contabulizer_forward.11} parent=11 // pred_check_branch
        %394 = sbr.rel (%p392) target = $region24
      $region23: #{contabulizer_forward.11} parent=11 // pred_region
        _
      $region24: #{contabulizer_forward.11} parent=11 // pred_fallthru
        _
      // Predicated region
      $region25: #{contabulizer_forward.11} parent=11 // pred_check
        %p395 = pneg %p196
      $region26: #{contabulizer_forward.11} parent=11 // pred_check_branch
        %397 = sbr.rel (%p395) target = $region28
      $region27: #{contabulizer_forward.11} parent=11 // pred_region
        _
      $region28: #{contabulizer_forward.11} parent=11 // pred_fallthru
        _
      // Predicated region
      $region29: #{contabulizer_forward.11} parent=11 // pred_check
        %p398 = pneg %p217
      $region30: #{contabulizer_forward.11} parent=11 // pred_check_branch
        %400 = sbr.rel (%p398) target = $region32
      $region31: #{contabulizer_forward.11} parent=11 // pred_region
        _
      $region32: #{contabulizer_forward.11} parent=11 // pred_fallthru
        _
      // Predicated region
      $region33: #{contabulizer_forward.11} parent=11 // pred_check
        %p401 = pneg %p238
      $region34: #{contabulizer_forward.11} parent=11 // pred_check_branch
        %403 = sbr.rel (%p401) target = $region36
      $region35: #{contabulizer_forward.11} parent=11 // pred_region
        _
      $region36: #{contabulizer_forward.11} parent=11 // pred_fallthru
        _
      // Predicated region
      $region37: #{contabulizer_forward.11} parent=11 // pred_check
        %p404 = pneg %p259
      $region38: #{contabulizer_forward.11} parent=11 // pred_check_branch
        %406 = sbr.rel (%p404) target = $region40
      $region39: #{contabulizer_forward.11} parent=11 // pred_region
        _
      $region40: #{contabulizer_forward.11} parent=11 // pred_fallthru
        _
      // Predicated region
      $region41: #{contabulizer_forward.11} parent=11 // pred_check
        %p407 = pneg %p280
      $region42: #{contabulizer_forward.11} parent=11 // pred_check_branch
        %409 = sbr.rel (%p407) target = $region44
      $region43: #{contabulizer_forward.11} parent=11 // pred_region
        _
      $region44: #{contabulizer_forward.11} parent=11 // pred_fallthru
        _
      // Predicated region
      $region45: #{contabulizer_forward.11} parent=11 // pred_check
        %p410 = pneg %p301
      $region46: #{contabulizer_forward.11} parent=11 // pred_check_branch
        %412 = sbr.rel (%p410) target = $region48
      $region47: #{contabulizer_forward.11} parent=11 // pred_region
        _
      $region48: #{contabulizer_forward.11} parent=11 // pred_fallthru
        _
      // Predicated region
      $region49: #{contabulizer_forward.11} parent=11 // pred_check
        %p413 = pneg %p322
      $region50: #{contabulizer_forward.11} parent=11 // pred_check_branch
        %415 = sbr.rel (%p413) target = $region52
      $region51: #{contabulizer_forward.11} parent=11 // pred_region
        _
      $region52: #{contabulizer_forward.11} parent=11 // pred_fallthru
        _
      // Predicated region
      $region53: #{contabulizer_forward.11} parent=11 // pred_check
        %p416 = pneg %p343
      $region54: #{contabulizer_forward.11} parent=11 // pred_check_branch
        %418 = sbr.rel (%p416) target = $region56
      $region55: #{contabulizer_forward.11} parent=11 // pred_region
        _
      $region56: #{contabulizer_forward.11} parent=11 // pred_fallthru
        _
    $region12: #{contabulizer_forward.11} parent=5 // pred_fallthru
      _
    %p419 = scmp.lt.s32.totalorder %s20, 2
    // Predicated region
    $region57: #{contabulizer_forward.11} parent=5 // pred_check
      %p420 = pneg %p419
    $region58: #{contabulizer_forward.11} parent=5 // pred_check_branch
      %422 = sbr.rel (%p420) target = $region60
    $region59: #{contabulizer_forward.11} parent=5 // pred_region
      // Predicated region
      $region61: #{contabulizer_forward.11} parent=59 // pred_check
        %p423 = pneg %p54
      $region62: #{contabulizer_forward.11} parent=59 // pred_check_branch
        %425 = sbr.rel (%p423) target = $region64
      $region63: #{contabulizer_forward.11} parent=59 // pred_region
        %p426 = scmp.lt.s32.totalorder %s27, 1
        %s427 = scalar_select %p426, %s27, 1
        %p428 = scmp.lt.s32.totalorder %s28, 0
        %s429 = scalar_select %p428, %s28, 0
        %s430 = sadd.s32 %s429, %s427
        %s431 = smul.addr %s430, 8
        %s432 = scalar_lea.vmem %s0, %s431
      $region64: #{contabulizer_forward.11} parent=59 // pred_fallthru
        _
      // Predicated region
      $region65: #{contabulizer_forward.11} parent=59 // pred_check
        %p433 = pneg %p80
      $region66: #{contabulizer_forward.11} parent=59 // pred_check_branch
        %435 = sbr.rel (%p433) target = $region68
      $region67: #{contabulizer_forward.11} parent=59 // pred_region
        %p436 = scmp.lt.s32.totalorder %s27, 1
        %s437 = scalar_select %p436, %s27, 1
        %s438 = smul.addr %s437, 4
        %s439 = scalar_lea.vmem %s1, %s438
      $region68: #{contabulizer_forward.11} parent=59 // pred_fallthru
        _
      // Predicated region
      $region69: #{contabulizer_forward.11} parent=59 // pred_check
        %p440 = pneg %p106
      $region70: #{contabulizer_forward.11} parent=59 // pred_check_branch
        %442 = sbr.rel (%p440) target = $region72
      $region71: #{contabulizer_forward.11} parent=59 // pred_region
        %p443 = scmp.lt.s32.totalorder %s27, 1
        %s444 = scalar_select %p443, %s27, 1
        %s445 = smul.addr %s444, 4
        %s446 = scalar_lea.vmem %s2, %s445
      $region72: #{contabulizer_forward.11} parent=59 // pred_fallthru
        _
    $region60: #{contabulizer_forward.11} parent=5 // pred_fallthru
      _
    %p447 = scmp.le.s32.totalorder 1, %s20
    %p448 = scmp.lt.s32.totalorder %s20, 3
    %p449 = pnand %p447, %p448
    %p450 = pneg %p449
    // Predicated region
    $region73: #{contabulizer_forward.11} parent=5 // pred_check
      _
    $region74: #{contabulizer_forward.11} parent=5 // pred_check_branch
      %452 = sbr.rel (%p449) target = $region76
    $region75: #{contabulizer_forward.11} parent=5 // pred_region
      %s453 = ssub.s32 %s20, 1
      %p454 = scmp.lt.s32.totalorder %s29, 1
      %s455 = scalar_select %p454, %s29, 1
      %p456 = scmp.lt.s32.totalorder %s30, 0
      %s457 = scalar_select %p456, %s30, 0
      %s458 = sadd.s32 %s457, %s455
      %s459 = smul.addr %s458, 8
      %s460 = scalar_lea.vmem %s0, %s459
      %p461 = pneg %p60
      %p462 = pneg %p57
      %p463 = scmp.lt.s32.totalorder %s29, 1
      %s464 = scalar_select %p463, %s29, 1
      %s465 = smul.addr %s464, 4
      %s466 = scalar_lea.vmem %s1, %s465
      %p467 = pneg %p86
      %p468 = pneg %p83
      %p469 = scmp.lt.s32.totalorder %s29, 1
      %s470 = scalar_select %p469, %s29, 1
      %s471 = smul.addr %s470, 4
      %s472 = scalar_lea.vmem %s2, %s471
      %p473 = pneg %p112
      %p474 = pneg %p109
      %p475 = pneg %p133
      %p476 = pneg %p130
      %p477 = pneg %p154
      %p478 = pneg %p151
      %p479 = pneg %p175
      %p480 = pneg %p172
      %p481 = pneg %p196
      %p482 = pneg %p193
      %p483 = pneg %p217
      %p484 = pneg %p214
      %p485 = pneg %p238
      %p486 = pneg %p235
      %p487 = pneg %p259
      %p488 = pneg %p256
      %p489 = pneg %p280
      %p490 = pneg %p277
      %p491 = pneg %p301
      %p492 = pneg %p298
      %p493 = pneg %p322
      %p494 = pneg %p319
      %p495 = pneg %p343
      %p496 = pneg %p340
      %p497 = pneg %p371
      %p498 = pneg %p368
      %p499 = scmp.lt.s32.totalorder %s29, 1
      %s500 = scalar_select %p499, %s29, 1
      %p501 = scmp.lt.s32.totalorder %s30, 0
      %s502 = scalar_select %p501, %s30, 0
      %s503 = sadd.s32 %s502, %s500
      %s504 = smul.addr %s503, 8
      %s505 = scalar_lea.vmem %s14, %s504
      %p506 = scmp.lt.s32.totalorder %s29, 1
      %s507 = scalar_select %p506, %s29, 1
      %p508 = scmp.lt.s32.totalorder %s30, 0
      %s509 = scalar_select %p508, %s30, 0
      %s510 = sadd.s32 %s509, %s507
      %s511 = smul.addr %s510, 8
      %s512 = scalar_lea.vmem %s0, %s511
      %p513 = scmp.lt.s32.totalorder %s29, 1
      %s514 = scalar_select %p513, %s29, 1
      %s515 = smul.addr %s514, 4
      %s516 = scalar_lea.vmem %s1, %s515
      %p517 = scmp.lt.s32.totalorder %s29, 1
      %s518 = scalar_select %p517, %s29, 1
      %s519 = smul.addr %s518, 4
      %s520 = scalar_lea.vmem %s2, %s519
      %p521 = scmp.lt.s32.totalorder %s29, 1
      %s522 = scalar_select %p521, %s29, 1
      %p523 = scmp.lt.s32.totalorder %s30, 0
      %s524 = scalar_select %p523, %s30, 0
      %s525 = sadd.s32 %s524, %s522
      %s526 = smul.addr %s525, 8
      %s527 = scalar_lea.vmem %s14, %s526
      %v529 = vld [vmem:[%s512] sm:$0xff]
      %v530 = vld [vmem:[%s516] sm:$0xf]
      %v531 = vld [vmem:[%s520] sm:$0xf]
      %v532 = vpack.c.bf16 %v529, %v529
      %v533 = vld [vmem:[%s3] sm:$0xf]
      %v534 = vld [vmem:[%s3 + $0x4] sm:$0xf]
      %v535 = vld [vmem:[%s3 + $0x8] sm:$0xf]
      %v536 = vld [vmem:[%s3 + $0xc] sm:$0xf]
      %v541 = vunpack.c.l.b16 %v533
      %v542 = vunpack.c.l.b16 %v534
      %v543 = vunpack.c.l.b16 %v535
      %v544 = vunpack.c.l.b16 %v536
      %v545 = vpack.c.b16 %v542, %v541
      %v546 = vpack.c.b16 %v544, %v543
      %vm549 = vcmask 261120
      %v551 = vsel %vm549, %v532, 0
      %553 = vmatpush.bf16.msra.mxu0 0
      %554 = vmatpush.bf16.msra.mxu0 0
      %555 = vmatpush.bf16.msra.mxu0 0
      %556 = vmatpush.bf16.msra.mxu0 0
      %557 = vmatpush.bf16.msra.mxu0 0
      %558 = vmatpush.bf16.msra.mxu0 0
      %559 = vmatpush.bf16.msra.mxu0 %v546
      %560 = vmatpush.bf16.msra.mxu0 %v545
      %561 = vmatmul.bf16.gmra.mxu0 %v551
      %v562 = vpop.f32.mrf.mxu0
      %v563 = vadd.f32 0.0, %v562
      %v564 = vpop.f32.mrf.mxu0
      %565 = vdwg.mxu0
      %v566 = vpack.c.bf16 %v563, %v563
      %vm567 = vcmask 64512
      %v569 = vsel %vm567, %v566, 0
      %v572 = vsel %vm567, %v530, 0
      %574 = vmatpush.bf16.xpose.msra.mxu0 0
      %575 = vmatpush.bf16.xpose.msra.mxu0 0
      %576 = vmatpush.bf16.xpose.msra.mxu0 0
      %577 = vmatpush.bf16.xpose.msra.mxu0 0
      %578 = vmatpush.bf16.xpose.msra.mxu0 0
      %579 = vmatpush.bf16.xpose.msra.mxu0 0
      %580 = vmatpush.bf16.xpose.msra.mxu0 0
      %581 = vmatpush.bf16.xpose.msra.mxu0 %v572
      %582 = vmatmul.bf16.gmra.mxu0 %v569
      %v583 = vpop.f32.mrf.mxu0
      %v584 = vadd.f32 0.0, %v583
      %v585 = vpop.f32.mrf.mxu0
      %586 = vdwg.mxu0
      %v587 = vsel %vm567, %v584, -inf
      %588 = vmax.xlane.f32.xlu0 %v587
      %v589 = vpop.xlane.xlu0 %588
      %v590 = vsub.f32 %v584, %v589
      %v591 = vmul.f32 %v590, 1.442695
      %v592 = vpow.pop %v591
      %v593 = vsel %vm567, %v592, 0.0
      %594 = vadd.xlane.f32.xlu0 %v593
      %v595 = vpop.xlane.xlu0 %594
      %v596 = vrcp.pop %v595
      %v597 = vmul.f32 %v592, %v596
      %v598 = vpack.c.bf16 %v597, %v597
      %v600 = vsel %vm567, %v598, 0
      %vm602 = vcmask 1043456
      %v604 = vsel %vm602, %v531, 0
      %606 = vmatpush.bf16.msra.mxu0 0
      %607 = vmatpush.bf16.msra.mxu0 0
      %608 = vmatpush.bf16.msra.mxu0 0
      %609 = vmatpush.bf16.msra.mxu0 0
      %610 = vmatpush.bf16.msra.mxu0 0
      %611 = vmatpush.bf16.msra.mxu0 0
      %612 = vmatpush.bf16.msra.mxu0 0
      %613 = vmatpush.bf16.msra.mxu0 %v604
      %614 = vmatmul.bf16.gmra.mxu0 %v600
      %v615 = vpop.f32.mrf.mxu0
      %v616 = vadd.f32 0.0, %v615
      %v617 = vpop.f32.mrf.mxu0
      %618 = vdwg.mxu0
      %620 = vrot.lane.b32.xlu0 %v566, 120
      %v621 = vpop.permute.xlu0 %620
      %v623 = vunpack.c.l.b16 %v530
      %v624 = vpack.c.b16 %v623, %v623
      %625 = vrot.lane.b32.xlu0 %v624, 120
      %v626 = vpop.permute.xlu0 %625
      %v628 = vsel %vm567, %v621, 0
      %v631 = vsel %vm567, %v626, 0
      %633 = vmatpush.bf16.xpose.msra.mxu0 0
      %634 = vmatpush.bf16.xpose.msra.mxu0 0
      %635 = vmatpush.bf16.xpose.msra.mxu0 0
      %636 = vmatpush.bf16.xpose.msra.mxu0 0
      %637 = vmatpush.bf16.xpose.msra.mxu0 0
      %638 = vmatpush.bf16.xpose.msra.mxu0 0
      %639 = vmatpush.bf16.xpose.msra.mxu0 0
      %640 = vmatpush.bf16.xpose.msra.mxu0 %v631
      %641 = vmatmul.bf16.gmra.mxu0 %v628
      %v642 = vpop.f32.mrf.mxu0
      %v643 = vadd.f32 0.0, %v642
      %v644 = vpop.f32.mrf.mxu0
      %645 = vdwg.mxu0
      %v646 = vsel %vm567, %v643, -inf
      %647 = vmax.xlane.f32.xlu0 %v646
      %v648 = vpop.xlane.xlu0 %647
      %v649 = vsub.f32 %v643, %v648
      %v650 = vmul.f32 %v649, 1.442695
      %v651 = vpow.pop %v650
      %v652 = vsel %vm567, %v651, 0.0
      %653 = vadd.xlane.f32.xlu0 %v652
      %v654 = vpop.xlane.xlu0 %653
      %v655 = vrcp.pop %v654
      %v656 = vmul.f32 %v651, %v655
      %v657 = vpack.c.bf16 %v656, %v656
      %v659 = vunpack.c.l.b16 %v531
      %v660 = vpack.c.b16 %v659, %v659
      %661 = vrot.lane.b32.xlu0 %v660, 120
      %v662 = vpop.permute.xlu0 %661
      %v664 = vsel %vm567, %v657, 0
      %v667 = vsel %vm602, %v662, 0
      %669 = vmatpush.bf16.msra.mxu0 0
      %670 = vmatpush.bf16.msra.mxu0 0
      %671 = vmatpush.bf16.msra.mxu0 0
      %672 = vmatpush.bf16.msra.mxu0 0
      %673 = vmatpush.bf16.msra.mxu0 0
      %674 = vmatpush.bf16.msra.mxu0 0
      %675 = vmatpush.bf16.msra.mxu0 0
      %676 = vmatpush.bf16.msra.mxu0 %v667
      %677 = vmatmul.bf16.gmra.mxu0 %v664
      %v678 = vpop.f32.mrf.mxu0
      %v679 = vadd.f32 0.0, %v678
      %v680 = vpop.f32.mrf.mxu0
      %681 = vdwg.mxu0
      %683 = vrot.lane.b32.xlu0 %v679, 8
      %v684 = vpop.permute.xlu0 %683
      %v686 = vsel %vm567, %v616, %v684
      %v687 = vpack.c.bf16 %v686, %v686
      %v688 = vld [vmem:[%s4] sm:$0xf]
      %v689 = vld [vmem:[%s4 + $0x4] sm:$0xf]
      %v690 = vld [vmem:[%s5] sm:$0x1]
      %v692 = vperm.slane %v690, 0
      %v696 = vunpack.c.l.b16 %v688
      %v697 = vunpack.c.l.b16 %v689
      %v698 = vpack.c.b16 %v697, %v696
      %vm700 = vcmask 130048
      %v702 = vsel %vm700, %v687, 0
      %704 = vmatpush.bf16.msra.mxu0 0
      %705 = vmatpush.bf16.msra.mxu0 0
      %706 = vmatpush.bf16.msra.mxu0 0
      %707 = vmatpush.bf16.msra.mxu0 0
      %708 = vmatpush.bf16.msra.mxu0 0
      %709 = vmatpush.bf16.msra.mxu0 0
      %710 = vmatpush.bf16.msra.mxu0 0
      %711 = vmatpush.bf16.msra.mxu0 %v698
      %712 = vmatmul.bf16.gmra.mxu0 %v702
      %v713 = vpop.f32.mrf.mxu0
      %v714 = vadd.f32 %v692, %v713
      %v715 = vpop.f32.mrf.mxu0
      %716 = vdwg.mxu0
      %v717 = vadd.f32 %v714, %v529
      %v718 = vld [vmem:[%s6] sm:$0x1]
      %v719 = vld [vmem:[%s7] sm:$0x1]
      %v720 = vsel %vm549, %v717, 0.0
      %721 = vadd.xlane.f32.xlu0 %v720
      %v722 = vpop.xlane.xlu0 %721
      %v723 = vrcp.pop 32.0
      %v724 = vmul.f32 32.0, %v723
      %v725 = vsub.f32 1.0, %v724
      %v726 = vmul.f32 %v723, %v725
      %v727 = vadd.f32 %v723, %v726
      %vm728 = vweird.f32 %v723
      %v729 = vsel %vm728, %v723, %v727
      %v730 = vmul.f32 %v722, %v729
      %v731 = vsub.f32 %v717, %v730
      %v732 = vmul.f32 %v731, %v731
      %v733 = vsel %vm549, %v732, 0.0
      %734 = vadd.xlane.f32.xlu0 %v733
      %v735 = vpop.xlane.xlu0 %734
      %v736 = vmul.f32 %v735, %v729
      %v737 = vadd.f32 %v736, 1e-05
      %v738 = vrsqrt.pop %v737
      %v739 = vmul.f32 %v738, %v737
      %v740 = vmul.f32 %v739, %v738
      %v741 = vmul.f32 0.5, %v740
      %v742 = vsub.f32 1.5, %v741
      %v743 = vmul.f32 %v738, %v742
      %vm744 = vweird.f32 %v737
      %vm745 = vweird.f32 %v738
      %vm746 = vmor %vm744, %vm745
      %v747 = vsel %vm746, %v738, %v743
      %v748 = vmul.f32 %v731, %v747
      %v750 = vperm.slane %v718, 0
      %v752 = vmul.f32 %v748, %v750
      %v754 = vperm.slane %v719, 0
      %v756 = vadd.f32 %v752, %v754
      %v757 = vld [vmem:[%s8] sm:$0xf]
      %v758 = vld [vmem:[%s8 + $0x4] sm:$0xf]
      %v759 = vld [vmem:[%s8 + $0x8] sm:$0xf]
      %v760 = vld [vmem:[%s8 + $0xc] sm:$0xf]
      %v761 = vld [vmem:[%s9] sm:$0x1]
      %v762 = vld [vmem:[%s10] sm:$0xf]
      %v763 = vld [vmem:[%s10 + $0x4] sm:$0xf]
      %v764 = vld [vmem:[%s10 + $0x8] sm:$0xf]
      %v765 = vld [vmem:[%s10 + $0xc] sm:$0xf]
      %v766 = vld [vmem:[%s11] sm:$0x1]
      %v767 = vld [vmem:[%s12] sm:$0xf]
      %v768 = vld [vmem:[%s12 + $0x4] sm:$0xf]
      %v769 = vld [vmem:[%s12 + $0x8] sm:$0xf]
      %v770 = vld [vmem:[%s12 + $0xc] sm:$0xf]
      %v771 = vld [vmem:[%s12 + $0x10] sm:$0xf]
      %v772 = vld [vmem:[%s12 + $0x14] sm:$0xf]
      %v773 = vld [vmem:[%s12 + $0x18] sm:$0xf]
      %v774 = vld [vmem:[%s12 + $0x1c] sm:$0xf]
      %v775 = vld [vmem:[%s12 + $0x20] sm:$0xf]
      %v776 = vld [vmem:[%s12 + $0x24] sm:$0xf]
      %v777 = vld [vmem:[%s12 + $0x28] sm:$0xf]
      %v778 = vld [vmem:[%s12 + $0x2c] sm:$0xf]
      %v779 = vld [vmem:[%s12 + $0x30] sm:$0xf]
      %v780 = vld [vmem:[%s12 + $0x34] sm:$0xf]
      %v781 = vld [vmem:[%s12 + $0x38] sm:$0xf]
      %v782 = vld [vmem:[%s12 + $0x3c] sm:$0xf]
      %v783 = vld [vmem:[%s13] sm:$0x1]
      %v784 = vpack.c.bf16 %v756, %v756
      %v786 = vperm.slane %v761, 0
      %v792 = vunpack.c.l.b16 %v757
      %v793 = vunpack.c.l.b16 %v758
      %v794 = vunpack.c.l.b16 %v759
      %v795 = vunpack.c.l.b16 %v760
      %v796 = vpack.c.b16 %v793, %v792
      %v797 = vpack.c.b16 %v795, %v794
      %v801 = vsel %vm549, %v784, 0
      %803 = vmatpush.bf16.msra.mxu0 0
      %804 = vmatpush.bf16.msra.mxu0 0
      %805 = vmatpush.bf16.msra.mxu0 0
      %806 = vmatpush.bf16.msra.mxu0 0
      %807 = vmatpush.bf16.msra.mxu0 0
      %808 = vmatpush.bf16.msra.mxu0 0
      %809 = vmatpush.bf16.msra.mxu0 %v797
      %810 = vmatpush.bf16.msra.mxu0 %v796
      %811 = vmatmul.bf16.gmra.mxu0 %v801
      %v812 = vpop.f32.mrf.mxu0
      %v813 = vadd.f32 %v786, %v812
      %v814 = vpop.f32.mrf.mxu0
      %815 = vdwg.mxu0
      %v817 = vperm.slane %v766, 0
      %v823 = vunpack.c.l.b16 %v762
      %v824 = vunpack.c.l.b16 %v763
      %v825 = vunpack.c.l.b16 %v764
      %v826 = vunpack.c.l.b16 %v765
      %v827 = vpack.c.b16 %v824, %v823
      %v828 = vpack.c.b16 %v826, %v825
      %831 = vmatpush.bf16.msra.mxu0 0
      %832 = vmatpush.bf16.msra.mxu0 0
      %833 = vmatpush.bf16.msra.mxu0 0
      %834 = vmatpush.bf16.msra.mxu0 0
      %835 = vmatpush.bf16.msra.mxu0 0
      %836 = vmatpush.bf16.msra.mxu0 0
      %837 = vmatpush.bf16.msra.mxu0 %v828
      %838 = vmatpush.bf16.msra.mxu0 %v827
      %839 = vmatmul.bf16.gmra.mxu0 %v801
      %v840 = vpop.f32.mrf.mxu0
      %v841 = vadd.f32 %v817, %v840
      %v842 = vpop.f32.mrf.mxu0
      %843 = vdwg.mxu0
      %v844 = vmul.f32 %v841, %v841
      %v845 = vmul.f32 %v841, %v844
      %v846 = vmul.f32 %v845, 0.044715
      %v847 = vadd.f32 %v841, %v846
      %v848 = vmul.f32 %v847, 0.7978846
      %v849 = vtanh.pop %v848
      %v850 = vadd.f32 %v849, 1.0
      %v851 = vmul.f32 %v850, 0.5
      %v852 = vmul.f32 %v841, %v851
      %v853 = vmul.f32 %v813, %v852
      %v854 = vpack.c.bf16 %v853, %v853
      %v856 = vperm.slane %v783, 0
      %v874 = vunpack.c.l.b16 %v767
      %v875 = vunpack.c.l.b16 %v768
      %v876 = vunpack.c.l.b16 %v769
      %v877 = vunpack.c.l.b16 %v770
      %v878 = vunpack.c.l.b16 %v771
      %v879 = vunpack.c.l.b16 %v772
      %v880 = vunpack.c.l.b16 %v773
      %v881 = vunpack.c.l.b16 %v774
      %v882 = vunpack.c.l.b16 %v775
      %v883 = vunpack.c.l.b16 %v776
      %v884 = vunpack.c.l.b16 %v777
      %v885 = vunpack.c.l.b16 %v778
      %v886 = vunpack.c.l.b16 %v779
      %v887 = vunpack.c.l.b16 %v780
      %v888 = vunpack.c.l.b16 %v781
      %v889 = vunpack.c.l.b16 %v782
      %v890 = vpack.c.b16 %v875, %v874
      %v891 = vpack.c.b16 %v877, %v876
      %v892 = vpack.c.b16 %v879, %v878
      %v893 = vpack.c.b16 %v881, %v880
      %v894 = vpack.c.b16 %v883, %v882
      %v895 = vpack.c.b16 %v885, %v884
      %v896 = vpack.c.b16 %v887, %v886
      %v897 = vpack.c.b16 %v889, %v888
      %906 = vmatpush.bf16.msra.mxu0 %v897
      %907 = vmatpush.bf16.msra.mxu0 %v896
      %908 = vmatpush.bf16.msra.mxu0 %v895
      %909 = vmatpush.bf16.msra.mxu0 %v894
      %910 = vmatpush.bf16.msra.mxu0 %v893
      %911 = vmatpush.bf16.msra.mxu0 %v892
      %912 = vmatpush.bf16.msra.mxu0 %v891
      %913 = vmatpush.bf16.msra.mxu0 %v890
      %914 = vmatmul.bf16.gmra.mxu0 %v854
      %v915 = vpop.f32.mrf.mxu0
      %v916 = vadd.f32 %v856, %v915
      %v917 = vpop.f32.mrf.mxu0
      %918 = vdwg.mxu0
      %v919 = vadd.f32 %v916, %v756
      %920 = vst.msk [vmem:[%s527] sm:$0xff] %vm549, %v919
      %p921 = scmp.lt.s32.totalorder %s29, 1
      %s922 = scalar_select %p921, %s29, 1
      %p923 = scmp.lt.s32.totalorder %s30, 0
      %s924 = scalar_select %p923, %s30, 0
      %s925 = sadd.s32 %s924, %s922
      %s926 = smul.addr %s925, 8
      %s927 = scalar_lea.vmem %s14, %s926
      // Predicated region
      $region77: #{contabulizer_forward.11} parent=75 // pred_check
        %p928 = pneg %p368
      $region78: #{contabulizer_forward.11} parent=75 // pred_check_branch
        %930 = sbr.rel (%p928) target = $region80
      $region79: #{contabulizer_forward.11} parent=75 // pred_region
        _
      $region80: #{contabulizer_forward.11} parent=75 // pred_fallthru
        _
    $region76: #{contabulizer_forward.11} parent=5 // pred_fallthru
      _
    %p931 = scmp.le.s32.totalorder 2, %s20
    // Predicated region
    $region81: #{contabulizer_forward.11} parent=5 // pred_check
      %p932 = pneg %p931
    $region82: #{contabulizer_forward.11} parent=5 // pred_check_branch
      %934 = sbr.rel (%p932) target = $region84
    $region83: #{contabulizer_forward.11} parent=5 // pred_region
      %s935 = ssub.s32 %s20, 2
      // Predicated region
      $region85: #{contabulizer_forward.11} parent=83 // pred_check
        %p936 = pneg %p374
      $region86: #{contabulizer_forward.11} parent=83 // pred_check_branch
        %938 = sbr.rel (%p936) target = $region88
      $region87: #{contabulizer_forward.11} parent=83 // pred_region
        %p939 = scmp.lt.s32.totalorder %s31, 1
        %s940 = scalar_select %p939, %s31, 1
        %p941 = scmp.lt.s32.totalorder %s32, 0
        %s942 = scalar_select %p941, %s32, 0
        %s943 = sadd.s32 %s942, %s940
        %s944 = smul.addr %s943, 8
        %s945 = scalar_lea.vmem %s14, %s944
      $region88: #{contabulizer_forward.11} parent=83 // pred_fallthru
        _
    $region84: #{contabulizer_forward.11} parent=5 // pred_fallthru
      _
  $region6: #{contabulizer_forward.11} parent=0 // loop_footer
    %s24 = sadd.s32 1, %s20
  $region7: #{contabulizer_forward.11} parent=0 // loop_footer_branch
    %19 = sbr.rel target = $region3
  $region8: #{contabulizer_forward.11} parent=0 // loop_exit
    _

// kernel: contabulizer_forward.17
$region0: #{contabulizer_forward.17}
  #allocation0 [shape = 'u32[]', space=smem, size = 0x4, offset = 0x4, fixed_abs, tag = 'smem constant byte address 0x4 - core index']
  #allocation1 [shape = 'u32[72,128]{1,0:T(1,128)}', space=vmem, size = 0x9000, scoped, tag = 'internal scratch']
  %s0 = inlined_call_operand.vmem [shape: f32[1,16,32], index: 0, kind: input, shape index: {}]
  %s1 = inlined_call_operand.vmem [shape: bf16[1,16,16], index: 1, kind: input, shape index: {}]
  %s2 = inlined_call_operand.vmem [shape: bf16[1,16,16], index: 2, kind: input, shape index: {}]
  %s3 = inlined_call_operand.vmem [shape: bf16[32,16], index: 3, kind: input, shape index: {}]
  %s4 = inlined_call_operand.vmem [shape: bf16[16,32], index: 4, kind: input, shape index: {}]
  %s5 = inlined_call_operand.vmem [shape: f32[1,32], index: 5, kind: input, shape index: {}]
  %s6 = inlined_call_operand.vmem [shape: f32[1,32], index: 6, kind: input, shape index: {}]
  %s7 = inlined_call_operand.vmem [shape: f32[1,32], index: 7, kind: input, shape index: {}]
  %s8 = inlined_call_operand.vmem [shape: bf16[32,128], index: 8, kind: input, shape index: {}]
  %s9 = inlined_call_operand.vmem [shape: f32[1,128], index: 9, kind: input, shape index: {}]
  %s10 = inlined_call_operand.vmem [shape: bf16[32,128], index: 10, kind: input, shape index: {}]
  %s11 = inlined_call_operand.vmem [shape: f32[1,128], index: 11, kind: input, shape index: {}]
  %s12 = inlined_call_operand.vmem [shape: bf16[128,32], index: 12, kind: input, shape index: {}]
  %s13 = inlined_call_operand.vmem [shape: f32[1,32], index: 13, kind: input, shape index: {}]
  %s14 = inlined_call_operand.hbm [shape: f32[1,16,32], index: 14, kind: output, shape index: {}]
  %s15 = sld [smem:[#allocation0]]
  $region66: #{contabulizer_forward.17} parent=0
    _
  %s17 = ssub.s32 1, %s15
  %s18 = scalar_select 0, %s17, %s15
  $region1: #{contabulizer_forward.17} parent=0
    #allocation2 [shape = 'u8[8192]{0}', space=vmem, size = 0x2000, scoped, tag = 'output window, operand 0, single buffered']
    #allocation3 [shape = 's32[1]{0}', space=sflag, size = 0x4, scoped, tag = 'scoped memory for contabulizer_forward.17']
    %19 = vsyncpa [#allocation3], 0
    // Predicated region
    $region2: #{contabulizer_forward.17} parent=1 // pred_check
      _
    $region3: #{contabulizer_forward.17} parent=1 // pred_check_branch
      %21 = sbr.rel (0) target = $region5
    $region4: #{contabulizer_forward.17} parent=1 // pred_region
      _
    $region5: #{contabulizer_forward.17} parent=1 // pred_fallthru
      _
    // Predicated region
    $region6: #{contabulizer_forward.17} parent=1 // pred_check
      _
    $region7: #{contabulizer_forward.17} parent=1 // pred_check_branch
      %23 = sbr.rel (0) target = $region9
    $region8: #{contabulizer_forward.17} parent=1 // pred_region
      _
    $region9: #{contabulizer_forward.17} parent=1 // pred_fallthru
      _
    // Predicated region
    $region10: #{contabulizer_forward.17} parent=1 // pred_check
      _
    $region11: #{contabulizer_forward.17} parent=1 // pred_check_branch
      %25 = sbr.rel (0) target = $region13
    $region12: #{contabulizer_forward.17} parent=1 // pred_region
      _
    $region13: #{contabulizer_forward.17} parent=1 // pred_fallthru
      _
    // Predicated region
    $region14: #{contabulizer_forward.17} parent=1 // pred_check
      _
    $region15: #{contabulizer_forward.17} parent=1 // pred_check_branch
      %27 = sbr.rel (0) target = $region17
    $region16: #{contabulizer_forward.17} parent=1 // pred_region
      _
    $region17: #{contabulizer_forward.17} parent=1 // pred_fallthru
      _
    // Predicated region
    $region18: #{contabulizer_forward.17} parent=1 // pred_check
      _
    $region19: #{contabulizer_forward.17} parent=1 // pred_check_branch
      %29 = sbr.rel (0) target = $region21
    $region20: #{contabulizer_forward.17} parent=1 // pred_region
      _
    $region21: #{contabulizer_forward.17} parent=1 // pred_fallthru
      _
    // Predicated region
    $region22: #{contabulizer_forward.17} parent=1 // pred_check
      _
    $region23: #{contabulizer_forward.17} parent=1 // pred_check_branch
      %31 = sbr.rel (0) target = $region25
    $region24: #{contabulizer_forward.17} parent=1 // pred_region
      _
    $region25: #{contabulizer_forward.17} parent=1 // pred_fallthru
      _
    // Predicated region
    $region26: #{contabulizer_forward.17} parent=1 // pred_check
      _
    $region27: #{contabulizer_forward.17} parent=1 // pred_check_branch
      %33 = sbr.rel (0) target = $region29
    $region28: #{contabulizer_forward.17} parent=1 // pred_region
      _
    $region29: #{contabulizer_forward.17} parent=1 // pred_fallthru
      _
    // Predicated region
    $region30: #{contabulizer_forward.17} parent=1 // pred_check
      _
    $region31: #{contabulizer_forward.17} parent=1 // pred_check_branch
      %35 = sbr.rel (0) target = $region33
    $region32: #{contabulizer_forward.17} parent=1 // pred_region
      _
    $region33: #{contabulizer_forward.17} parent=1 // pred_fallthru
      _
    // Predicated region
    $region34: #{contabulizer_forward.17} parent=1 // pred_check
      _
    $region35: #{contabulizer_forward.17} parent=1 // pred_check_branch
      %37 = sbr.rel (0) target = $region37
    $region36: #{contabulizer_forward.17} parent=1 // pred_region
      _
    $region37: #{contabulizer_forward.17} parent=1 // pred_fallthru
      _
    // Predicated region
    $region38: #{contabulizer_forward.17} parent=1 // pred_check
      _
    $region39: #{contabulizer_forward.17} parent=1 // pred_check_branch
      %39 = sbr.rel (0) target = $region41
    $region40: #{contabulizer_forward.17} parent=1 // pred_region
      _
    $region41: #{contabulizer_forward.17} parent=1 // pred_fallthru
      _
    // Predicated region
    $region42: #{contabulizer_forward.17} parent=1 // pred_check
      _
    $region43: #{contabulizer_forward.17} parent=1 // pred_check_branch
      %41 = sbr.rel (0) target = $region45
    $region44: #{contabulizer_forward.17} parent=1 // pred_region
      _
    $region45: #{contabulizer_forward.17} parent=1 // pred_fallthru
      _
    // Predicated region
    $region46: #{contabulizer_forward.17} parent=1 // pred_check
      _
    $region47: #{contabulizer_forward.17} parent=1 // pred_check_branch
      %43 = sbr.rel (0) target = $region49
    $region48: #{contabulizer_forward.17} parent=1 // pred_region
      _
    $region49: #{contabulizer_forward.17} parent=1 // pred_fallthru
      _
    // Predicated region
    $region50: #{contabulizer_forward.17} parent=1 // pred_check
      _
    $region51: #{contabulizer_forward.17} parent=1 // pred_check_branch
      %45 = sbr.rel (0) target = $region53
    $region52: #{contabulizer_forward.17} parent=1 // pred_region
      _
    $region53: #{contabulizer_forward.17} parent=1 // pred_fallthru
      _
    // Predicated region
    $region54: #{contabulizer_forward.17} parent=1 // pred_check
      _
    $region55: #{contabulizer_forward.17} parent=1 // pred_check_branch
      %47 = sbr.rel (0) target = $region57
    $region56: #{contabulizer_forward.17} parent=1 // pred_region
      _
    $region57: #{contabulizer_forward.17} parent=1 // pred_fallthru
      _
    %v49 = vld [vmem:[%s0] sm:$0xff]
    %v50 = vld [vmem:[%s0 + $0x8] sm:$0xff]
    %v51 = vld [vmem:[%s1] sm:$0xf]
    %v52 = vld [vmem:[%s1 + $0x4] sm:$0xf]
    %v53 = vld [vmem:[%s2] sm:$0xf]
    %v54 = vld [vmem:[%s2 + $0x4] sm:$0xf]
    %v55 = vpack.c.bf16 %v50, %v49
    %v56 = vld [vmem:[%s3] sm:$0xf]
    %v57 = vld [vmem:[%s3 + $0x4] sm:$0xf]
    %v58 = vld [vmem:[%s3 + $0x8] sm:$0xf]
    %v59 = vld [vmem:[%s3 + $0xc] sm:$0xf]
    %v64 = vunpack.c.l.b16 %v56
    %v65 = vunpack.c.l.b16 %v57
    %v66 = vunpack.c.l.b16 %v58
    %v67 = vunpack.c.l.b16 %v59
    %v68 = vpack.c.b16 %v65, %v64
    %v69 = vpack.c.b16 %v67, %v66
    %vm72 = vcmask 261120
    %v74 = vsel %vm72, %v55, 0
    %76 = vmatpush.bf16.msra.mxu0 0
    %77 = vmatpush.bf16.msra.mxu0 0
    %78 = vmatpush.bf16.msra.mxu0 0
    %79 = vmatpush.bf16.msra.mxu0 0
    %80 = vmatpush.bf16.msra.mxu0 0
    %81 = vmatpush.bf16.msra.mxu0 0
    %82 = vmatpush.bf16.msra.mxu0 %v69
    %83 = vmatpush.bf16.msra.mxu0 %v68
    %84 = vmatmul.bf16.gmra.mxu0 %v74
    %v85 = vpop.f32.mrf.mxu0
    %v86 = vadd.f32 0.0, %v85
    %v87 = vpop.f32.mrf.mxu0
    %v88 = vadd.f32 0.0, %v87
    %89 = vdwg.mxu0
    %v90 = vpack.c.bf16 %v88, %v86
    %v93 = vunpack.c.l.b16 %v51
    %v94 = vunpack.c.l.b16 %v52
    %v95 = vpack.c.b16 %v94, %v93
    %vm96 = vcmask 64512
    %v98 = vsel %vm96, %v90, 0
    %v101 = vsel %vm96, %v95, 0
    %103 = vmatpush.bf16.xpose.msra.mxu0 0
    %104 = vmatpush.bf16.xpose.msra.mxu0 0
    %105 = vmatpush.bf16.xpose.msra.mxu0 0
    %106 = vmatpush.bf16.xpose.msra.mxu0 0
    %107 = vmatpush.bf16.xpose.msra.mxu0 0
    %108 = vmatpush.bf16.xpose.msra.mxu0 0
    %109 = vmatpush.bf16.xpose.msra.mxu0 0
    %110 = vmatpush.bf16.xpose.msra.mxu0 %v101
    %111 = vmatmul.bf16.gmra.mxu0 %v98
    %v112 = vpop.f32.mrf.mxu0
    %v113 = vadd.f32 0.0, %v112
    %v114 = vpop.f32.mrf.mxu0
    %v115 = vadd.f32 0.0, %v114
    %116 = vdwg.mxu0
    %vm117 = vcmask 130048
    %v118 = vsel %vm117, %v113, -inf
    %119 = vmax.xlane.f32.xlu0 %v118
    %v120 = vpop.xlane.xlu0 %119
    %v121 = vsel %vm117, %v115, -inf
    %122 = vmax.xlane.f32.xlu0 %v121
    %v123 = vpop.xlane.xlu0 %122
    %v124 = vsub.f32 %v113, %v120
    %v125 = vsub.f32 %v115, %v123
    %v126 = vmul.f32 %v124, 1.442695
    %v127 = vpow.pop %v126
    %v128 = vmul.f32 %v125, 1.442695
    %v129 = vpow.pop %v128
    %v130 = vsel %vm117, %v127, 0.0
    %131 = vadd.xlane.f32.xlu0 %v130
    %v132 = vpop.xlane.xlu0 %131
    %v133 = vsel %vm117, %v129, 0.0
    %134 = vadd.xlane.f32.xlu0 %v133
    %v135 = vpop.xlane.xlu0 %134
    %v136 = vrcp.pop %v132
    %v137 = vrcp.pop %v135
    %v138 = vmul.f32 %v127, %v136
    %v139 = vmul.f32 %v129, %v137
    %v140 = vpack.c.bf16 %v139, %v138
    %v143 = vunpack.c.l.b16 %v53
    %v144 = vunpack.c.l.b16 %v54
    %v145 = vpack.c.b16 %v144, %v143
    %v148 = vsel %vm117, %v140, 0
    %150 = vmatpush.bf16.msra.mxu0 0
    %151 = vmatpush.bf16.msra.mxu0 0
    %152 = vmatpush.bf16.msra.mxu0 0
    %153 = vmatpush.bf16.msra.mxu0 0
    %154 = vmatpush.bf16.msra.mxu0 0
    %155 = vmatpush.bf16.msra.mxu0 0
    %156 = vmatpush.bf16.msra.mxu0 0
    %157 = vmatpush.bf16.msra.mxu0 %v145
    %158 = vmatmul.bf16.gmra.mxu0 %v148
    %v159 = vpop.f32.mrf.mxu0
    %v160 = vadd.f32 0.0, %v159
    %v161 = vpop.f32.mrf.mxu0
    %v162 = vadd.f32 0.0, %v161
    %163 = vdwg.mxu0
    %165 = vrot.lane.b32.xlu0 %v90, 120
    %v166 = vpop.permute.xlu0 %165
    %167 = vrot.lane.b32.xlu0 %v95, 120
    %v168 = vpop.permute.xlu0 %167
    %v170 = vsel %vm96, %v166, 0
    %v173 = vsel %vm96, %v168, 0
    %175 = vmatpush.bf16.xpose.msra.mxu0 0
    %176 = vmatpush.bf16.xpose.msra.mxu0 0
    %177 = vmatpush.bf16.xpose.msra.mxu0 0
    %178 = vmatpush.bf16.xpose.msra.mxu0 0
    %179 = vmatpush.bf16.xpose.msra.mxu0 0
    %180 = vmatpush.bf16.xpose.msra.mxu0 0
    %181 = vmatpush.bf16.xpose.msra.mxu0 0
    %182 = vmatpush.bf16.xpose.msra.mxu0 %v173
    %183 = vmatmul.bf16.gmra.mxu0 %v170
    %v184 = vpop.f32.mrf.mxu0
    %v185 = vadd.f32 0.0, %v184
    %v186 = vpop.f32.mrf.mxu0
    %v187 = vadd.f32 0.0, %v186
    %188 = vdwg.mxu0
    %v189 = vsel %vm117, %v185, -inf
    %190 = vmax.xlane.f32.xlu0 %v189
    %v191 = vpop.xlane.xlu0 %190
    %v192 = vsel %vm117, %v187, -inf
    %193 = vmax.xlane.f32.xlu0 %v192
    %v194 = vpop.xlane.xlu0 %193
    %v195 = vsub.f32 %v185, %v191
    %v196 = vsub.f32 %v187, %v194
    %v197 = vmul.f32 %v195, 1.442695
    %v198 = vpow.pop %v197
    %v199 = vmul.f32 %v196, 1.442695
    %v200 = vpow.pop %v199
    %v201 = vsel %vm117, %v198, 0.0
    %202 = vadd.xlane.f32.xlu0 %v201
    %v203 = vpop.xlane.xlu0 %202
    %v204 = vsel %vm117, %v200, 0.0
    %205 = vadd.xlane.f32.xlu0 %v204
    %v206 = vpop.xlane.xlu0 %205
    %v207 = vrcp.pop %v203
    %v208 = vrcp.pop %v206
    %v209 = vmul.f32 %v198, %v207
    %v210 = vmul.f32 %v200, %v208
    %v211 = vpack.c.bf16 %v210, %v209
    %212 = vrot.lane.b32.xlu0 %v145, 120
    %v213 = vpop.permute.xlu0 %212
    %v216 = vsel %vm117, %v211, 0
    %218 = vmatpush.bf16.msra.mxu0 0
    %219 = vmatpush.bf16.msra.mxu0 0
    %220 = vmatpush.bf16.msra.mxu0 0
    %221 = vmatpush.bf16.msra.mxu0 0
    %222 = vmatpush.bf16.msra.mxu0 0
    %223 = vmatpush.bf16.msra.mxu0 0
    %224 = vmatpush.bf16.msra.mxu0 0
    %225 = vmatpush.bf16.msra.mxu0 %v213
    %226 = vmatmul.bf16.gmra.mxu0 %v216
    %v227 = vpop.f32.mrf.mxu0
    %v228 = vadd.f32 0.0, %v227
    %v229 = vpop.f32.mrf.mxu0
    %v230 = vadd.f32 0.0, %v229
    %231 = vdwg.mxu0
    %234 = vrot.lane.b32.xlu0 %v228, 8
    %v235 = vpop.permute.xlu0 %234
    %236 = vrot.lane.b32.xlu0 %v230, 8
    %v237 = vpop.permute.xlu0 %236
    %v240 = vsel %vm96, %v160, %v235
    %v241 = vsel %vm96, %v162, %v237
    %v242 = vpack.c.bf16 %v241, %v240
    %v243 = vld [vmem:[%s4] sm:$0xf]
    %v244 = vld [vmem:[%s4 + $0x4] sm:$0xf]
    %v245 = vld [vmem:[%s5] sm:$0x1]
    %v247 = vperm.slane %v245, 0
    %v251 = vunpack.c.l.b16 %v243
    %v252 = vunpack.c.l.b16 %v244
    %v253 = vpack.c.b16 %v252, %v251
    %v256 = vsel %vm117, %v242, 0
    %258 = vmatpush.bf16.msra.mxu0 0
    %259 = vmatpush.bf16.msra.mxu0 0
    %260 = vmatpush.bf16.msra.mxu0 0
    %261 = vmatpush.bf16.msra.mxu0 0
    %262 = vmatpush.bf16.msra.mxu0 0
    %263 = vmatpush.bf16.msra.mxu0 0
    %264 = vmatpush.bf16.msra.mxu0 0
    %265 = vmatpush.bf16.msra.mxu0 %v253
    %266 = vmatmul.bf16.gmra.mxu0 %v256
    %v267 = vpop.f32.mrf.mxu0
    %v268 = vadd.f32 %v247, %v267
    %v269 = vpop.f32.mrf.mxu0
    %v270 = vadd.f32 %v247, %v269
    %271 = vdwg.mxu0
    %v272 = vadd.f32 %v268, %v49
    %v273 = vadd.f32 %v270, %v50
    %v274 = vld [vmem:[%s6] sm:$0x1]
    %v275 = vld [vmem:[%s7] sm:$0x1]
    %v276 = vsel %vm72, %v272, 0.0
    %277 = vadd.xlane.f32.xlu0 %v276
    %v278 = vpop.xlane.xlu0 %277
    %v279 = vsel %vm72, %v273, 0.0
    %280 = vadd.xlane.f32.xlu0 %v279
    %v281 = vpop.xlane.xlu0 %280
    %v282 = vrcp.pop 32.0
    %v283 = vmul.f32 32.0, %v282
    %v284 = vsub.f32 1.0, %v283
    %v285 = vmul.f32 %v282, %v284
    %v286 = vadd.f32 %v282, %v285
    %vm287 = vweird.f32 %v282
    %v288 = vsel %vm287, %v282, %v286
    %v289 = vmul.f32 %v278, %v288
    %v290 = vmul.f32 %v281, %v288
    %v291 = vsub.f32 %v272, %v289
    %v292 = vsub.f32 %v273, %v290
    %v293 = vmul.f32 %v291, %v291
    %v294 = vmul.f32 %v292, %v292
    %v295 = vsel %vm72, %v293, 0.0
    %296 = vadd.xlane.f32.xlu0 %v295
    %v297 = vpop.xlane.xlu0 %296
    %v298 = vsel %vm72, %v294, 0.0
    %299 = vadd.xlane.f32.xlu0 %v298
    %v300 = vpop.xlane.xlu0 %299
    %v301 = vmul.f32 %v297, %v288
    %v302 = vmul.f32 %v300, %v288
    %v303 = vadd.f32 %v301, 1e-05
    %v304 = vadd.f32 %v302, 1e-05
    %v305 = vrsqrt.pop %v303
    %v306 = vmul.f32 %v305, %v303
    %v307 = vmul.f32 %v306, %v305
    %v308 = vmul.f32 0.5, %v307
    %v309 = vsub.f32 1.5, %v308
    %v310 = vmul.f32 %v305, %v309
    %vm311 = vweird.f32 %v303
    %vm312 = vweird.f32 %v305
    %vm313 = vmor %vm311, %vm312
    %v314 = vsel %vm313, %v305, %v310
    %v315 = vrsqrt.pop %v304
    %v316 = vmul.f32 %v315, %v304
    %v317 = vmul.f32 %v316, %v315
    %v318 = vmul.f32 0.5, %v317
    %v319 = vsub.f32 1.5, %v318
    %v320 = vmul.f32 %v315, %v319
    %vm321 = vweird.f32 %v304
    %vm322 = vweird.f32 %v315
    %vm323 = vmor %vm321, %vm322
    %v324 = vsel %vm323, %v315, %v320
    %v325 = vmul.f32 %v291, %v314
    %v326 = vmul.f32 %v292, %v324
    %v328 = vperm.slane %v274, 0
    %v330 = vmul.f32 %v325, %v328
    %v331 = vmul.f32 %v326, %v328
    %v333 = vperm.slane %v275, 0
    %v335 = vadd.f32 %v330, %v333
    %v336 = vadd.f32 %v331, %v333
    %v337 = vld [vmem:[%s8] sm:$0xf]
    %v338 = vld [vmem:[%s8 + $0x4] sm:$0xf]
    %v339 = vld [vmem:[%s8 + $0x8] sm:$0xf]
    %v340 = vld [vmem:[%s8 + $0xc] sm:$0xf]
    %v341 = vld [vmem:[%s9] sm:$0x1]
    %v342 = vld [vmem:[%s10] sm:$0xf]
    %v343 = vld [vmem:[%s10 + $0x4] sm:$0xf]
    %v344 = vld [vmem:[%s10 + $0x8] sm:$0xf]
    %v345 = vld [vmem:[%s10 + $0xc] sm:$0xf]
    %v346 = vld [vmem:[%s11] sm:$0x1]
    %v347 = vld [vmem:[%s12] sm:$0xf]
    %v348 = vld [vmem:[%s12 + $0x4] sm:$0xf]
    %v349 = vld [vmem:[%s12 + $0x8] sm:$0xf]
    %v350 = vld [vmem:[%s12 + $0xc] sm:$0xf]
    %v351 = vld [vmem:[%s12 + $0x10] sm:$0xf]
    %v352 = vld [vmem:[%s12 + $0x14] sm:$0xf]
    %v353 = vld [vmem:[%s12 + $0x18] sm:$0xf]
    %v354 = vld [vmem:[%s12 + $0x1c] sm:$0xf]
    %v355 = vld [vmem:[%s12 + $0x20] sm:$0xf]
    %v356 = vld [vmem:[%s12 + $0x24] sm:$0xf]
    %v357 = vld [vmem:[%s12 + $0x28] sm:$0xf]
    %v358 = vld [vmem:[%s12 + $0x2c] sm:$0xf]
    %v359 = vld [vmem:[%s12 + $0x30] sm:$0xf]
    %v360 = vld [vmem:[%s12 + $0x34] sm:$0xf]
    %v361 = vld [vmem:[%s12 + $0x38] sm:$0xf]
    %v362 = vld [vmem:[%s12 + $0x3c] sm:$0xf]
    %v363 = vld [vmem:[%s13] sm:$0x1]
    %v364 = vpack.c.bf16 %v336, %v335
    %v366 = vperm.slane %v341, 0
    %v372 = vunpack.c.l.b16 %v337
    %v373 = vunpack.c.l.b16 %v338
    %v374 = vunpack.c.l.b16 %v339
    %v375 = vunpack.c.l.b16 %v340
    %v376 = vpack.c.b16 %v373, %v372
    %v377 = vpack.c.b16 %v375, %v374
    %v381 = vsel %vm72, %v364, 0
    %383 = vmatpush.bf16.msra.mxu0 0
    %384 = vmatpush.bf16.msra.mxu0 0
    %385 = vmatpush.bf16.msra.mxu0 0
    %386 = vmatpush.bf16.msra.mxu0 0
    %387 = vmatpush.bf16.msra.mxu0 0
    %388 = vmatpush.bf16.msra.mxu0 0
    %389 = vmatpush.bf16.msra.mxu0 %v377
    %390 = vmatpush.bf16.msra.mxu0 %v376
    %391 = vmatmul.bf16.gmra.mxu0 %v381
    %v392 = vpop.f32.mrf.mxu0
    %v393 = vadd.f32 %v366, %v392
    %v394 = vpop.f32.mrf.mxu0
    %v395 = vadd.f32 %v366, %v394
    %396 = vdwg.mxu0
    %v398 = vperm.slane %v346, 0
    %v404 = vunpack.c.l.b16 %v342
    %v405 = vunpack.c.l.b16 %v343
    %v406 = vunpack.c.l.b16 %v344
    %v407 = vunpack.c.l.b16 %v345
    %v408 = vpack.c.b16 %v405, %v404
    %v409 = vpack.c.b16 %v407, %v406
    %412 = vmatpush.bf16.msra.mxu0 0
    %413 = vmatpush.bf16.msra.mxu0 0
    %414 = vmatpush.bf16.msra.mxu0 0
    %415 = vmatpush.bf16.msra.mxu0 0
    %416 = vmatpush.bf16.msra.mxu0 0
    %417 = vmatpush.bf16.msra.mxu0 0
    %418 = vmatpush.bf16.msra.mxu0 %v409
    %419 = vmatpush.bf16.msra.mxu0 %v408
    %420 = vmatmul.bf16.gmra.mxu0 %v381
    %v421 = vpop.f32.mrf.mxu0
    %v422 = vadd.f32 %v398, %v421
    %v423 = vpop.f32.mrf.mxu0
    %v424 = vadd.f32 %v398, %v423
    %425 = vdwg.mxu0
    %v426 = vmul.f32 %v422, %v422
    %v427 = vmul.f32 %v424, %v424
    %v428 = vmul.f32 %v422, %v426
    %v429 = vmul.f32 %v424, %v427
    %v430 = vmul.f32 %v428, 0.044715
    %v431 = vmul.f32 %v429, 0.044715
    %v432 = vadd.f32 %v422, %v430
    %v433 = vadd.f32 %v424, %v431
    %v434 = vmul.f32 %v432, 0.7978846
    %v435 = vmul.f32 %v433, 0.7978846
    %v436 = vtanh.pop %v434
    %v437 = vtanh.pop %v435
    %v438 = vadd.f32 %v436, 1.0
    %v439 = vadd.f32 %v437, 1.0
    %v440 = vmul.f32 %v438, 0.5
    %v441 = vmul.f32 %v439, 0.5
    %v442 = vmul.f32 %v422, %v440
    %v443 = vmul.f32 %v424, %v441
    %v444 = vmul.f32 %v393, %v442
    %v445 = vmul.f32 %v395, %v443
    %v446 = vpack.c.bf16 %v445, %v444
    %v448 = vperm.slane %v363, 0
    %v466 = vunpack.c.l.b16 %v347
    %v467 = vunpack.c.l.b16 %v348
    %v468 = vunpack.c.l.b16 %v349
    %v469 = vunpack.c.l.b16 %v350
    %v470 = vunpack.c.l.b16 %v351
    %v471 = vunpack.c.l.b16 %v352
    %v472 = vunpack.c.l.b16 %v353
    %v473 = vunpack.c.l.b16 %v354
    %v474 = vunpack.c.l.b16 %v355
    %v475 = vunpack.c.l.b16 %v356
    %v476 = vunpack.c.l.b16 %v357
    %v477 = vunpack.c.l.b16 %v358
    %v478 = vunpack.c.l.b16 %v359
    %v479 = vunpack.c.l.b16 %v360
    %v480 = vunpack.c.l.b16 %v361
    %v481 = vunpack.c.l.b16 %v362
    %v482 = vpack.c.b16 %v467, %v466
    %v483 = vpack.c.b16 %v469, %v468
    %v484 = vpack.c.b16 %v471, %v470
    %v485 = vpack.c.b16 %v473, %v472
    %v486 = vpack.c.b16 %v475, %v474
    %v487 = vpack.c.b16 %v477, %v476
    %v488 = vpack.c.b16 %v479, %v478
    %v489 = vpack.c.b16 %v481, %v480
    %498 = vmatpush.bf16.msra.mxu0 %v489
    %499 = vmatpush.bf16.msra.mxu0 %v488
    %500 = vmatpush.bf16.msra.mxu0 %v487
    %501 = vmatpush.bf16.msra.mxu0 %v486
    %502 = vmatpush.bf16.msra.mxu0 %v485
    %503 = vmatpush.bf16.msra.mxu0 %v484
    %504 = vmatpush.bf16.msra.mxu0 %v483
    %505 = vmatpush.bf16.msra.mxu0 %v482
    %506 = vmatmul.bf16.gmra.mxu0 %v446
    %v507 = vpop.f32.mrf.mxu0
    %v508 = vadd.f32 %v448, %v507
    %v509 = vpop.f32.mrf.mxu0
    %v510 = vadd.f32 %v448, %v509
    %511 = vdwg.mxu0
    %v512 = vadd.f32 %v508, %v335
    %v513 = vadd.f32 %v510, %v336
    %514 = vst.msk [vmem:[#allocation2] sm:$0xff] %vm72, %v512
    %515 = vst.msk [vmem:[#allocation2 + $0x8] sm:$0xff] %vm72, %v513
    // Predicated region
    $region58: #{contabulizer_forward.17} parent=1 // pred_check
      _
    $region59: #{contabulizer_forward.17} parent=1 // pred_check_branch
      %517 = sbr.rel (0) target = $region61
    $region60: #{contabulizer_forward.17} parent=1 // pred_region
      %519 = vsyncadd [#allocation3], 0
      %s520 = sshll.u32 [#allocation2], 4
      %s521 = int_to_ptr.vmem [resolvable:$true] %s520
      %s522 = sshll.u32 %s14, 4
      %s523 = int_to_ptr.hbm [resolvable:$true] %s522
      %528 = dma.vmem_to_hbm [thread:$0]  %s521, 256, %s523, [#allocation3], 128, 128, 8
    $region61: #{contabulizer_forward.17} parent=1 // pred_fallthru
      _
    // Predicated region
    $region62: #{contabulizer_forward.17} parent=1 // pred_check
      _
    $region63: #{contabulizer_forward.17} parent=1 // pred_check_branch
      %530 = sbr.rel (0) target = $region65
    $region64: #{contabulizer_forward.17} parent=1 // pred_region
      %532 = dma.done [#allocation3], 256
    $region65: #{contabulizer_forward.17} parent=1 // pred_fallthru
      _
    %533 = vsyncpa [#allocation3], 1

</llo_original>
